<compile_context>
chip_gen: v6e
topology: v6e:2x2x1
jax: 0.10.0
libtpu: 0.0.40
codegen_flags: <defaults>
</compile_context>

<pallas_src>
import functools

import jax
import jax.numpy as jnp
from jax.experimental import pallas as pl
from jax.experimental.pallas import tpu as pltpu


def _round_up(x, m):
    return ((x + m - 1) // m) * m


def _mlp_kernel(x_ref,
                w1_ref, b1_ref, w2_ref, b2_ref, w3_ref, b3_ref,
                w4_ref, b4_ref, w5_ref, b5_ref, w6_ref, b6_ref,
                out_ref):
    """Whole JointDecoder MLP for one batch tile, fully VMEM-resident.

    x:   (TM, z_dim)          bf16
    w1:  (z_dim, 512)  bf16   w2..w5: (512, 512) bf16   w6: (512, n_pad) bf16
    b*:  (1, n)        bf16
    out: (TM, n_pad)   f32    (n_pad = out_size rounded up to 128 lanes)
    """

    def layer(h, w_ref, b_ref, relu):
        acc = jnp.dot(h, w_ref[...], preferred_element_type=jnp.float32)
        acc = acc + b_ref[...].astype(jnp.float32)
        if relu:
            # ReLU in f32, then narrow to bf16 for the next MXU pass.
            return jnp.maximum(acc, 0.0).astype(jnp.bfloat16)
        return acc

    h = x_ref[...]                                # bf16
    h = layer(h, w1_ref, b1_ref, relu=True)
    h = layer(h, w2_ref, b2_ref, relu=True)
    h = layer(h, w3_ref, b3_ref, relu=True)
    h = layer(h, w4_ref, b4_ref, relu=True)
    h = layer(h, w5_ref, b5_ref, relu=True)
    h = layer(h, w6_ref, b6_ref, relu=False)      # f32, (TM, n_pad)
    out_ref[...] = h.astype(out_ref.dtype)


def prepare_params(params_f32, out_dim):
    """Cast params to bf16 and pad the final layer to a lane-dense width.

    params_f32: flat tuple (w1, b1, ..., w6, b6) with w as (in, out), b as (1, out).
    Returns the same structure, bf16, with w6/b6 padded from out_size to a
    multiple of 128 along the output axis (extra columns are zeros).
    """
    out_size = out_dim[0] * out_dim[1]
    n_pad = _round_up(out_size, 128)
    prepared = []
    for i in range(6):
        w = params_f32[2 * i].astype(jnp.bfloat16)
        b = params_f32[2 * i + 1].astype(jnp.bfloat16)
        if i == 5 and n_pad != out_size:
            w = jnp.pad(w, ((0, 0), (0, n_pad - out_size)))
            b = jnp.pad(b, ((0, 0), (0, n_pad - out_size)))
        prepared.extend([w, b])
    return tuple(prepared)


@functools.partial(jax.jit, static_argnames=("out_dim",))
def joint_decoder_forward(x, params, out_dim):
    """Pallas equivalent of JointDecoder.forward.

    x: (B, z_dim) float32 (or bf16)
    params: output of prepare_params() — bf16, last layer lane-padded.
    out_dim: static (d0, d1) tuple, e.g. (21, 3)
    """
    batch, z_dim = x.shape
    out_size = out_dim[0] * out_dim[1]
    hidden = params[2].shape[0]          # 512
    n_pad = params[11].shape[-1]         # out_size rounded up to 128

    x = x.astype(jnp.bfloat16)

    # Batch tiling: one full-batch tile when small (block == full dim is
    # always legal), otherwise TM=256 tiles (fills a v6e/v7x MXU pass; two
    # passes on v5e) with zero-padding of the batch.
    TM_MAX = 256
    if batch <= TM_MAX:
        tm, b_pad = batch, batch
    else:
        tm = TM_MAX
        b_pad = _round_up(batch, tm)
        if b_pad != batch:
            x = jnp.pad(x, ((0, b_pad - batch), (0, 0)))
    grid = (b_pad // tm,)

    # Weights/biases: constant index_map -> fetched once, VMEM-resident
    # across all batch tiles.
    weight_specs = [pl.BlockSpec(p.shape, lambda i: (0, 0)) for p in params]

    weight_bytes = sum(int(p.size) * p.dtype.itemsize for p in params)
    io_bytes = int(x.size) * x.dtype.itemsize + b_pad * n_pad * 4
    flops = 2 * b_pad * (z_dim * hidden + 4 * hidden * hidden + hidden * n_pad)
    cost = pl.CostEstimate(flops=flops, transcendentals=0,
                           bytes_accessed=weight_bytes + io_bytes)

    out_flat = pl.pallas_call(
        _mlp_kernel,
        out_shape=jax.ShapeDtypeStruct((b_pad, n_pad), jnp.float32),
        grid_spec=pltpu.PrefetchScalarGridSpec(
            num_scalar_prefetch=0,
            grid=grid,
            in_specs=[pl.BlockSpec((tm, z_dim), lambda i: (i, 0))] + weight_specs,
            out_specs=pl.BlockSpec((tm, n_pad), lambda i: (i, 0)),
        ),
        compiler_params=pltpu.CompilerParams(
            dimension_semantics=("parallel",)),
        cost_estimate=cost,
    )(x, *params)

    # Drop batch/lane padding, then view(-1, out_dim[0], out_dim[1]).
    return out_flat[:batch, :out_size].reshape(-1, out_dim[0], out_dim[1])


def init_joint_decoder_params(key, z_dim, out_dim, hidden=512):
    """Deterministic f32 parameter init matching nn.Linear shapes.

    PyTorch default: U(-1/sqrt(fan_in), 1/sqrt(fan_in)) for both W and b.
    Weights are stored as (in_features, out_features).
    """
    out_size = out_dim[0] * out_dim[1]
    dims = [(z_dim, hidden), (hidden, hidden), (hidden, hidden),
            (hidden, hidden), (hidden, hidden), (hidden, out_size)]
    params = []
    for (fan_in, fan_out) in dims:
        key, kw, kb = jax.random.split(key, 3)
        bound = 1.0 / jnp.sqrt(jnp.float32(fan_in))
        w = jax.random.uniform(kw, (fan_in, fan_out), jnp.float32,
                               minval=-bound, maxval=bound)
        b = jax.random.uniform(kb, (1, fan_out), jnp.float32,
                               minval=-bound, maxval=bound)
        params.extend([w, b])
    return tuple(params)


def _reference_forward(x, params_f32, out_dim):
    """Plain-JAX f32 reference (original module semantics)."""
    h = x
    for i in range(5):
        w, b = params_f32[2 * i], params_f32[2 * i + 1]
        h = jnp.maximum(h @ w + b, 0.0)
    w, b = params_f32[10], params_f32[11]
    h = h @ w + b
    return h.reshape(-1, out_dim[0], out_dim[1])


if __name__ == "__main__":
    # Small shapes consistent with the module: z_dim=32, out_dim=(21, 3)
    # (21 hand joints x 3D), batch=2.
    z_dim = 32
    out_dim = (21, 3)
    batch = 2

    key = jax.random.PRNGKey(0)
    key_x, key_p = jax.random.split(key)

    x = jax.random.normal(key_x, (batch, z_dim), jnp.float32)
    params_f32 = init_joint_decoder_params(key_p, z_dim, out_dim)
    params = prepare_params(params_f32, out_dim)   # bf16 + lane-padded layer 6

    out = joint_decoder_forward(x, params, out_dim)
    out = jax.block_until_ready(out)

    assert out.shape == (batch, out_dim[0], out_dim[1]), out.shape

    # Loose tolerance: kernel runs bf16 weights/activations with f32
    # accumulation; reference is pure f32.
    ref = _reference_forward(x, params_f32, out_dim)
    max_err = float(jnp.max(jnp.abs(out - ref)))
    assert jnp.allclose(out, ref, atol=2e-2, rtol=2e-2), f"mismatch, max_err={max_err}"

    print("KERNEL_OK")
</pallas_src>

<mosaic_0001>
module attributes {stable_mosaic.version = 11 : i64} {
  func.func @_mlp_kernel(%arg0: i32, %arg1: memref<2x32xbf16, #tpu.memory_space<vmem>>, %arg2: memref<32x512xbf16, #tpu.memory_space<vmem>>, %arg3: memref<1x512xbf16, #tpu.memory_space<vmem>>, %arg4: memref<512x512xbf16, #tpu.memory_space<vmem>>, %arg5: memref<1x512xbf16, #tpu.memory_space<vmem>>, %arg6: memref<512x512xbf16, #tpu.memory_space<vmem>>, %arg7: memref<1x512xbf16, #tpu.memory_space<vmem>>, %arg8: memref<512x512xbf16, #tpu.memory_space<vmem>>, %arg9: memref<1x512xbf16, #tpu.memory_space<vmem>>, %arg10: memref<512x512xbf16, #tpu.memory_space<vmem>>, %arg11: memref<1x512xbf16, #tpu.memory_space<vmem>>, %arg12: memref<512x128xbf16, #tpu.memory_space<vmem>>, %arg13: memref<1x128xbf16, #tpu.memory_space<vmem>>, %arg14: memref<2x128xf32, #tpu.memory_space<vmem>>) attributes {dimension_semantics = [#tpu.dimension_semantics<parallel>], iteration_bounds = array<i64: 1>, scalar_prefetch = 0 : i64, scratch_operands = 0 : i64, tpu.core_type = #tpu.core_type<tc>, window_params = [{transform_indices = @transform_0, window_bounds = array<i64: 2, 32>}, {pipeline_mode = #tpu.pipeline_mode<synchronous>, transform_indices = @transform_1, window_bounds = array<i64: 32, 512>}, {pipeline_mode = #tpu.pipeline_mode<synchronous>, transform_indices = @transform_2, window_bounds = array<i64: 1, 512>}, {pipeline_mode = #tpu.pipeline_mode<synchronous>, transform_indices = @transform_3, window_bounds = array<i64: 512, 512>}, {pipeline_mode = #tpu.pipeline_mode<synchronous>, transform_indices = @transform_4, window_bounds = array<i64: 1, 512>}, {pipeline_mode = #tpu.pipeline_mode<synchronous>, transform_indices = @transform_5, window_bounds = array<i64: 512, 512>}, {pipeline_mode = #tpu.pipeline_mode<synchronous>, transform_indices = @transform_6, window_bounds = array<i64: 1, 512>}, {pipeline_mode = #tpu.pipeline_mode<synchronous>, transform_indices = @transform_7, window_bounds = array<i64: 512, 512>}, {pipeline_mode = #tpu.pipeline_mode<synchronous>, transform_indices = @transform_8, window_bounds = array<i64: 1, 512>}, {pipeline_mode = #tpu.pipeline_mode<synchronous>, transform_indices = @transform_9, window_bounds = array<i64: 512, 512>}, {pipeline_mode = #tpu.pipeline_mode<synchronous>, transform_indices = @transform_10, window_bounds = array<i64: 1, 512>}, {pipeline_mode = #tpu.pipeline_mode<synchronous>, transform_indices = @transform_11, window_bounds = array<i64: 512, 128>}, {pipeline_mode = #tpu.pipeline_mode<synchronous>, transform_indices = @transform_12, window_bounds = array<i64: 1, 128>}, {transform_indices = @transform_13, window_bounds = array<i64: 2, 128>}]} {
    %c0 = arith.constant 0 : index
    %c0_0 = arith.constant 0 : index
    %0 = vector.load %arg1[%c0, %c0_0] : memref<2x32xbf16, #tpu.memory_space<vmem>>, vector<2x32xbf16>
    %c0_1 = arith.constant 0 : index
    %c0_2 = arith.constant 0 : index
    %1 = vector.load %arg2[%c0_1, %c0_2] : memref<32x512xbf16, #tpu.memory_space<vmem>>, vector<32x512xbf16>
    %cst = arith.constant dense<0.000000e+00> : vector<2x512xf32>
    %2 = tpu.matmul %0, %1, %cst {dimension_numbers = #tpu.dot_dimension_numbers<[1], [0], [0], [1], [0, 0, 1, 1], [], []>} : vector<2x32xbf16>, vector<32x512xbf16>, vector<2x512xf32> -> vector<2x512xf32>
    %c0_3 = arith.constant 0 : index
    %c0_4 = arith.constant 0 : index
    %3 = vector.load %arg3[%c0_3, %c0_4] : memref<1x512xbf16, #tpu.memory_space<vmem>>, vector<1x512xbf16>
    %4 = arith.extf %3 : vector<1x512xbf16> to vector<1x512xf32>
    %5 = vector.broadcast %4 : vector<1x512xf32> to vector<2x512xf32>
    %6 = arith.addf %2, %5 : vector<2x512xf32>
    %cst_5 = arith.constant 0.000000e+00 : f32
    %7 = vector.broadcast %cst_5 : f32 to vector<2x512xf32>
    %8 = arith.maximumf %6, %7 : vector<2x512xf32>
    %9 = arith.truncf %8 : vector<2x512xf32> to vector<2x512xbf16>
    %c0_6 = arith.constant 0 : index
    %c0_7 = arith.constant 0 : index
    %10 = vector.load %arg4[%c0_6, %c0_7] : memref<512x512xbf16, #tpu.memory_space<vmem>>, vector<512x512xbf16>
    %cst_8 = arith.constant dense<0.000000e+00> : vector<2x512xf32>
    %11 = tpu.matmul %9, %10, %cst_8 {dimension_numbers = #tpu.dot_dimension_numbers<[1], [0], [0], [1], [0, 0, 1, 1], [], []>} : vector<2x512xbf16>, vector<512x512xbf16>, vector<2x512xf32> -> vector<2x512xf32>
    %c0_9 = arith.constant 0 : index
    %c0_10 = arith.constant 0 : index
    %12 = vector.load %arg5[%c0_9, %c0_10] : memref<1x512xbf16, #tpu.memory_space<vmem>>, vector<1x512xbf16>
    %13 = arith.extf %12 : vector<1x512xbf16> to vector<1x512xf32>
    %14 = vector.broadcast %13 : vector<1x512xf32> to vector<2x512xf32>
    %15 = arith.addf %11, %14 : vector<2x512xf32>
    %cst_11 = arith.constant 0.000000e+00 : f32
    %16 = vector.broadcast %cst_11 : f32 to vector<2x512xf32>
    %17 = arith.maximumf %15, %16 : vector<2x512xf32>
    %18 = arith.truncf %17 : vector<2x512xf32> to vector<2x512xbf16>
    %c0_12 = arith.constant 0 : index
    %c0_13 = arith.constant 0 : index
    %19 = vector.load %arg6[%c0_12, %c0_13] : memref<512x512xbf16, #tpu.memory_space<vmem>>, vector<512x512xbf16>
    %cst_14 = arith.constant dense<0.000000e+00> : vector<2x512xf32>
    %20 = tpu.matmul %18, %19, %cst_14 {dimension_numbers = #tpu.dot_dimension_numbers<[1], [0], [0], [1], [0, 0, 1, 1], [], []>} : vector<2x512xbf16>, vector<512x512xbf16>, vector<2x512xf32> -> vector<2x512xf32>
    %c0_15 = arith.constant 0 : index
    %c0_16 = arith.constant 0 : index
    %21 = vector.load %arg7[%c0_15, %c0_16] : memref<1x512xbf16, #tpu.memory_space<vmem>>, vector<1x512xbf16>
    %22 = arith.extf %21 : vector<1x512xbf16> to vector<1x512xf32>
    %23 = vector.broadcast %22 : vector<1x512xf32> to vector<2x512xf32>
    %24 = arith.addf %20, %23 : vector<2x512xf32>
    %cst_17 = arith.constant 0.000000e+00 : f32
    %25 = vector.broadcast %cst_17 : f32 to vector<2x512xf32>
    %26 = arith.maximumf %24, %25 : vector<2x512xf32>
    %27 = arith.truncf %26 : vector<2x512xf32> to vector<2x512xbf16>
    %c0_18 = arith.constant 0 : index
    %c0_19 = arith.constant 0 : index
    %28 = vector.load %arg8[%c0_18, %c0_19] : memref<512x512xbf16, #tpu.memory_space<vmem>>, vector<512x512xbf16>
    %cst_20 = arith.constant dense<0.000000e+00> : vector<2x512xf32>
    %29 = tpu.matmul %27, %28, %cst_20 {dimension_numbers = #tpu.dot_dimension_numbers<[1], [0], [0], [1], [0, 0, 1, 1], [], []>} : vector<2x512xbf16>, vector<512x512xbf16>, vector<2x512xf32> -> vector<2x512xf32>
    %c0_21 = arith.constant 0 : index
    %c0_22 = arith.constant 0 : index
    %30 = vector.load %arg9[%c0_21, %c0_22] : memref<1x512xbf16, #tpu.memory_space<vmem>>, vector<1x512xbf16>
    %31 = arith.extf %30 : vector<1x512xbf16> to vector<1x512xf32>
    %32 = vector.broadcast %31 : vector<1x512xf32> to vector<2x512xf32>
    %33 = arith.addf %29, %32 : vector<2x512xf32>
    %cst_23 = arith.constant 0.000000e+00 : f32
    %34 = vector.broadcast %cst_23 : f32 to vector<2x512xf32>
    %35 = arith.maximumf %33, %34 : vector<2x512xf32>
    %36 = arith.truncf %35 : vector<2x512xf32> to vector<2x512xbf16>
    %c0_24 = arith.constant 0 : index
    %c0_25 = arith.constant 0 : index
    %37 = vector.load %arg10[%c0_24, %c0_25] : memref<512x512xbf16, #tpu.memory_space<vmem>>, vector<512x512xbf16>
    %cst_26 = arith.constant dense<0.000000e+00> : vector<2x512xf32>
    %38 = tpu.matmul %36, %37, %cst_26 {dimension_numbers = #tpu.dot_dimension_numbers<[1], [0], [0], [1], [0, 0, 1, 1], [], []>} : vector<2x512xbf16>, vector<512x512xbf16>, vector<2x512xf32> -> vector<2x512xf32>
    %c0_27 = arith.constant 0 : index
    %c0_28 = arith.constant 0 : index
    %39 = vector.load %arg11[%c0_27, %c0_28] : memref<1x512xbf16, #tpu.memory_space<vmem>>, vector<1x512xbf16>
    %40 = arith.extf %39 : vector<1x512xbf16> to vector<1x512xf32>
    %41 = vector.broadcast %40 : vector<1x512xf32> to vector<2x512xf32>
    %42 = arith.addf %38, %41 : vector<2x512xf32>
    %cst_29 = arith.constant 0.000000e+00 : f32
    %43 = vector.broadcast %cst_29 : f32 to vector<2x512xf32>
    %44 = arith.maximumf %42, %43 : vector<2x512xf32>
    %45 = arith.truncf %44 : vector<2x512xf32> to vector<2x512xbf16>
    %c0_30 = arith.constant 0 : index
    %c0_31 = arith.constant 0 : index
    %46 = vector.load %arg12[%c0_30, %c0_31] : memref<512x128xbf16, #tpu.memory_space<vmem>>, vector<512x128xbf16>
    %cst_32 = arith.constant dense<0.000000e+00> : vector<2x128xf32>
    %47 = tpu.matmul %45, %46, %cst_32 {dimension_numbers = #tpu.dot_dimension_numbers<[1], [0], [0], [1], [0, 0, 1, 1], [], []>} : vector<2x512xbf16>, vector<512x128xbf16>, vector<2x128xf32> -> vector<2x128xf32>
    %c0_33 = arith.constant 0 : index
    %c0_34 = arith.constant 0 : index
    %48 = vector.load %arg13[%c0_33, %c0_34] : memref<1x128xbf16, #tpu.memory_space<vmem>>, vector<1x128xbf16>
    %49 = arith.extf %48 : vector<1x128xbf16> to vector<1x128xf32>
    %50 = vector.broadcast %49 : vector<1x128xf32> to vector<2x128xf32>
    %51 = arith.addf %47, %50 : vector<2x128xf32>
    %c0_35 = arith.constant 0 : index
    %c0_36 = arith.constant 0 : index
    %52 = vector.load %arg14[%c0_35, %c0_36] : memref<2x128xf32, #tpu.memory_space<vmem>>, vector<2x128xf32>
    tpu.vector_store %arg14[%c0_35, %c0_36], %51 {strides = array<i32>} : memref<2x128xf32, #tpu.memory_space<vmem>>, vector<2x128xf32>,
    return
  }
  func.func @transform_0(%arg0: i32) -> (i32, i32) {
    %c0_i32 = arith.constant 0 : i32
    %c0_i32_0 = arith.constant 0 : i32
    return %arg0, %c0_i32 : i32, i32
  }
  func.func @transform_1(%arg0: i32) -> (i32, i32) {
    %c0_i32 = arith.constant 0 : i32
    %c0_i32_0 = arith.constant 0 : i32
    %c0_i32_1 = arith.constant 0 : i32
    return %c0_i32, %c0_i32_0 : i32, i32
  }
  func.func @transform_2(%arg0: i32) -> (i32, i32) {
    %c0_i32 = arith.constant 0 : i32
    %c0_i32_0 = arith.constant 0 : i32
    %c0_i32_1 = arith.constant 0 : i32
    return %c0_i32, %c0_i32_0 : i32, i32
  }
  func.func @transform_3(%arg0: i32) -> (i32, i32) {
    %c0_i32 = arith.constant 0 : i32
    %c0_i32_0 = arith.constant 0 : i32
    %c0_i32_1 = arith.constant 0 : i32
    return %c0_i32, %c0_i32_0 : i32, i32
  }
  func.func @transform_4(%arg0: i32) -> (i32, i32) {
    %c0_i32 = arith.constant 0 : i32
    %c0_i32_0 = arith.constant 0 : i32
    %c0_i32_1 = arith.constant 0 : i32
    return %c0_i32, %c0_i32_0 : i32, i32
  }
  func.func @transform_5(%arg0: i32) -> (i32, i32) {
    %c0_i32 = arith.constant 0 : i32
    %c0_i32_0 = arith.constant 0 : i32
    %c0_i32_1 = arith.constant 0 : i32
    return %c0_i32, %c0_i32_0 : i32, i32
  }
  func.func @transform_6(%arg0: i32) -> (i32, i32) {
    %c0_i32 = arith.constant 0 : i32
    %c0_i32_0 = arith.constant 0 : i32
    %c0_i32_1 = arith.constant 0 : i32
    return %c0_i32, %c0_i32_0 : i32, i32
  }
  func.func @transform_7(%arg0: i32) -> (i32, i32) {
    %c0_i32 = arith.constant 0 : i32
    %c0_i32_0 = arith.constant 0 : i32
    %c0_i32_1 = arith.constant 0 : i32
    return %c0_i32, %c0_i32_0 : i32, i32
  }
  func.func @transform_8(%arg0: i32) -> (i32, i32) {
    %c0_i32 = arith.constant 0 : i32
    %c0_i32_0 = arith.constant 0 : i32
    %c0_i32_1 = arith.constant 0 : i32
    return %c0_i32, %c0_i32_0 : i32, i32
  }
  func.func @transform_9(%arg0: i32) -> (i32, i32) {
    %c0_i32 = arith.constant 0 : i32
    %c0_i32_0 = arith.constant 0 : i32
    %c0_i32_1 = arith.constant 0 : i32
    return %c0_i32, %c0_i32_0 : i32, i32
  }
  func.func @transform_10(%arg0: i32) -> (i32, i32) {
    %c0_i32 = arith.constant 0 : i32
    %c0_i32_0 = arith.constant 0 : i32
    %c0_i32_1 = arith.constant 0 : i32
    return %c0_i32, %c0_i32_0 : i32, i32
  }
  func.func @transform_11(%arg0: i32) -> (i32, i32) {
    %c0_i32 = arith.constant 0 : i32
    %c0_i32_0 = arith.constant 0 : i32
    %c0_i32_1 = arith.constant 0 : i32
    return %c0_i32, %c0_i32_0 : i32, i32
  }
  func.func @transform_12(%arg0: i32) -> (i32, i32) {
    %c0_i32 = arith.constant 0 : i32
    %c0_i32_0 = arith.constant 0 : i32
    %c0_i32_1 = arith.constant 0 : i32
    return %c0_i32, %c0_i32_0 : i32, i32
  }
  func.func @transform_13(%arg0: i32) -> (i32, i32) {
    %c0_i32 = arith.constant 0 : i32
    %c0_i32_0 = arith.constant 0 : i32
    return %arg0, %c0_i32 : i32, i32
  }
}

</mosaic_0001>

<llo_original>
// kernel: joint_decoder_forward.1
$region0: #{joint_decoder_forward.1}
  #allocation0 [shape = 'u32[]', space=smem, size = 0x4, offset = 0x4, fixed_abs, tag = 'smem constant byte address 0x4 - core index']
  #allocation1 [shape = 'u32[144,128]{1,0:T(1,128)}', space=vmem, size = 0x12000, scoped, tag = 'internal scratch']
  %s0 = inlined_call_operand.vmem [shape: bf16[2,32], index: 0, kind: input, shape index: {}]
  %s1 = inlined_call_operand.hbm [shape: bf16[32,512], index: 1, kind: input, shape index: {}]
  %s2 = inlined_call_operand.vmem [shape: bf16[1,512], index: 2, kind: input, shape index: {}]
  %s3 = inlined_call_operand.hbm [shape: bf16[512,512], index: 3, kind: input, shape index: {}]
  %s4 = inlined_call_operand.vmem [shape: bf16[1,512], index: 4, kind: input, shape index: {}]
  %s5 = inlined_call_operand.hbm [shape: bf16[512,512], index: 5, kind: input, shape index: {}]
  %s6 = inlined_call_operand.vmem [shape: bf16[1,512], index: 6, kind: input, shape index: {}]
  %s7 = inlined_call_operand.hbm [shape: bf16[512,512], index: 7, kind: input, shape index: {}]
  %s8 = inlined_call_operand.vmem [shape: bf16[1,512], index: 8, kind: input, shape index: {}]
  %s9 = inlined_call_operand.hbm [shape: bf16[512,512], index: 9, kind: input, shape index: {}]
  %s10 = inlined_call_operand.vmem [shape: bf16[1,512], index: 10, kind: input, shape index: {}]
  %s11 = inlined_call_operand.hbm [shape: bf16[512,128], index: 11, kind: input, shape index: {}]
  %s12 = inlined_call_operand.vmem [shape: bf16[1,128], index: 12, kind: input, shape index: {}]
  %s13 = inlined_call_operand.vmem [shape: f32[2,128], index: 13, kind: output, shape index: {}]
  %s14 = sld [smem:[#allocation0]]
  $region86: #{joint_decoder_forward.1} parent=0
    _
  %s16 = ssub.s32 1, %s14
  %s17 = scalar_select 0, %s16, %s14
  $region1: #{joint_decoder_forward.1} parent=0
    #allocation2 [shape = 'u8[32768]{0}', space=vmem, size = 0x8000, scoped, tag = 'input window, operand 1, single buffered']
    #allocation3 [shape = 's32[1]{0}', space=sflag, size = 0x4, scoped, tag = 'scoped memory for joint_decoder_forward.1']
    #allocation4 [shape = 'u8[524288]{0}', space=vmem, size = 0x80000, scoped, tag = 'input window, operand 3, single buffered']
    #allocation5 [shape = 's32[1]{0}', space=sflag, size = 0x4, scoped, tag = 'scoped memory for joint_decoder_forward.1']
    #allocation6 [shape = 'u8[524288]{0}', space=vmem, size = 0x80000, scoped, tag = 'input window, operand 5, single buffered']
    #allocation7 [shape = 'u8[524288]{0}', space=vmem, size = 0x80000, scoped, tag = 'input window, operand 7, single buffered']
    #allocation8 [shape = 's32[1]{0}', space=sflag, size = 0x4, scoped, tag = 'scoped memory for joint_decoder_forward.1']
    #allocation9 [shape = 'u8[524288]{0}', space=vmem, size = 0x80000, scoped, tag = 'input window, operand 9, single buffered']
    #allocation10 [shape = 'u8[131072]{0}', space=vmem, size = 0x20000, scoped, tag = 'input window, operand 11, single buffered']
    #allocation11 [shape = 's32[1]{0}', space=sflag, size = 0x4, scoped, tag = 'scoped memory for joint_decoder_forward.1']
    %18 = vsyncpa [#allocation3], 0
    %19 = vsyncpa [#allocation5], 0
    %20 = vsyncpa [#allocation8], 0
    %21 = vsyncpa [#allocation11], 0
    // Predicated region
    $region2: #{joint_decoder_forward.1} parent=1 // pred_check
      _
    $region3: #{joint_decoder_forward.1} parent=1 // pred_check_branch
      %23 = sbr.rel (0) target = $region5
    $region4: #{joint_decoder_forward.1} parent=1 // pred_region
      _
    $region5: #{joint_decoder_forward.1} parent=1 // pred_fallthru
      _
    // Predicated region
    $region6: #{joint_decoder_forward.1} parent=1 // pred_check
      _
    $region7: #{joint_decoder_forward.1} parent=1 // pred_check_branch
      %25 = sbr.rel (0) target = $region9
    $region8: #{joint_decoder_forward.1} parent=1 // pred_region
      %s27 = ssub.s32 1024, 1024
      %28 = vsyncadd [#allocation3], %s27
      %s29 = sshll.u32 [#allocation2], 4
      %s30 = int_to_ptr.vmem [resolvable:$true] %s29
      %35 = dma.hbm_to_vmem [thread:$0]  %s1, 1024, %s30, [#allocation3], 256, 256, 16
    $region9: #{joint_decoder_forward.1} parent=1 // pred_fallthru
      _
    // Predicated region
    $region10: #{joint_decoder_forward.1} parent=1 // pred_check
      _
    $region11: #{joint_decoder_forward.1} parent=1 // pred_check_branch
      %37 = sbr.rel (0) target = $region13
    $region12: #{joint_decoder_forward.1} parent=1 // pred_region
      _
    $region13: #{joint_decoder_forward.1} parent=1 // pred_fallthru
      _
    // Predicated region
    $region14: #{joint_decoder_forward.1} parent=1 // pred_check
      _
    $region15: #{joint_decoder_forward.1} parent=1 // pred_check_branch
      %39 = sbr.rel (0) target = $region17
    $region16: #{joint_decoder_forward.1} parent=1 // pred_region
      %s41 = ssub.s32 16384, 16384
      %42 = vsyncadd [#allocation5], %s41
      %s43 = sshll.u32 [#allocation4], 4
      %s44 = int_to_ptr.vmem [resolvable:$true] %s43
      %49 = dma.hbm_to_vmem [thread:$0]  %s3, 16384, %s44, [#allocation5], 256, 256, 16
    $region17: #{joint_decoder_forward.1} parent=1 // pred_fallthru
      _
    // Predicated region
    $region18: #{joint_decoder_forward.1} parent=1 // pred_check
      _
    $region19: #{joint_decoder_forward.1} parent=1 // pred_check_branch
      %51 = sbr.rel (0) target = $region21
    $region20: #{joint_decoder_forward.1} parent=1 // pred_region
      _
    $region21: #{joint_decoder_forward.1} parent=1 // pred_fallthru
      _
    // Predicated region
    $region22: #{joint_decoder_forward.1} parent=1 // pred_check
      _
    $region23: #{joint_decoder_forward.1} parent=1 // pred_check_branch
      %53 = sbr.rel (0) target = $region25
    $region24: #{joint_decoder_forward.1} parent=1 // pred_region
      %s55 = ssub.s32 16384, 16384
      %56 = vsyncadd [#allocation5], %s55
      %s57 = sshll.u32 [#allocation6], 4
      %s58 = int_to_ptr.vmem [resolvable:$true] %s57
      %63 = dma.hbm_to_vmem [thread:$0]  %s5, 16384, %s58, [#allocation5], 256, 256, 16
    $region25: #{joint_decoder_forward.1} parent=1 // pred_fallthru
      _
    // Predicated region
    $region26: #{joint_decoder_forward.1} parent=1 // pred_check
      _
    $region27: #{joint_decoder_forward.1} parent=1 // pred_check_branch
      %65 = sbr.rel (0) target = $region29
    $region28: #{joint_decoder_forward.1} parent=1 // pred_region
      _
    $region29: #{joint_decoder_forward.1} parent=1 // pred_fallthru
      _
    // Predicated region
    $region30: #{joint_decoder_forward.1} parent=1 // pred_check
      _
    $region31: #{joint_decoder_forward.1} parent=1 // pred_check_branch
      %67 = sbr.rel (0) target = $region33
    $region32: #{joint_decoder_forward.1} parent=1 // pred_region
      %s69 = ssub.s32 16384, 16384
      %70 = vsyncadd [#allocation8], %s69
      %s71 = sshll.u32 [#allocation7], 4
      %s72 = int_to_ptr.vmem [resolvable:$true] %s71
      %77 = dma.hbm_to_vmem [thread:$0]  %s7, 16384, %s72, [#allocation8], 256, 256, 16
    $region33: #{joint_decoder_forward.1} parent=1 // pred_fallthru
      _
    // Predicated region
    $region34: #{joint_decoder_forward.1} parent=1 // pred_check
      _
    $region35: #{joint_decoder_forward.1} parent=1 // pred_check_branch
      %79 = sbr.rel (0) target = $region37
    $region36: #{joint_decoder_forward.1} parent=1 // pred_region
      _
    $region37: #{joint_decoder_forward.1} parent=1 // pred_fallthru
      _
    // Predicated region
    $region38: #{joint_decoder_forward.1} parent=1 // pred_check
      _
    $region39: #{joint_decoder_forward.1} parent=1 // pred_check_branch
      %81 = sbr.rel (0) target = $region41
    $region40: #{joint_decoder_forward.1} parent=1 // pred_region
      %s83 = ssub.s32 16384, 16384
      %84 = vsyncadd [#allocation8], %s83
      %s85 = sshll.u32 [#allocation9], 4
      %s86 = int_to_ptr.vmem [resolvable:$true] %s85
      %91 = dma.hbm_to_vmem [thread:$0]  %s9, 16384, %s86, [#allocation8], 256, 256, 16
    $region41: #{joint_decoder_forward.1} parent=1 // pred_fallthru
      _
    // Predicated region
    $region42: #{joint_decoder_forward.1} parent=1 // pred_check
      _
    $region43: #{joint_decoder_forward.1} parent=1 // pred_check_branch
      %93 = sbr.rel (0) target = $region45
    $region44: #{joint_decoder_forward.1} parent=1 // pred_region
      _
    $region45: #{joint_decoder_forward.1} parent=1 // pred_fallthru
      _
    // Predicated region
    $region46: #{joint_decoder_forward.1} parent=1 // pred_check
      _
    $region47: #{joint_decoder_forward.1} parent=1 // pred_check_branch
      %95 = sbr.rel (0) target = $region49
    $region48: #{joint_decoder_forward.1} parent=1 // pred_region
      %s97 = ssub.s32 4096, 4096
      %98 = vsyncadd [#allocation11], %s97
      %s99 = sshll.u32 [#allocation10], 4
      %s100 = int_to_ptr.vmem [resolvable:$true] %s99
      %105 = dma.hbm_to_vmem [thread:$0]  %s11, 4096, %s100, [#allocation11], 64, 64, 4
    $region49: #{joint_decoder_forward.1} parent=1 // pred_fallthru
      _
    // Predicated region
    $region50: #{joint_decoder_forward.1} parent=1 // pred_check
      _
    $region51: #{joint_decoder_forward.1} parent=1 // pred_check_branch
      %107 = sbr.rel (0) target = $region53
    $region52: #{joint_decoder_forward.1} parent=1 // pred_region
      _
    $region53: #{joint_decoder_forward.1} parent=1 // pred_fallthru
      _
    // Predicated region
    $region54: #{joint_decoder_forward.1} parent=1 // pred_check
      _
    $region55: #{joint_decoder_forward.1} parent=1 // pred_check_branch
      %109 = sbr.rel (0) target = $region57
    $region56: #{joint_decoder_forward.1} parent=1 // pred_region
      %110 = dma.done [#allocation3], 1024
    $region57: #{joint_decoder_forward.1} parent=1 // pred_fallthru
      _
    // Predicated region
    $region58: #{joint_decoder_forward.1} parent=1 // pred_check
      _
    $region59: #{joint_decoder_forward.1} parent=1 // pred_check_branch
      %112 = sbr.rel (0) target = $region61
    $region60: #{joint_decoder_forward.1} parent=1 // pred_region
      %113 = dma.done [#allocation5], 16384
    $region61: #{joint_decoder_forward.1} parent=1 // pred_fallthru
      _
    // Predicated region
    $region62: #{joint_decoder_forward.1} parent=1 // pred_check
      _
    $region63: #{joint_decoder_forward.1} parent=1 // pred_check_branch
      %115 = sbr.rel (0) target = $region65
    $region64: #{joint_decoder_forward.1} parent=1 // pred_region
      %116 = dma.done [#allocation5], 16384
    $region65: #{joint_decoder_forward.1} parent=1 // pred_fallthru
      _
    // Predicated region
    $region66: #{joint_decoder_forward.1} parent=1 // pred_check
      _
    $region67: #{joint_decoder_forward.1} parent=1 // pred_check_branch
      %118 = sbr.rel (0) target = $region69
    $region68: #{joint_decoder_forward.1} parent=1 // pred_region
      %119 = dma.done [#allocation8], 16384
    $region69: #{joint_decoder_forward.1} parent=1 // pred_fallthru
      _
    // Predicated region
    $region70: #{joint_decoder_forward.1} parent=1 // pred_check
      _
    $region71: #{joint_decoder_forward.1} parent=1 // pred_check_branch
      %121 = sbr.rel (0) target = $region73
    $region72: #{joint_decoder_forward.1} parent=1 // pred_region
      %122 = dma.done [#allocation8], 16384
    $region73: #{joint_decoder_forward.1} parent=1 // pred_fallthru
      _
    // Predicated region
    $region74: #{joint_decoder_forward.1} parent=1 // pred_check
      _
    $region75: #{joint_decoder_forward.1} parent=1 // pred_check_branch
      %124 = sbr.rel (0) target = $region77
    $region76: #{joint_decoder_forward.1} parent=1 // pred_region
      %125 = dma.done [#allocation11], 4096
    $region77: #{joint_decoder_forward.1} parent=1 // pred_fallthru
      _
    %v127 = vld [vmem:[%s0] sm:$0x1]
    %v128 = vld [vmem:[#allocation2] sm:$0xff]
    %v129 = vld [vmem:[#allocation2 + $0x8] sm:$0xff]
    %v130 = vld [vmem:[#allocation2 + $0x10] sm:$0xff]
    %v131 = vld [vmem:[#allocation2 + $0x18] sm:$0xff]
    %v132 = vld [vmem:[#allocation2 + $0x20] sm:$0xff]
    %v133 = vld [vmem:[#allocation2 + $0x28] sm:$0xff]
    %v134 = vld [vmem:[#allocation2 + $0x30] sm:$0xff]
    %v135 = vld [vmem:[#allocation2 + $0x38] sm:$0xff]
    %v136 = vld [vmem:[%s2] sm:$0xf]
    %v137 = vunpack.c.l.bf16 %v136
    %v139 = vlaneseq
    %v140 = vshrl.u32 %v139, 7
    %v141 = vsub.s32 0, %v140
    %v142 = vrot.slane %v137, %v141
    %v143 = vlaneseq
    %v144 = vshrl.u32 %v143, 7
    %v145 = vsub.s32 2, %v144
    %v146 = vrot.slane %v137, %v145
    %v147 = vlaneseq
    %v148 = vshrl.u32 %v147, 7
    %v149 = vsub.s32 4, %v148
    %v150 = vrot.slane %v137, %v149
    %v151 = vlaneseq
    %v152 = vshrl.u32 %v151, 7
    %v153 = vsub.s32 6, %v152
    %v154 = vrot.slane %v137, %v153
    %v159 = vlaneseq
    %v160 = vshrl.u32 %v159, 7
    %v161 = vsub.s32 0, %v160
    %v162 = vrot.slane %v142, %v161
    %v163 = vlaneseq
    %v164 = vshrl.u32 %v163, 7
    %v165 = vsub.s32 0, %v164
    %v166 = vrot.slane %v146, %v165
    %v167 = vlaneseq
    %v168 = vshrl.u32 %v167, 7
    %v169 = vsub.s32 0, %v168
    %v170 = vrot.slane %v150, %v169
    %v171 = vlaneseq
    %v172 = vshrl.u32 %v171, 7
    %v173 = vsub.s32 0, %v172
    %v174 = vrot.slane %v154, %v173
    %v183 = vunpack.c.l.b16 %v128
    %v184 = vunpack.c.h.b16 %v128
    %v185 = vunpack.c.l.b16 %v129
    %v186 = vunpack.c.h.b16 %v129
    %v187 = vunpack.c.l.b16 %v130
    %v188 = vunpack.c.h.b16 %v130
    %v189 = vunpack.c.l.b16 %v131
    %v190 = vunpack.c.h.b16 %v131
    %v191 = vunpack.c.l.b16 %v132
    %v192 = vunpack.c.h.b16 %v132
    %v193 = vunpack.c.l.b16 %v133
    %v194 = vunpack.c.h.b16 %v133
    %v195 = vunpack.c.l.b16 %v134
    %v196 = vunpack.c.h.b16 %v134
    %v197 = vunpack.c.l.b16 %v135
    %v198 = vunpack.c.h.b16 %v135
    %v199 = vpack.c.b16 %v187, %v183
    %v200 = vpack.c.b16 %v188, %v184
    %v201 = vpack.c.b16 %v189, %v185
    %v202 = vpack.c.b16 %v190, %v186
    %v203 = vpack.c.b16 %v195, %v191
    %v204 = vpack.c.b16 %v196, %v192
    %v205 = vpack.c.b16 %v197, %v193
    %v206 = vpack.c.b16 %v198, %v194
    %vm215 = vcmask 261120
    %v217 = vsel %vm215, %v127, 0
    %219 = vmatprep.subr.bf16.mxu0 0
    %220 = vmatpush1.bf16.msra.mxu0 0
    %221 = vmatprep.subr.bf16.mxu0 0
    %222 = vmatpush1.bf16.msra.mxu0 0
    %223 = vmatprep.subr.bf16.mxu0 0
    %224 = vmatpush1.bf16.msra.mxu0 0
    %225 = vmatprep.subr.bf16.mxu0 0
    %226 = vmatpush1.bf16.msra.mxu0 0
    %227 = vmatprep.subr.bf16.mxu0 0
    %228 = vmatpush1.bf16.msra.mxu0 0
    %229 = vmatprep.subr.bf16.mxu0 0
    %230 = vmatpush1.bf16.msra.mxu0 0
    %231 = vmatprep.subr.bf16.mxu0 %v204
    %232 = vmatpush1.bf16.msra.mxu0 %v203
    %233 = vmatprep.subr.bf16.mxu0 %v200
    %234 = vmatpush1.bf16.msra.mxu0 %v199
    %235 = vmatprep.subr.bf16.mxu0 0
    %236 = vmatpush2.bf16.msra.mxu0 0
    %237 = vmatprep.subr.bf16.mxu0 0
    %238 = vmatpush2.bf16.msra.mxu0 0
    %239 = vmatprep.subr.bf16.mxu0 0
    %240 = vmatpush2.bf16.msra.mxu0 0
    %241 = vmatprep.subr.bf16.mxu0 0
    %242 = vmatpush2.bf16.msra.mxu0 0
    %243 = vmatprep.subr.bf16.mxu0 0
    %244 = vmatpush2.bf16.msra.mxu0 0
    %245 = vmatprep.subr.bf16.mxu0 0
    %246 = vmatpush2.bf16.msra.mxu0 0
    %247 = vmatprep.subr.bf16.mxu0 0
    %248 = vmatpush2.bf16.msra.mxu0 0
    %249 = vmatprep.subr.bf16.mxu0 0
    %250 = vmatpush2.bf16.msra.mxu0 0
    %251 = vmatprep.mubr.bf16.mxu0 0
    %252 = vmatmul.mubr.bf16.gmra.mxu0 %v217
    %v253 = vpop.f32.mrf.mxu0
    %v254 = vadd.f32 %v162, %v253
    %v255 = vpop.f32.mrf.mxu0
    %v256 = vadd.f32 %v166, %v255
    %v257 = vpop.f32.mrf.mxu0
    %v258 = vpop.f32.mrf.mxu0
    %259 = vdwg.mxu0
    %260 = vmatprep.subr.bf16.mxu0 0
    %261 = vmatpush1.bf16.msra.mxu0 0
    %262 = vmatprep.subr.bf16.mxu0 0
    %263 = vmatpush1.bf16.msra.mxu0 0
    %264 = vmatprep.subr.bf16.mxu0 0
    %265 = vmatpush1.bf16.msra.mxu0 0
    %266 = vmatprep.subr.bf16.mxu0 0
    %267 = vmatpush1.bf16.msra.mxu0 0
    %268 = vmatprep.subr.bf16.mxu0 0
    %269 = vmatpush1.bf16.msra.mxu0 0
    %270 = vmatprep.subr.bf16.mxu0 0
    %271 = vmatpush1.bf16.msra.mxu0 0
    %272 = vmatprep.subr.bf16.mxu0 %v206
    %273 = vmatpush1.bf16.msra.mxu0 %v205
    %274 = vmatprep.subr.bf16.mxu0 %v202
    %275 = vmatpush1.bf16.msra.mxu0 %v201
    %276 = vmatprep.subr.bf16.mxu0 0
    %277 = vmatpush2.bf16.msra.mxu0 0
    %278 = vmatprep.subr.bf16.mxu0 0
    %279 = vmatpush2.bf16.msra.mxu0 0
    %280 = vmatprep.subr.bf16.mxu0 0
    %281 = vmatpush2.bf16.msra.mxu0 0
    %282 = vmatprep.subr.bf16.mxu0 0
    %283 = vmatpush2.bf16.msra.mxu0 0
    %284 = vmatprep.subr.bf16.mxu0 0
    %285 = vmatpush2.bf16.msra.mxu0 0
    %286 = vmatprep.subr.bf16.mxu0 0
    %287 = vmatpush2.bf16.msra.mxu0 0
    %288 = vmatprep.subr.bf16.mxu0 0
    %289 = vmatpush2.bf16.msra.mxu0 0
    %290 = vmatprep.subr.bf16.mxu0 0
    %291 = vmatpush2.bf16.msra.mxu0 0
    %292 = vmatprep.mubr.bf16.mxu0 0
    %293 = vmatmul.mubr.bf16.gmra.mxu0 %v217
    %v294 = vpop.f32.mrf.mxu0
    %v295 = vadd.f32 %v170, %v294
    %v296 = vpop.f32.mrf.mxu0
    %v297 = vadd.f32 %v174, %v296
    %v298 = vpop.f32.mrf.mxu0
    %v299 = vpop.f32.mrf.mxu0
    %300 = vdwg.mxu0
    %v301 = vmax.f32 %v254, 0.0
    %v302 = vmax.f32 %v256, 0.0
    %v303 = vmax.f32 %v295, 0.0
    %v304 = vmax.f32 %v297, 0.0
    %v305 = vpack.c.bf16 %v301, %v301
    %v306 = vpack.c.bf16 %v302, %v302
    %v307 = vpack.c.bf16 %v303, %v303
    %v308 = vpack.c.bf16 %v304, %v304
    %v309 = vld [vmem:[#allocation4] sm:$0xff]
    %v310 = vld [vmem:[#allocation4 + $0x8] sm:$0xff]
    %v311 = vld [vmem:[#allocation4 + $0x10] sm:$0xff]
    %v312 = vld [vmem:[#allocation4 + $0x18] sm:$0xff]
    %v313 = vld [vmem:[#allocation4 + $0x20] sm:$0xff]
    %v314 = vld [vmem:[#allocation4 + $0x28] sm:$0xff]
    %v315 = vld [vmem:[#allocation4 + $0x30] sm:$0xff]
    %v316 = vld [vmem:[#allocation4 + $0x38] sm:$0xff]
    %v317 = vld [vmem:[#allocation4 + $0x40] sm:$0xff]
    %v318 = vld [vmem:[#allocation4 + $0x48] sm:$0xff]
    %v319 = vld [vmem:[#allocation4 + $0x50] sm:$0xff]
    %v320 = vld [vmem:[#allocation4 + $0x58] sm:$0xff]
    %v321 = vld [vmem:[#allocation4 + $0x60] sm:$0xff]
    %v322 = vld [vmem:[#allocation4 + $0x68] sm:$0xff]
    %v323 = vld [vmem:[#allocation4 + $0x70] sm:$0xff]
    %v324 = vld [vmem:[#allocation4 + $0x78] sm:$0xff]
    %v325 = vld [vmem:[#allocation4 + $0x80] sm:$0xff]
    %v326 = vld [vmem:[#allocation4 + $0x88] sm:$0xff]
    %v327 = vld [vmem:[#allocation4 + $0x90] sm:$0xff]
    %v328 = vld [vmem:[#allocation4 + $0x98] sm:$0xff]
    %v329 = vld [vmem:[#allocation4 + $0xa0] sm:$0xff]
    %v330 = vld [vmem:[#allocation4 + $0xa8] sm:$0xff]
    %v331 = vld [vmem:[#allocation4 + $0xb0] sm:$0xff]
    %v332 = vld [vmem:[#allocation4 + $0xb8] sm:$0xff]
    %v333 = vld [vmem:[#allocation4 + $0xc0] sm:$0xff]
    %v334 = vld [vmem:[#allocation4 + $0xc8] sm:$0xff]
    %v335 = vld [vmem:[#allocation4 + $0xd0] sm:$0xff]
    %v336 = vld [vmem:[#allocation4 + $0xd8] sm:$0xff]
    %v337 = vld [vmem:[#allocation4 + $0xe0] sm:$0xff]
    %v338 = vld [vmem:[#allocation4 + $0xe8] sm:$0xff]
    %v339 = vld [vmem:[#allocation4 + $0xf0] sm:$0xff]
    %v340 = vld [vmem:[#allocation4 + $0xf8] sm:$0xff]
    %v341 = vld [vmem:[#allocation4 + $0x100] sm:$0xff]
    %v342 = vld [vmem:[#allocation4 + $0x108] sm:$0xff]
    %v343 = vld [vmem:[#allocation4 + $0x110] sm:$0xff]
    %v344 = vld [vmem:[#allocation4 + $0x118] sm:$0xff]
    %v345 = vld [vmem:[#allocation4 + $0x120] sm:$0xff]
    %v346 = vld [vmem:[#allocation4 + $0x128] sm:$0xff]
    %v347 = vld [vmem:[#allocation4 + $0x130] sm:$0xff]
    %v348 = vld [vmem:[#allocation4 + $0x138] sm:$0xff]
    %v349 = vld [vmem:[#allocation4 + $0x140] sm:$0xff]
    %v350 = vld [vmem:[#allocation4 + $0x148] sm:$0xff]
    %v351 = vld [vmem:[#allocation4 + $0x150] sm:$0xff]
    %v352 = vld [vmem:[#allocation4 + $0x158] sm:$0xff]
    %v353 = vld [vmem:[#allocation4 + $0x160] sm:$0xff]
    %v354 = vld [vmem:[#allocation4 + $0x168] sm:$0xff]
    %v355 = vld [vmem:[#allocation4 + $0x170] sm:$0xff]
    %v356 = vld [vmem:[#allocation4 + $0x178] sm:$0xff]
    %v357 = vld [vmem:[#allocation4 + $0x180] sm:$0xff]
    %v358 = vld [vmem:[#allocation4 + $0x188] sm:$0xff]
    %v359 = vld [vmem:[#allocation4 + $0x190] sm:$0xff]
    %v360 = vld [vmem:[#allocation4 + $0x198] sm:$0xff]
    %v361 = vld [vmem:[#allocation4 + $0x1a0] sm:$0xff]
    %v362 = vld [vmem:[#allocation4 + $0x1a8] sm:$0xff]
    %v363 = vld [vmem:[#allocation4 + $0x1b0] sm:$0xff]
    %v364 = vld [vmem:[#allocation4 + $0x1b8] sm:$0xff]
    %v365 = vld [vmem:[#allocation4 + $0x1c0] sm:$0xff]
    %v366 = vld [vmem:[#allocation4 + $0x1c8] sm:$0xff]
    %v367 = vld [vmem:[#allocation4 + $0x1d0] sm:$0xff]
    %v368 = vld [vmem:[#allocation4 + $0x1d8] sm:$0xff]
    %v369 = vld [vmem:[#allocation4 + $0x1e0] sm:$0xff]
    %v370 = vld [vmem:[#allocation4 + $0x1e8] sm:$0xff]
    %v371 = vld [vmem:[#allocation4 + $0x1f0] sm:$0xff]
    %v372 = vld [vmem:[#allocation4 + $0x1f8] sm:$0xff]
    %v373 = vld [vmem:[#allocation4 + $0x200] sm:$0xff]
    %v374 = vld [vmem:[#allocation4 + $0x208] sm:$0xff]
    %v375 = vld [vmem:[#allocation4 + $0x210] sm:$0xff]
    %v376 = vld [vmem:[#allocation4 + $0x218] sm:$0xff]
    %v377 = vld [vmem:[#allocation4 + $0x220] sm:$0xff]
    %v378 = vld [vmem:[#allocation4 + $0x228] sm:$0xff]
    %v379 = vld [vmem:[#allocation4 + $0x230] sm:$0xff]
    %v380 = vld [vmem:[#allocation4 + $0x238] sm:$0xff]
    %v381 = vld [vmem:[#allocation4 + $0x240] sm:$0xff]
    %v382 = vld [vmem:[#allocation4 + $0x248] sm:$0xff]
    %v383 = vld [vmem:[#allocation4 + $0x250] sm:$0xff]
    %v384 = vld [vmem:[#allocation4 + $0x258] sm:$0xff]
    %v385 = vld [vmem:[#allocation4 + $0x260] sm:$0xff]
    %v386 = vld [vmem:[#allocation4 + $0x268] sm:$0xff]
    %v387 = vld [vmem:[#allocation4 + $0x270] sm:$0xff]
    %v388 = vld [vmem:[#allocation4 + $0x278] sm:$0xff]
    %v389 = vld [vmem:[#allocation4 + $0x280] sm:$0xff]
    %v390 = vld [vmem:[#allocation4 + $0x288] sm:$0xff]
    %v391 = vld [vmem:[#allocation4 + $0x290] sm:$0xff]
    %v392 = vld [vmem:[#allocation4 + $0x298] sm:$0xff]
    %v393 = vld [vmem:[#allocation4 + $0x2a0] sm:$0xff]
    %v394 = vld [vmem:[#allocation4 + $0x2a8] sm:$0xff]
    %v395 = vld [vmem:[#allocation4 + $0x2b0] sm:$0xff]
    %v396 = vld [vmem:[#allocation4 + $0x2b8] sm:$0xff]
    %v397 = vld [vmem:[#allocation4 + $0x2c0] sm:$0xff]
    %v398 = vld [vmem:[#allocation4 + $0x2c8] sm:$0xff]
    %v399 = vld [vmem:[#allocation4 + $0x2d0] sm:$0xff]
    %v400 = vld [vmem:[#allocation4 + $0x2d8] sm:$0xff]
    %v401 = vld [vmem:[#allocation4 + $0x2e0] sm:$0xff]
    %v402 = vld [vmem:[#allocation4 + $0x2e8] sm:$0xff]
    %v403 = vld [vmem:[#allocation4 + $0x2f0] sm:$0xff]
    %v404 = vld [vmem:[#allocation4 + $0x2f8] sm:$0xff]
    %v405 = vld [vmem:[#allocation4 + $0x300] sm:$0xff]
    %v406 = vld [vmem:[#allocation4 + $0x308] sm:$0xff]
    %v407 = vld [vmem:[#allocation4 + $0x310] sm:$0xff]
    %v408 = vld [vmem:[#allocation4 + $0x318] sm:$0xff]
    %v409 = vld [vmem:[#allocation4 + $0x320] sm:$0xff]
    %v410 = vld [vmem:[#allocation4 + $0x328] sm:$0xff]
    %v411 = vld [vmem:[#allocation4 + $0x330] sm:$0xff]
    %v412 = vld [vmem:[#allocation4 + $0x338] sm:$0xff]
    %v413 = vld [vmem:[#allocation4 + $0x340] sm:$0xff]
    %v414 = vld [vmem:[#allocation4 + $0x348] sm:$0xff]
    %v415 = vld [vmem:[#allocation4 + $0x350] sm:$0xff]
    %v416 = vld [vmem:[#allocation4 + $0x358] sm:$0xff]
    %v417 = vld [vmem:[#allocation4 + $0x360] sm:$0xff]
    %v418 = vld [vmem:[#allocation4 + $0x368] sm:$0xff]
    %v419 = vld [vmem:[#allocation4 + $0x370] sm:$0xff]
    %v420 = vld [vmem:[#allocation4 + $0x378] sm:$0xff]
    %v421 = vld [vmem:[#allocation4 + $0x380] sm:$0xff]
    %v422 = vld [vmem:[#allocation4 + $0x388] sm:$0xff]
    %v423 = vld [vmem:[#allocation4 + $0x390] sm:$0xff]
    %v424 = vld [vmem:[#allocation4 + $0x398] sm:$0xff]
    %v425 = vld [vmem:[#allocation4 + $0x3a0] sm:$0xff]
    %v426 = vld [vmem:[#allocation4 + $0x3a8] sm:$0xff]
    %v427 = vld [vmem:[#allocation4 + $0x3b0] sm:$0xff]
    %v428 = vld [vmem:[#allocation4 + $0x3b8] sm:$0xff]
    %v429 = vld [vmem:[#allocation4 + $0x3c0] sm:$0xff]
    %v430 = vld [vmem:[#allocation4 + $0x3c8] sm:$0xff]
    %v431 = vld [vmem:[#allocation4 + $0x3d0] sm:$0xff]
    %v432 = vld [vmem:[#allocation4 + $0x3d8] sm:$0xff]
    %v433 = vld [vmem:[#allocation4 + $0x3e0] sm:$0xff]
    %v434 = vld [vmem:[#allocation4 + $0x3e8] sm:$0xff]
    %v435 = vld [vmem:[#allocation4 + $0x3f0] sm:$0xff]
    %v436 = vld [vmem:[#allocation4 + $0x3f8] sm:$0xff]
    %v437 = vld [vmem:[%s4] sm:$0xf]
    %v438 = vunpack.c.l.bf16 %v437
    %v440 = vlaneseq
    %v441 = vshrl.u32 %v440, 7
    %v442 = vsub.s32 0, %v441
    %v443 = vrot.slane %v438, %v442
    %v444 = vlaneseq
    %v445 = vshrl.u32 %v444, 7
    %v446 = vsub.s32 2, %v445
    %v447 = vrot.slane %v438, %v446
    %v448 = vlaneseq
    %v449 = vshrl.u32 %v448, 7
    %v450 = vsub.s32 4, %v449
    %v451 = vrot.slane %v438, %v450
    %v452 = vlaneseq
    %v453 = vshrl.u32 %v452, 7
    %v454 = vsub.s32 6, %v453
    %v455 = vrot.slane %v438, %v454
    %v460 = vlaneseq
    %v461 = vshrl.u32 %v460, 7
    %v462 = vsub.s32 0, %v461
    %v463 = vrot.slane %v443, %v462
    %v464 = vlaneseq
    %v465 = vshrl.u32 %v464, 7
    %v466 = vsub.s32 0, %v465
    %v467 = vrot.slane %v447, %v466
    %v468 = vlaneseq
    %v469 = vshrl.u32 %v468, 7
    %v470 = vsub.s32 0, %v469
    %v471 = vrot.slane %v451, %v470
    %v472 = vlaneseq
    %v473 = vshrl.u32 %v472, 7
    %v474 = vsub.s32 0, %v473
    %v475 = vrot.slane %v455, %v474
    %v604 = vunpack.c.l.b16 %v309
    %v605 = vunpack.c.h.b16 %v309
    %v606 = vunpack.c.l.b16 %v310
    %v607 = vunpack.c.h.b16 %v310
    %v608 = vunpack.c.l.b16 %v311
    %v609 = vunpack.c.h.b16 %v311
    %v610 = vunpack.c.l.b16 %v312
    %v611 = vunpack.c.h.b16 %v312
    %v612 = vunpack.c.l.b16 %v313
    %v613 = vunpack.c.h.b16 %v313
    %v614 = vunpack.c.l.b16 %v314
    %v615 = vunpack.c.h.b16 %v314
    %v616 = vunpack.c.l.b16 %v315
    %v617 = vunpack.c.h.b16 %v315
    %v618 = vunpack.c.l.b16 %v316
    %v619 = vunpack.c.h.b16 %v316
    %v620 = vunpack.c.l.b16 %v317
    %v621 = vunpack.c.h.b16 %v317
    %v622 = vunpack.c.l.b16 %v318
    %v623 = vunpack.c.h.b16 %v318
    %v624 = vunpack.c.l.b16 %v319
    %v625 = vunpack.c.h.b16 %v319
    %v626 = vunpack.c.l.b16 %v320
    %v627 = vunpack.c.h.b16 %v320
    %v628 = vunpack.c.l.b16 %v321
    %v629 = vunpack.c.h.b16 %v321
    %v630 = vunpack.c.l.b16 %v322
    %v631 = vunpack.c.h.b16 %v322
    %v632 = vunpack.c.l.b16 %v323
    %v633 = vunpack.c.h.b16 %v323
    %v634 = vunpack.c.l.b16 %v324
    %v635 = vunpack.c.h.b16 %v324
    %v636 = vunpack.c.l.b16 %v325
    %v637 = vunpack.c.h.b16 %v325
    %v638 = vunpack.c.l.b16 %v326
    %v639 = vunpack.c.h.b16 %v326
    %v640 = vunpack.c.l.b16 %v327
    %v641 = vunpack.c.h.b16 %v327
    %v642 = vunpack.c.l.b16 %v328
    %v643 = vunpack.c.h.b16 %v328
    %v644 = vunpack.c.l.b16 %v329
    %v645 = vunpack.c.h.b16 %v329
    %v646 = vunpack.c.l.b16 %v330
    %v647 = vunpack.c.h.b16 %v330
    %v648 = vunpack.c.l.b16 %v331
    %v649 = vunpack.c.h.b16 %v331
    %v650 = vunpack.c.l.b16 %v332
    %v651 = vunpack.c.h.b16 %v332
    %v652 = vunpack.c.l.b16 %v333
    %v653 = vunpack.c.h.b16 %v333
    %v654 = vunpack.c.l.b16 %v334
    %v655 = vunpack.c.h.b16 %v334
    %v656 = vunpack.c.l.b16 %v335
    %v657 = vunpack.c.h.b16 %v335
    %v658 = vunpack.c.l.b16 %v336
    %v659 = vunpack.c.h.b16 %v336
    %v660 = vunpack.c.l.b16 %v337
    %v661 = vunpack.c.h.b16 %v337
    %v662 = vunpack.c.l.b16 %v338
    %v663 = vunpack.c.h.b16 %v338
    %v664 = vunpack.c.l.b16 %v339
    %v665 = vunpack.c.h.b16 %v339
    %v666 = vunpack.c.l.b16 %v340
    %v667 = vunpack.c.h.b16 %v340
    %v668 = vunpack.c.l.b16 %v341
    %v669 = vunpack.c.h.b16 %v341
    %v670 = vunpack.c.l.b16 %v342
    %v671 = vunpack.c.h.b16 %v342
    %v672 = vunpack.c.l.b16 %v343
    %v673 = vunpack.c.h.b16 %v343
    %v674 = vunpack.c.l.b16 %v344
    %v675 = vunpack.c.h.b16 %v344
    %v676 = vunpack.c.l.b16 %v345
    %v677 = vunpack.c.h.b16 %v345
    %v678 = vunpack.c.l.b16 %v346
    %v679 = vunpack.c.h.b16 %v346
    %v680 = vunpack.c.l.b16 %v347
    %v681 = vunpack.c.h.b16 %v347
    %v682 = vunpack.c.l.b16 %v348
    %v683 = vunpack.c.h.b16 %v348
    %v684 = vunpack.c.l.b16 %v349
    %v685 = vunpack.c.h.b16 %v349
    %v686 = vunpack.c.l.b16 %v350
    %v687 = vunpack.c.h.b16 %v350
    %v688 = vunpack.c.l.b16 %v351
    %v689 = vunpack.c.h.b16 %v351
    %v690 = vunpack.c.l.b16 %v352
    %v691 = vunpack.c.h.b16 %v352
    %v692 = vunpack.c.l.b16 %v353
    %v693 = vunpack.c.h.b16 %v353
    %v694 = vunpack.c.l.b16 %v354
    %v695 = vunpack.c.h.b16 %v354
    %v696 = vunpack.c.l.b16 %v355
    %v697 = vunpack.c.h.b16 %v355
    %v698 = vunpack.c.l.b16 %v356
    %v699 = vunpack.c.h.b16 %v356
    %v700 = vunpack.c.l.b16 %v357
    %v701 = vunpack.c.h.b16 %v357
    %v702 = vunpack.c.l.b16 %v358
    %v703 = vunpack.c.h.b16 %v358
    %v704 = vunpack.c.l.b16 %v359
    %v705 = vunpack.c.h.b16 %v359
    %v706 = vunpack.c.l.b16 %v360
    %v707 = vunpack.c.h.b16 %v360
    %v708 = vunpack.c.l.b16 %v361
    %v709 = vunpack.c.h.b16 %v361
    %v710 = vunpack.c.l.b16 %v362
    %v711 = vunpack.c.h.b16 %v362
    %v712 = vunpack.c.l.b16 %v363
    %v713 = vunpack.c.h.b16 %v363
    %v714 = vunpack.c.l.b16 %v364
    %v715 = vunpack.c.h.b16 %v364
    %v716 = vunpack.c.l.b16 %v365
    %v717 = vunpack.c.h.b16 %v365
    %v718 = vunpack.c.l.b16 %v366
    %v719 = vunpack.c.h.b16 %v366
    %v720 = vunpack.c.l.b16 %v367
    %v721 = vunpack.c.h.b16 %v367
    %v722 = vunpack.c.l.b16 %v368
    %v723 = vunpack.c.h.b16 %v368
    %v724 = vunpack.c.l.b16 %v369
    %v725 = vunpack.c.h.b16 %v369
    %v726 = vunpack.c.l.b16 %v370
    %v727 = vunpack.c.h.b16 %v370
    %v728 = vunpack.c.l.b16 %v371
    %v729 = vunpack.c.h.b16 %v371
    %v730 = vunpack.c.l.b16 %v372
    %v731 = vunpack.c.h.b16 %v372
    %v732 = vunpack.c.l.b16 %v373
    %v733 = vunpack.c.h.b16 %v373
    %v734 = vunpack.c.l.b16 %v374
    %v735 = vunpack.c.h.b16 %v374
    %v736 = vunpack.c.l.b16 %v375
    %v737 = vunpack.c.h.b16 %v375
    %v738 = vunpack.c.l.b16 %v376
    %v739 = vunpack.c.h.b16 %v376
    %v740 = vunpack.c.l.b16 %v377
    %v741 = vunpack.c.h.b16 %v377
    %v742 = vunpack.c.l.b16 %v378
    %v743 = vunpack.c.h.b16 %v378
    %v744 = vunpack.c.l.b16 %v379
    %v745 = vunpack.c.h.b16 %v379
    %v746 = vunpack.c.l.b16 %v380
    %v747 = vunpack.c.h.b16 %v380
    %v748 = vunpack.c.l.b16 %v381
    %v749 = vunpack.c.h.b16 %v381
    %v750 = vunpack.c.l.b16 %v382
    %v751 = vunpack.c.h.b16 %v382
    %v752 = vunpack.c.l.b16 %v383
    %v753 = vunpack.c.h.b16 %v383
    %v754 = vunpack.c.l.b16 %v384
    %v755 = vunpack.c.h.b16 %v384
    %v756 = vunpack.c.l.b16 %v385
    %v757 = vunpack.c.h.b16 %v385
    %v758 = vunpack.c.l.b16 %v386
    %v759 = vunpack.c.h.b16 %v386
    %v760 = vunpack.c.l.b16 %v387
    %v761 = vunpack.c.h.b16 %v387
    %v762 = vunpack.c.l.b16 %v388
    %v763 = vunpack.c.h.b16 %v388
    %v764 = vunpack.c.l.b16 %v389
    %v765 = vunpack.c.h.b16 %v389
    %v766 = vunpack.c.l.b16 %v390
    %v767 = vunpack.c.h.b16 %v390
    %v768 = vunpack.c.l.b16 %v391
    %v769 = vunpack.c.h.b16 %v391
    %v770 = vunpack.c.l.b16 %v392
    %v771 = vunpack.c.h.b16 %v392
    %v772 = vunpack.c.l.b16 %v393
    %v773 = vunpack.c.h.b16 %v393
    %v774 = vunpack.c.l.b16 %v394
    %v775 = vunpack.c.h.b16 %v394
    %v776 = vunpack.c.l.b16 %v395
    %v777 = vunpack.c.h.b16 %v395
    %v778 = vunpack.c.l.b16 %v396
    %v779 = vunpack.c.h.b16 %v396
    %v780 = vunpack.c.l.b16 %v397
    %v781 = vunpack.c.h.b16 %v397
    %v782 = vunpack.c.l.b16 %v398
    %v783 = vunpack.c.h.b16 %v398
    %v784 = vunpack.c.l.b16 %v399
    %v785 = vunpack.c.h.b16 %v399
    %v786 = vunpack.c.l.b16 %v400
    %v787 = vunpack.c.h.b16 %v400
    %v788 = vunpack.c.l.b16 %v401
    %v789 = vunpack.c.h.b16 %v401
    %v790 = vunpack.c.l.b16 %v402
    %v791 = vunpack.c.h.b16 %v402
    %v792 = vunpack.c.l.b16 %v403
    %v793 = vunpack.c.h.b16 %v403
    %v794 = vunpack.c.l.b16 %v404
    %v795 = vunpack.c.h.b16 %v404
    %v796 = vunpack.c.l.b16 %v405
    %v797 = vunpack.c.h.b16 %v405
    %v798 = vunpack.c.l.b16 %v406
    %v799 = vunpack.c.h.b16 %v406
    %v800 = vunpack.c.l.b16 %v407
    %v801 = vunpack.c.h.b16 %v407
    %v802 = vunpack.c.l.b16 %v408
    %v803 = vunpack.c.h.b16 %v408
    %v804 = vunpack.c.l.b16 %v409
    %v805 = vunpack.c.h.b16 %v409
    %v806 = vunpack.c.l.b16 %v410
    %v807 = vunpack.c.h.b16 %v410
    %v808 = vunpack.c.l.b16 %v411
    %v809 = vunpack.c.h.b16 %v411
    %v810 = vunpack.c.l.b16 %v412
    %v811 = vunpack.c.h.b16 %v412
    %v812 = vunpack.c.l.b16 %v413
    %v813 = vunpack.c.h.b16 %v413
    %v814 = vunpack.c.l.b16 %v414
    %v815 = vunpack.c.h.b16 %v414
    %v816 = vunpack.c.l.b16 %v415
    %v817 = vunpack.c.h.b16 %v415
    %v818 = vunpack.c.l.b16 %v416
    %v819 = vunpack.c.h.b16 %v416
    %v820 = vunpack.c.l.b16 %v417
    %v821 = vunpack.c.h.b16 %v417
    %v822 = vunpack.c.l.b16 %v418
    %v823 = vunpack.c.h.b16 %v418
    %v824 = vunpack.c.l.b16 %v419
    %v825 = vunpack.c.h.b16 %v419
    %v826 = vunpack.c.l.b16 %v420
    %v827 = vunpack.c.h.b16 %v420
    %v828 = vunpack.c.l.b16 %v421
    %v829 = vunpack.c.h.b16 %v421
    %v830 = vunpack.c.l.b16 %v422
    %v831 = vunpack.c.h.b16 %v422
    %v832 = vunpack.c.l.b16 %v423
    %v833 = vunpack.c.h.b16 %v423
    %v834 = vunpack.c.l.b16 %v424
    %v835 = vunpack.c.h.b16 %v424
    %v836 = vunpack.c.l.b16 %v425
    %v837 = vunpack.c.h.b16 %v425
    %v838 = vunpack.c.l.b16 %v426
    %v839 = vunpack.c.h.b16 %v426
    %v840 = vunpack.c.l.b16 %v427
    %v841 = vunpack.c.h.b16 %v427
    %v842 = vunpack.c.l.b16 %v428
    %v843 = vunpack.c.h.b16 %v428
    %v844 = vunpack.c.l.b16 %v429
    %v845 = vunpack.c.h.b16 %v429
    %v846 = vunpack.c.l.b16 %v430
    %v847 = vunpack.c.h.b16 %v430
    %v848 = vunpack.c.l.b16 %v431
    %v849 = vunpack.c.h.b16 %v431
    %v850 = vunpack.c.l.b16 %v432
    %v851 = vunpack.c.h.b16 %v432
    %v852 = vunpack.c.l.b16 %v433
    %v853 = vunpack.c.h.b16 %v433
    %v854 = vunpack.c.l.b16 %v434
    %v855 = vunpack.c.h.b16 %v434
    %v856 = vunpack.c.l.b16 %v435
    %v857 = vunpack.c.h.b16 %v435
    %v858 = vunpack.c.l.b16 %v436
    %v859 = vunpack.c.h.b16 %v436
    %v860 = vpack.c.b16 %v608, %v604
    %v861 = vpack.c.b16 %v609, %v605
    %v862 = vpack.c.b16 %v610, %v606
    %v863 = vpack.c.b16 %v611, %v607
    %v864 = vpack.c.b16 %v616, %v612
    %v865 = vpack.c.b16 %v617, %v613
    %v866 = vpack.c.b16 %v618, %v614
    %v867 = vpack.c.b16 %v619, %v615
    %v868 = vpack.c.b16 %v624, %v620
    %v869 = vpack.c.b16 %v625, %v621
    %v870 = vpack.c.b16 %v626, %v622
    %v871 = vpack.c.b16 %v627, %v623
    %v872 = vpack.c.b16 %v632, %v628
    %v873 = vpack.c.b16 %v633, %v629
    %v874 = vpack.c.b16 %v634, %v630
    %v875 = vpack.c.b16 %v635, %v631
    %v876 = vpack.c.b16 %v640, %v636
    %v877 = vpack.c.b16 %v641, %v637
    %v878 = vpack.c.b16 %v642, %v638
    %v879 = vpack.c.b16 %v643, %v639
    %v880 = vpack.c.b16 %v648, %v644
    %v881 = vpack.c.b16 %v649, %v645
    %v882 = vpack.c.b16 %v650, %v646
    %v883 = vpack.c.b16 %v651, %v647
    %v884 = vpack.c.b16 %v656, %v652
    %v885 = vpack.c.b16 %v657, %v653
    %v886 = vpack.c.b16 %v658, %v654
    %v887 = vpack.c.b16 %v659, %v655
    %v888 = vpack.c.b16 %v664, %v660
    %v889 = vpack.c.b16 %v665, %v661
    %v890 = vpack.c.b16 %v666, %v662
    %v891 = vpack.c.b16 %v667, %v663
    %v892 = vpack.c.b16 %v672, %v668
    %v893 = vpack.c.b16 %v673, %v669
    %v894 = vpack.c.b16 %v674, %v670
    %v895 = vpack.c.b16 %v675, %v671
    %v896 = vpack.c.b16 %v680, %v676
    %v897 = vpack.c.b16 %v681, %v677
    %v898 = vpack.c.b16 %v682, %v678
    %v899 = vpack.c.b16 %v683, %v679
    %v900 = vpack.c.b16 %v688, %v684
    %v901 = vpack.c.b16 %v689, %v685
    %v902 = vpack.c.b16 %v690, %v686
    %v903 = vpack.c.b16 %v691, %v687
    %v904 = vpack.c.b16 %v696, %v692
    %v905 = vpack.c.b16 %v697, %v693
    %v906 = vpack.c.b16 %v698, %v694
    %v907 = vpack.c.b16 %v699, %v695
    %v908 = vpack.c.b16 %v704, %v700
    %v909 = vpack.c.b16 %v705, %v701
    %v910 = vpack.c.b16 %v706, %v702
    %v911 = vpack.c.b16 %v707, %v703
    %v912 = vpack.c.b16 %v712, %v708
    %v913 = vpack.c.b16 %v713, %v709
    %v914 = vpack.c.b16 %v714, %v710
    %v915 = vpack.c.b16 %v715, %v711
    %v916 = vpack.c.b16 %v720, %v716
    %v917 = vpack.c.b16 %v721, %v717
    %v918 = vpack.c.b16 %v722, %v718
    %v919 = vpack.c.b16 %v723, %v719
    %v920 = vpack.c.b16 %v728, %v724
    %v921 = vpack.c.b16 %v729, %v725
    %v922 = vpack.c.b16 %v730, %v726
    %v923 = vpack.c.b16 %v731, %v727
    %v924 = vpack.c.b16 %v736, %v732
    %v925 = vpack.c.b16 %v737, %v733
    %v926 = vpack.c.b16 %v738, %v734
    %v927 = vpack.c.b16 %v739, %v735
    %v928 = vpack.c.b16 %v744, %v740
    %v929 = vpack.c.b16 %v745, %v741
    %v930 = vpack.c.b16 %v746, %v742
    %v931 = vpack.c.b16 %v747, %v743
    %v932 = vpack.c.b16 %v752, %v748
    %v933 = vpack.c.b16 %v753, %v749
    %v934 = vpack.c.b16 %v754, %v750
    %v935 = vpack.c.b16 %v755, %v751
    %v936 = vpack.c.b16 %v760, %v756
    %v937 = vpack.c.b16 %v761, %v757
    %v938 = vpack.c.b16 %v762, %v758
    %v939 = vpack.c.b16 %v763, %v759
    %v940 = vpack.c.b16 %v768, %v764
    %v941 = vpack.c.b16 %v769, %v765
    %v942 = vpack.c.b16 %v770, %v766
    %v943 = vpack.c.b16 %v771, %v767
    %v944 = vpack.c.b16 %v776, %v772
    %v945 = vpack.c.b16 %v777, %v773
    %v946 = vpack.c.b16 %v778, %v774
    %v947 = vpack.c.b16 %v779, %v775
    %v948 = vpack.c.b16 %v784, %v780
    %v949 = vpack.c.b16 %v785, %v781
    %v950 = vpack.c.b16 %v786, %v782
    %v951 = vpack.c.b16 %v787, %v783
    %v952 = vpack.c.b16 %v792, %v788
    %v953 = vpack.c.b16 %v793, %v789
    %v954 = vpack.c.b16 %v794, %v790
    %v955 = vpack.c.b16 %v795, %v791
    %v956 = vpack.c.b16 %v800, %v796
    %v957 = vpack.c.b16 %v801, %v797
    %v958 = vpack.c.b16 %v802, %v798
    %v959 = vpack.c.b16 %v803, %v799
    %v960 = vpack.c.b16 %v808, %v804
    %v961 = vpack.c.b16 %v809, %v805
    %v962 = vpack.c.b16 %v810, %v806
    %v963 = vpack.c.b16 %v811, %v807
    %v964 = vpack.c.b16 %v816, %v812
    %v965 = vpack.c.b16 %v817, %v813
    %v966 = vpack.c.b16 %v818, %v814
    %v967 = vpack.c.b16 %v819, %v815
    %v968 = vpack.c.b16 %v824, %v820
    %v969 = vpack.c.b16 %v825, %v821
    %v970 = vpack.c.b16 %v826, %v822
    %v971 = vpack.c.b16 %v827, %v823
    %v972 = vpack.c.b16 %v832, %v828
    %v973 = vpack.c.b16 %v833, %v829
    %v974 = vpack.c.b16 %v834, %v830
    %v975 = vpack.c.b16 %v835, %v831
    %v976 = vpack.c.b16 %v840, %v836
    %v977 = vpack.c.b16 %v841, %v837
    %v978 = vpack.c.b16 %v842, %v838
    %v979 = vpack.c.b16 %v843, %v839
    %v980 = vpack.c.b16 %v848, %v844
    %v981 = vpack.c.b16 %v849, %v845
    %v982 = vpack.c.b16 %v850, %v846
    %v983 = vpack.c.b16 %v851, %v847
    %v984 = vpack.c.b16 %v856, %v852
    %v985 = vpack.c.b16 %v857, %v853
    %v986 = vpack.c.b16 %v858, %v854
    %v987 = vpack.c.b16 %v859, %v855
    %1116 = vmatprep.subr.bf16.mxu0 %v889
    %1117 = vmatpush1.bf16.msra.mxu0 %v888
    %1118 = vmatprep.subr.bf16.mxu0 %v885
    %1119 = vmatpush1.bf16.msra.mxu0 %v884
    %1120 = vmatprep.subr.bf16.mxu0 %v881
    %1121 = vmatpush1.bf16.msra.mxu0 %v880
    %1122 = vmatprep.subr.bf16.mxu0 %v877
    %1123 = vmatpush1.bf16.msra.mxu0 %v876
    %1124 = vmatprep.subr.bf16.mxu0 %v873
    %1125 = vmatpush1.bf16.msra.mxu0 %v872
    %1126 = vmatprep.subr.bf16.mxu0 %v869
    %1127 = vmatpush1.bf16.msra.mxu0 %v868
    %1128 = vmatprep.subr.bf16.mxu0 %v865
    %1129 = vmatpush1.bf16.msra.mxu0 %v864
    %1130 = vmatprep.subr.bf16.mxu0 %v861
    %1131 = vmatpush1.bf16.msra.mxu0 %v860
    %1132 = vmatprep.subr.bf16.mxu0 %v921
    %1133 = vmatpush2.bf16.msra.mxu0 %v920
    %1134 = vmatprep.subr.bf16.mxu0 %v917
    %1135 = vmatpush2.bf16.msra.mxu0 %v916
    %1136 = vmatprep.subr.bf16.mxu0 %v913
    %1137 = vmatpush2.bf16.msra.mxu0 %v912
    %1138 = vmatprep.subr.bf16.mxu0 %v909
    %1139 = vmatpush2.bf16.msra.mxu0 %v908
    %1140 = vmatprep.subr.bf16.mxu0 %v905
    %1141 = vmatpush2.bf16.msra.mxu0 %v904
    %1142 = vmatprep.subr.bf16.mxu0 %v901
    %1143 = vmatpush2.bf16.msra.mxu0 %v900
    %1144 = vmatprep.subr.bf16.mxu0 %v897
    %1145 = vmatpush2.bf16.msra.mxu0 %v896
    %1146 = vmatprep.subr.bf16.mxu0 %v893
    %1147 = vmatpush2.bf16.msra.mxu0 %v892
    %1148 = vmatprep.mubr.bf16.mxu0 %v306
    %1149 = vmatmul.mubr.bf16.gmra.mxu0 %v305
    %v1150 = vpop.f32.mrf.mxu0
    %v1151 = vadd.f32 %v463, %v1150
    %v1152 = vpop.f32.mrf.mxu0
    %v1153 = vadd.f32 %v467, %v1152
    %v1154 = vpop.f32.mrf.mxu0
    %v1155 = vpop.f32.mrf.mxu0
    %1156 = vdwg.mxu0
    %1157 = vmatprep.subr.bf16.mxu0 %v953
    %1158 = vmatpush1.bf16.msra.mxu0 %v952
    %1159 = vmatprep.subr.bf16.mxu0 %v949
    %1160 = vmatpush1.bf16.msra.mxu0 %v948
    %1161 = vmatprep.subr.bf16.mxu0 %v945
    %1162 = vmatpush1.bf16.msra.mxu0 %v944
    %1163 = vmatprep.subr.bf16.mxu0 %v941
    %1164 = vmatpush1.bf16.msra.mxu0 %v940
    %1165 = vmatprep.subr.bf16.mxu0 %v937
    %1166 = vmatpush1.bf16.msra.mxu0 %v936
    %1167 = vmatprep.subr.bf16.mxu0 %v933
    %1168 = vmatpush1.bf16.msra.mxu0 %v932
    %1169 = vmatprep.subr.bf16.mxu0 %v929
    %1170 = vmatpush1.bf16.msra.mxu0 %v928
    %1171 = vmatprep.subr.bf16.mxu0 %v925
    %1172 = vmatpush1.bf16.msra.mxu0 %v924
    %1173 = vmatprep.subr.bf16.mxu0 %v985
    %1174 = vmatpush2.bf16.msra.mxu0 %v984
    %1175 = vmatprep.subr.bf16.mxu0 %v981
    %1176 = vmatpush2.bf16.msra.mxu0 %v980
    %1177 = vmatprep.subr.bf16.mxu0 %v977
    %1178 = vmatpush2.bf16.msra.mxu0 %v976
    %1179 = vmatprep.subr.bf16.mxu0 %v973
    %1180 = vmatpush2.bf16.msra.mxu0 %v972
    %1181 = vmatprep.subr.bf16.mxu0 %v969
    %1182 = vmatpush2.bf16.msra.mxu0 %v968
    %1183 = vmatprep.subr.bf16.mxu0 %v965
    %1184 = vmatpush2.bf16.msra.mxu0 %v964
    %1185 = vmatprep.subr.bf16.mxu0 %v961
    %1186 = vmatpush2.bf16.msra.mxu0 %v960
    %1187 = vmatprep.subr.bf16.mxu0 %v957
    %1188 = vmatpush2.bf16.msra.mxu0 %v956
    %1189 = vmatprep.mubr.bf16.mxu0 %v308
    %1190 = vmatmul.mubr.bf16.gmra.mxu0 %v307
    %v1191 = vpop.f32.mrf.mxu0
    %v1192 = vadd.f32 %v1151, %v1191
    %v1193 = vpop.f32.mrf.mxu0
    %v1194 = vadd.f32 %v1153, %v1193
    %v1195 = vpop.f32.mrf.mxu0
    %v1196 = vpop.f32.mrf.mxu0
    %1197 = vdwg.mxu0
    %1198 = vmatprep.subr.bf16.mxu0 %v891
    %1199 = vmatpush1.bf16.msra.mxu0 %v890
    %1200 = vmatprep.subr.bf16.mxu0 %v887
    %1201 = vmatpush1.bf16.msra.mxu0 %v886
    %1202 = vmatprep.subr.bf16.mxu0 %v883
    %1203 = vmatpush1.bf16.msra.mxu0 %v882
    %1204 = vmatprep.subr.bf16.mxu0 %v879
    %1205 = vmatpush1.bf16.msra.mxu0 %v878
    %1206 = vmatprep.subr.bf16.mxu0 %v875
    %1207 = vmatpush1.bf16.msra.mxu0 %v874
    %1208 = vmatprep.subr.bf16.mxu0 %v871
    %1209 = vmatpush1.bf16.msra.mxu0 %v870
    %1210 = vmatprep.subr.bf16.mxu0 %v867
    %1211 = vmatpush1.bf16.msra.mxu0 %v866
    %1212 = vmatprep.subr.bf16.mxu0 %v863
    %1213 = vmatpush1.bf16.msra.mxu0 %v862
    %1214 = vmatprep.subr.bf16.mxu0 %v923
    %1215 = vmatpush2.bf16.msra.mxu0 %v922
    %1216 = vmatprep.subr.bf16.mxu0 %v919
    %1217 = vmatpush2.bf16.msra.mxu0 %v918
    %1218 = vmatprep.subr.bf16.mxu0 %v915
    %1219 = vmatpush2.bf16.msra.mxu0 %v914
    %1220 = vmatprep.subr.bf16.mxu0 %v911
    %1221 = vmatpush2.bf16.msra.mxu0 %v910
    %1222 = vmatprep.subr.bf16.mxu0 %v907
    %1223 = vmatpush2.bf16.msra.mxu0 %v906
    %1224 = vmatprep.subr.bf16.mxu0 %v903
    %1225 = vmatpush2.bf16.msra.mxu0 %v902
    %1226 = vmatprep.subr.bf16.mxu0 %v899
    %1227 = vmatpush2.bf16.msra.mxu0 %v898
    %1228 = vmatprep.subr.bf16.mxu0 %v895
    %1229 = vmatpush2.bf16.msra.mxu0 %v894
    %1230 = vmatprep.mubr.bf16.mxu0 %v306
    %1231 = vmatmul.mubr.bf16.gmra.mxu0 %v305
    %v1232 = vpop.f32.mrf.mxu0
    %v1233 = vadd.f32 %v471, %v1232
    %v1234 = vpop.f32.mrf.mxu0
    %v1235 = vadd.f32 %v475, %v1234
    %v1236 = vpop.f32.mrf.mxu0
    %v1237 = vpop.f32.mrf.mxu0
    %1238 = vdwg.mxu0
    %1239 = vmatprep.subr.bf16.mxu0 %v955
    %1240 = vmatpush1.bf16.msra.mxu0 %v954
    %1241 = vmatprep.subr.bf16.mxu0 %v951
    %1242 = vmatpush1.bf16.msra.mxu0 %v950
    %1243 = vmatprep.subr.bf16.mxu0 %v947
    %1244 = vmatpush1.bf16.msra.mxu0 %v946
    %1245 = vmatprep.subr.bf16.mxu0 %v943
    %1246 = vmatpush1.bf16.msra.mxu0 %v942
    %1247 = vmatprep.subr.bf16.mxu0 %v939
    %1248 = vmatpush1.bf16.msra.mxu0 %v938
    %1249 = vmatprep.subr.bf16.mxu0 %v935
    %1250 = vmatpush1.bf16.msra.mxu0 %v934
    %1251 = vmatprep.subr.bf16.mxu0 %v931
    %1252 = vmatpush1.bf16.msra.mxu0 %v930
    %1253 = vmatprep.subr.bf16.mxu0 %v927
    %1254 = vmatpush1.bf16.msra.mxu0 %v926
    %1255 = vmatprep.subr.bf16.mxu0 %v987
    %1256 = vmatpush2.bf16.msra.mxu0 %v986
    %1257 = vmatprep.subr.bf16.mxu0 %v983
    %1258 = vmatpush2.bf16.msra.mxu0 %v982
    %1259 = vmatprep.subr.bf16.mxu0 %v979
    %1260 = vmatpush2.bf16.msra.mxu0 %v978
    %1261 = vmatprep.subr.bf16.mxu0 %v975
    %1262 = vmatpush2.bf16.msra.mxu0 %v974
    %1263 = vmatprep.subr.bf16.mxu0 %v971
    %1264 = vmatpush2.bf16.msra.mxu0 %v970
    %1265 = vmatprep.subr.bf16.mxu0 %v967
    %1266 = vmatpush2.bf16.msra.mxu0 %v966
    %1267 = vmatprep.subr.bf16.mxu0 %v963
    %1268 = vmatpush2.bf16.msra.mxu0 %v962
    %1269 = vmatprep.subr.bf16.mxu0 %v959
    %1270 = vmatpush2.bf16.msra.mxu0 %v958
    %1271 = vmatprep.mubr.bf16.mxu0 %v308
    %1272 = vmatmul.mubr.bf16.gmra.mxu0 %v307
    %v1273 = vpop.f32.mrf.mxu0
    %v1274 = vadd.f32 %v1233, %v1273
    %v1275 = vpop.f32.mrf.mxu0
    %v1276 = vadd.f32 %v1235, %v1275
    %v1277 = vpop.f32.mrf.mxu0
    %v1278 = vpop.f32.mrf.mxu0
    %1279 = vdwg.mxu0
    %v1280 = vmax.f32 %v1192, 0.0
    %v1281 = vmax.f32 %v1194, 0.0
    %v1282 = vmax.f32 %v1274, 0.0
    %v1283 = vmax.f32 %v1276, 0.0
    %v1284 = vpack.c.bf16 %v1280, %v1280
    %v1285 = vpack.c.bf16 %v1281, %v1281
    %v1286 = vpack.c.bf16 %v1282, %v1282
    %v1287 = vpack.c.bf16 %v1283, %v1283
    %v1288 = vld [vmem:[#allocation6] sm:$0xff]
    %v1289 = vld [vmem:[#allocation6 + $0x8] sm:$0xff]
    %v1290 = vld [vmem:[#allocation6 + $0x10] sm:$0xff]
    %v1291 = vld [vmem:[#allocation6 + $0x18] sm:$0xff]
    %v1292 = vld [vmem:[#allocation6 + $0x20] sm:$0xff]
    %v1293 = vld [vmem:[#allocation6 + $0x28] sm:$0xff]
    %v1294 = vld [vmem:[#allocation6 + $0x30] sm:$0xff]
    %v1295 = vld [vmem:[#allocation6 + $0x38] sm:$0xff]
    %v1296 = vld [vmem:[#allocation6 + $0x40] sm:$0xff]
    %v1297 = vld [vmem:[#allocation6 + $0x48] sm:$0xff]
    %v1298 = vld [vmem:[#allocation6 + $0x50] sm:$0xff]
    %v1299 = vld [vmem:[#allocation6 + $0x58] sm:$0xff]
    %v1300 = vld [vmem:[#allocation6 + $0x60] sm:$0xff]
    %v1301 = vld [vmem:[#allocation6 + $0x68] sm:$0xff]
    %v1302 = vld [vmem:[#allocation6 + $0x70] sm:$0xff]
    %v1303 = vld [vmem:[#allocation6 + $0x78] sm:$0xff]
    %v1304 = vld [vmem:[#allocation6 + $0x80] sm:$0xff]
    %v1305 = vld [vmem:[#allocation6 + $0x88] sm:$0xff]
    %v1306 = vld [vmem:[#allocation6 + $0x90] sm:$0xff]
    %v1307 = vld [vmem:[#allocation6 + $0x98] sm:$0xff]
    %v1308 = vld [vmem:[#allocation6 + $0xa0] sm:$0xff]
    %v1309 = vld [vmem:[#allocation6 + $0xa8] sm:$0xff]
    %v1310 = vld [vmem:[#allocation6 + $0xb0] sm:$0xff]
    %v1311 = vld [vmem:[#allocation6 + $0xb8] sm:$0xff]
    %v1312 = vld [vmem:[#allocation6 + $0xc0] sm:$0xff]
    %v1313 = vld [vmem:[#allocation6 + $0xc8] sm:$0xff]
    %v1314 = vld [vmem:[#allocation6 + $0xd0] sm:$0xff]
    %v1315 = vld [vmem:[#allocation6 + $0xd8] sm:$0xff]
    %v1316 = vld [vmem:[#allocation6 + $0xe0] sm:$0xff]
    %v1317 = vld [vmem:[#allocation6 + $0xe8] sm:$0xff]
    %v1318 = vld [vmem:[#allocation6 + $0xf0] sm:$0xff]
    %v1319 = vld [vmem:[#allocation6 + $0xf8] sm:$0xff]
    %v1320 = vld [vmem:[#allocation6 + $0x100] sm:$0xff]
    %v1321 = vld [vmem:[#allocation6 + $0x108] sm:$0xff]
    %v1322 = vld [vmem:[#allocation6 + $0x110] sm:$0xff]
    %v1323 = vld [vmem:[#allocation6 + $0x118] sm:$0xff]
    %v1324 = vld [vmem:[#allocation6 + $0x120] sm:$0xff]
    %v1325 = vld [vmem:[#allocation6 + $0x128] sm:$0xff]
    %v1326 = vld [vmem:[#allocation6 + $0x130] sm:$0xff]
    %v1327 = vld [vmem:[#allocation6 + $0x138] sm:$0xff]
    %v1328 = vld [vmem:[#allocation6 + $0x140] sm:$0xff]
    %v1329 = vld [vmem:[#allocation6 + $0x148] sm:$0xff]
    %v1330 = vld [vmem:[#allocation6 + $0x150] sm:$0xff]
    %v1331 = vld [vmem:[#allocation6 + $0x158] sm:$0xff]
    %v1332 = vld [vmem:[#allocation6 + $0x160] sm:$0xff]
    %v1333 = vld [vmem:[#allocation6 + $0x168] sm:$0xff]
    %v1334 = vld [vmem:[#allocation6 + $0x170] sm:$0xff]
    %v1335 = vld [vmem:[#allocation6 + $0x178] sm:$0xff]
    %v1336 = vld [vmem:[#allocation6 + $0x180] sm:$0xff]
    %v1337 = vld [vmem:[#allocation6 + $0x188] sm:$0xff]
    %v1338 = vld [vmem:[#allocation6 + $0x190] sm:$0xff]
    %v1339 = vld [vmem:[#allocation6 + $0x198] sm:$0xff]
    %v1340 = vld [vmem:[#allocation6 + $0x1a0] sm:$0xff]
    %v1341 = vld [vmem:[#allocation6 + $0x1a8] sm:$0xff]
    %v1342 = vld [vmem:[#allocation6 + $0x1b0] sm:$0xff]
    %v1343 = vld [vmem:[#allocation6 + $0x1b8] sm:$0xff]
    %v1344 = vld [vmem:[#allocation6 + $0x1c0] sm:$0xff]
    %v1345 = vld [vmem:[#allocation6 + $0x1c8] sm:$0xff]
    %v1346 = vld [vmem:[#allocation6 + $0x1d0] sm:$0xff]
    %v1347 = vld [vmem:[#allocation6 + $0x1d8] sm:$0xff]
    %v1348 = vld [vmem:[#allocation6 + $0x1e0] sm:$0xff]
    %v1349 = vld [vmem:[#allocation6 + $0x1e8] sm:$0xff]
    %v1350 = vld [vmem:[#allocation6 + $0x1f0] sm:$0xff]
    %v1351 = vld [vmem:[#allocation6 + $0x1f8] sm:$0xff]
    %v1352 = vld [vmem:[#allocation6 + $0x200] sm:$0xff]
    %v1353 = vld [vmem:[#allocation6 + $0x208] sm:$0xff]
    %v1354 = vld [vmem:[#allocation6 + $0x210] sm:$0xff]
    %v1355 = vld [vmem:[#allocation6 + $0x218] sm:$0xff]
    %v1356 = vld [vmem:[#allocation6 + $0x220] sm:$0xff]
    %v1357 = vld [vmem:[#allocation6 + $0x228] sm:$0xff]
    %v1358 = vld [vmem:[#allocation6 + $0x230] sm:$0xff]
    %v1359 = vld [vmem:[#allocation6 + $0x238] sm:$0xff]
    %v1360 = vld [vmem:[#allocation6 + $0x240] sm:$0xff]
    %v1361 = vld [vmem:[#allocation6 + $0x248] sm:$0xff]
    %v1362 = vld [vmem:[#allocation6 + $0x250] sm:$0xff]
    %v1363 = vld [vmem:[#allocation6 + $0x258] sm:$0xff]
    %v1364 = vld [vmem:[#allocation6 + $0x260] sm:$0xff]
    %v1365 = vld [vmem:[#allocation6 + $0x268] sm:$0xff]
    %v1366 = vld [vmem:[#allocation6 + $0x270] sm:$0xff]
    %v1367 = vld [vmem:[#allocation6 + $0x278] sm:$0xff]
    %v1368 = vld [vmem:[#allocation6 + $0x280] sm:$0xff]
    %v1369 = vld [vmem:[#allocation6 + $0x288] sm:$0xff]
    %v1370 = vld [vmem:[#allocation6 + $0x290] sm:$0xff]
    %v1371 = vld [vmem:[#allocation6 + $0x298] sm:$0xff]
    %v1372 = vld [vmem:[#allocation6 + $0x2a0] sm:$0xff]
    %v1373 = vld [vmem:[#allocation6 + $0x2a8] sm:$0xff]
    %v1374 = vld [vmem:[#allocation6 + $0x2b0] sm:$0xff]
    %v1375 = vld [vmem:[#allocation6 + $0x2b8] sm:$0xff]
    %v1376 = vld [vmem:[#allocation6 + $0x2c0] sm:$0xff]
    %v1377 = vld [vmem:[#allocation6 + $0x2c8] sm:$0xff]
    %v1378 = vld [vmem:[#allocation6 + $0x2d0] sm:$0xff]
    %v1379 = vld [vmem:[#allocation6 + $0x2d8] sm:$0xff]
    %v1380 = vld [vmem:[#allocation6 + $0x2e0] sm:$0xff]
    %v1381 = vld [vmem:[#allocation6 + $0x2e8] sm:$0xff]
    %v1382 = vld [vmem:[#allocation6 + $0x2f0] sm:$0xff]
    %v1383 = vld [vmem:[#allocation6 + $0x2f8] sm:$0xff]
    %v1384 = vld [vmem:[#allocation6 + $0x300] sm:$0xff]
    %v1385 = vld [vmem:[#allocation6 + $0x308] sm:$0xff]
    %v1386 = vld [vmem:[#allocation6 + $0x310] sm:$0xff]
    %v1387 = vld [vmem:[#allocation6 + $0x318] sm:$0xff]
    %v1388 = vld [vmem:[#allocation6 + $0x320] sm:$0xff]
    %v1389 = vld [vmem:[#allocation6 + $0x328] sm:$0xff]
    %v1390 = vld [vmem:[#allocation6 + $0x330] sm:$0xff]
    %v1391 = vld [vmem:[#allocation6 + $0x338] sm:$0xff]
    %v1392 = vld [vmem:[#allocation6 + $0x340] sm:$0xff]
    %v1393 = vld [vmem:[#allocation6 + $0x348] sm:$0xff]
    %v1394 = vld [vmem:[#allocation6 + $0x350] sm:$0xff]
    %v1395 = vld [vmem:[#allocation6 + $0x358] sm:$0xff]
    %v1396 = vld [vmem:[#allocation6 + $0x360] sm:$0xff]
    %v1397 = vld [vmem:[#allocation6 + $0x368] sm:$0xff]
    %v1398 = vld [vmem:[#allocation6 + $0x370] sm:$0xff]
    %v1399 = vld [vmem:[#allocation6 + $0x378] sm:$0xff]
    %v1400 = vld [vmem:[#allocation6 + $0x380] sm:$0xff]
    %v1401 = vld [vmem:[#allocation6 + $0x388] sm:$0xff]
    %v1402 = vld [vmem:[#allocation6 + $0x390] sm:$0xff]
    %v1403 = vld [vmem:[#allocation6 + $0x398] sm:$0xff]
    %v1404 = vld [vmem:[#allocation6 + $0x3a0] sm:$0xff]
    %v1405 = vld [vmem:[#allocation6 + $0x3a8] sm:$0xff]
    %v1406 = vld [vmem:[#allocation6 + $0x3b0] sm:$0xff]
    %v1407 = vld [vmem:[#allocation6 + $0x3b8] sm:$0xff]
    %v1408 = vld [vmem:[#allocation6 + $0x3c0] sm:$0xff]
    %v1409 = vld [vmem:[#allocation6 + $0x3c8] sm:$0xff]
    %v1410 = vld [vmem:[#allocation6 + $0x3d0] sm:$0xff]
    %v1411 = vld [vmem:[#allocation6 + $0x3d8] sm:$0xff]
    %v1412 = vld [vmem:[#allocation6 + $0x3e0] sm:$0xff]
    %v1413 = vld [vmem:[#allocation6 + $0x3e8] sm:$0xff]
    %v1414 = vld [vmem:[#allocation6 + $0x3f0] sm:$0xff]
    %v1415 = vld [vmem:[#allocation6 + $0x3f8] sm:$0xff]
    %v1416 = vld [vmem:[%s6] sm:$0xf]
    %v1417 = vunpack.c.l.bf16 %v1416
    %v1419 = vlaneseq
    %v1420 = vshrl.u32 %v1419, 7
    %v1421 = vsub.s32 0, %v1420
    %v1422 = vrot.slane %v1417, %v1421
    %v1423 = vlaneseq
    %v1424 = vshrl.u32 %v1423, 7
    %v1425 = vsub.s32 2, %v1424
    %v1426 = vrot.slane %v1417, %v1425
    %v1427 = vlaneseq
    %v1428 = vshrl.u32 %v1427, 7
    %v1429 = vsub.s32 4, %v1428
    %v1430 = vrot.slane %v1417, %v1429
    %v1431 = vlaneseq
    %v1432 = vshrl.u32 %v1431, 7
    %v1433 = vsub.s32 6, %v1432
    %v1434 = vrot.slane %v1417, %v1433
    %v1439 = vlaneseq
    %v1440 = vshrl.u32 %v1439, 7
    %v1441 = vsub.s32 0, %v1440
    %v1442 = vrot.slane %v1422, %v1441
    %v1443 = vlaneseq
    %v1444 = vshrl.u32 %v1443, 7
    %v1445 = vsub.s32 0, %v1444
    %v1446 = vrot.slane %v1426, %v1445
    %v1447 = vlaneseq
    %v1448 = vshrl.u32 %v1447, 7
    %v1449 = vsub.s32 0, %v1448
    %v1450 = vrot.slane %v1430, %v1449
    %v1451 = vlaneseq
    %v1452 = vshrl.u32 %v1451, 7
    %v1453 = vsub.s32 0, %v1452
    %v1454 = vrot.slane %v1434, %v1453
    %v1583 = vunpack.c.l.b16 %v1288
    %v1584 = vunpack.c.h.b16 %v1288
    %v1585 = vunpack.c.l.b16 %v1289
    %v1586 = vunpack.c.h.b16 %v1289
    %v1587 = vunpack.c.l.b16 %v1290
    %v1588 = vunpack.c.h.b16 %v1290
    %v1589 = vunpack.c.l.b16 %v1291
    %v1590 = vunpack.c.h.b16 %v1291
    %v1591 = vunpack.c.l.b16 %v1292
    %v1592 = vunpack.c.h.b16 %v1292
    %v1593 = vunpack.c.l.b16 %v1293
    %v1594 = vunpack.c.h.b16 %v1293
    %v1595 = vunpack.c.l.b16 %v1294
    %v1596 = vunpack.c.h.b16 %v1294
    %v1597 = vunpack.c.l.b16 %v1295
    %v1598 = vunpack.c.h.b16 %v1295
    %v1599 = vunpack.c.l.b16 %v1296
    %v1600 = vunpack.c.h.b16 %v1296
    %v1601 = vunpack.c.l.b16 %v1297
    %v1602 = vunpack.c.h.b16 %v1297
    %v1603 = vunpack.c.l.b16 %v1298
    %v1604 = vunpack.c.h.b16 %v1298
    %v1605 = vunpack.c.l.b16 %v1299
    %v1606 = vunpack.c.h.b16 %v1299
    %v1607 = vunpack.c.l.b16 %v1300
    %v1608 = vunpack.c.h.b16 %v1300
    %v1609 = vunpack.c.l.b16 %v1301
    %v1610 = vunpack.c.h.b16 %v1301
    %v1611 = vunpack.c.l.b16 %v1302
    %v1612 = vunpack.c.h.b16 %v1302
    %v1613 = vunpack.c.l.b16 %v1303
    %v1614 = vunpack.c.h.b16 %v1303
    %v1615 = vunpack.c.l.b16 %v1304
    %v1616 = vunpack.c.h.b16 %v1304
    %v1617 = vunpack.c.l.b16 %v1305
    %v1618 = vunpack.c.h.b16 %v1305
    %v1619 = vunpack.c.l.b16 %v1306
    %v1620 = vunpack.c.h.b16 %v1306
    %v1621 = vunpack.c.l.b16 %v1307
    %v1622 = vunpack.c.h.b16 %v1307
    %v1623 = vunpack.c.l.b16 %v1308
    %v1624 = vunpack.c.h.b16 %v1308
    %v1625 = vunpack.c.l.b16 %v1309
    %v1626 = vunpack.c.h.b16 %v1309
    %v1627 = vunpack.c.l.b16 %v1310
    %v1628 = vunpack.c.h.b16 %v1310
    %v1629 = vunpack.c.l.b16 %v1311
    %v1630 = vunpack.c.h.b16 %v1311
    %v1631 = vunpack.c.l.b16 %v1312
    %v1632 = vunpack.c.h.b16 %v1312
    %v1633 = vunpack.c.l.b16 %v1313
    %v1634 = vunpack.c.h.b16 %v1313
    %v1635 = vunpack.c.l.b16 %v1314
    %v1636 = vunpack.c.h.b16 %v1314
    %v1637 = vunpack.c.l.b16 %v1315
    %v1638 = vunpack.c.h.b16 %v1315
    %v1639 = vunpack.c.l.b16 %v1316
    %v1640 = vunpack.c.h.b16 %v1316
    %v1641 = vunpack.c.l.b16 %v1317
    %v1642 = vunpack.c.h.b16 %v1317
    %v1643 = vunpack.c.l.b16 %v1318
    %v1644 = vunpack.c.h.b16 %v1318
    %v1645 = vunpack.c.l.b16 %v1319
    %v1646 = vunpack.c.h.b16 %v1319
    %v1647 = vunpack.c.l.b16 %v1320
    %v1648 = vunpack.c.h.b16 %v1320
    %v1649 = vunpack.c.l.b16 %v1321
    %v1650 = vunpack.c.h.b16 %v1321
    %v1651 = vunpack.c.l.b16 %v1322
    %v1652 = vunpack.c.h.b16 %v1322
    %v1653 = vunpack.c.l.b16 %v1323
    %v1654 = vunpack.c.h.b16 %v1323
    %v1655 = vunpack.c.l.b16 %v1324
    %v1656 = vunpack.c.h.b16 %v1324
    %v1657 = vunpack.c.l.b16 %v1325
    %v1658 = vunpack.c.h.b16 %v1325
    %v1659 = vunpack.c.l.b16 %v1326
    %v1660 = vunpack.c.h.b16 %v1326
    %v1661 = vunpack.c.l.b16 %v1327
    %v1662 = vunpack.c.h.b16 %v1327
    %v1663 = vunpack.c.l.b16 %v1328
    %v1664 = vunpack.c.h.b16 %v1328
    %v1665 = vunpack.c.l.b16 %v1329
    %v1666 = vunpack.c.h.b16 %v1329
    %v1667 = vunpack.c.l.b16 %v1330
    %v1668 = vunpack.c.h.b16 %v1330
    %v1669 = vunpack.c.l.b16 %v1331
    %v1670 = vunpack.c.h.b16 %v1331
    %v1671 = vunpack.c.l.b16 %v1332
    %v1672 = vunpack.c.h.b16 %v1332
    %v1673 = vunpack.c.l.b16 %v1333
    %v1674 = vunpack.c.h.b16 %v1333
    %v1675 = vunpack.c.l.b16 %v1334
    %v1676 = vunpack.c.h.b16 %v1334
    %v1677 = vunpack.c.l.b16 %v1335
    %v1678 = vunpack.c.h.b16 %v1335
    %v1679 = vunpack.c.l.b16 %v1336
    %v1680 = vunpack.c.h.b16 %v1336
    %v1681 = vunpack.c.l.b16 %v1337
    %v1682 = vunpack.c.h.b16 %v1337
    %v1683 = vunpack.c.l.b16 %v1338
    %v1684 = vunpack.c.h.b16 %v1338
    %v1685 = vunpack.c.l.b16 %v1339
    %v1686 = vunpack.c.h.b16 %v1339
    %v1687 = vunpack.c.l.b16 %v1340
    %v1688 = vunpack.c.h.b16 %v1340
    %v1689 = vunpack.c.l.b16 %v1341
    %v1690 = vunpack.c.h.b16 %v1341
    %v1691 = vunpack.c.l.b16 %v1342
    %v1692 = vunpack.c.h.b16 %v1342
    %v1693 = vunpack.c.l.b16 %v1343
    %v1694 = vunpack.c.h.b16 %v1343
    %v1695 = vunpack.c.l.b16 %v1344
    %v1696 = vunpack.c.h.b16 %v1344
    %v1697 = vunpack.c.l.b16 %v1345
    %v1698 = vunpack.c.h.b16 %v1345
    %v1699 = vunpack.c.l.b16 %v1346
    %v1700 = vunpack.c.h.b16 %v1346
    %v1701 = vunpack.c.l.b16 %v1347
    %v1702 = vunpack.c.h.b16 %v1347
    %v1703 = vunpack.c.l.b16 %v1348
    %v1704 = vunpack.c.h.b16 %v1348
    %v1705 = vunpack.c.l.b16 %v1349
    %v1706 = vunpack.c.h.b16 %v1349
    %v1707 = vunpack.c.l.b16 %v1350
    %v1708 = vunpack.c.h.b16 %v1350
    %v1709 = vunpack.c.l.b16 %v1351
    %v1710 = vunpack.c.h.b16 %v1351
    %v1711 = vunpack.c.l.b16 %v1352
    %v1712 = vunpack.c.h.b16 %v1352
    %v1713 = vunpack.c.l.b16 %v1353
    %v1714 = vunpack.c.h.b16 %v1353
    %v1715 = vunpack.c.l.b16 %v1354
    %v1716 = vunpack.c.h.b16 %v1354
    %v1717 = vunpack.c.l.b16 %v1355
    %v1718 = vunpack.c.h.b16 %v1355
    %v1719 = vunpack.c.l.b16 %v1356
    %v1720 = vunpack.c.h.b16 %v1356
    %v1721 = vunpack.c.l.b16 %v1357
    %v1722 = vunpack.c.h.b16 %v1357
    %v1723 = vunpack.c.l.b16 %v1358
    %v1724 = vunpack.c.h.b16 %v1358
    %v1725 = vunpack.c.l.b16 %v1359
    %v1726 = vunpack.c.h.b16 %v1359
    %v1727 = vunpack.c.l.b16 %v1360
    %v1728 = vunpack.c.h.b16 %v1360
    %v1729 = vunpack.c.l.b16 %v1361
    %v1730 = vunpack.c.h.b16 %v1361
    %v1731 = vunpack.c.l.b16 %v1362
    %v1732 = vunpack.c.h.b16 %v1362
    %v1733 = vunpack.c.l.b16 %v1363
    %v1734 = vunpack.c.h.b16 %v1363
    %v1735 = vunpack.c.l.b16 %v1364
    %v1736 = vunpack.c.h.b16 %v1364
    %v1737 = vunpack.c.l.b16 %v1365
    %v1738 = vunpack.c.h.b16 %v1365
    %v1739 = vunpack.c.l.b16 %v1366
    %v1740 = vunpack.c.h.b16 %v1366
    %v1741 = vunpack.c.l.b16 %v1367
    %v1742 = vunpack.c.h.b16 %v1367
    %v1743 = vunpack.c.l.b16 %v1368
    %v1744 = vunpack.c.h.b16 %v1368
    %v1745 = vunpack.c.l.b16 %v1369
    %v1746 = vunpack.c.h.b16 %v1369
    %v1747 = vunpack.c.l.b16 %v1370
    %v1748 = vunpack.c.h.b16 %v1370
    %v1749 = vunpack.c.l.b16 %v1371
    %v1750 = vunpack.c.h.b16 %v1371
    %v1751 = vunpack.c.l.b16 %v1372
    %v1752 = vunpack.c.h.b16 %v1372
    %v1753 = vunpack.c.l.b16 %v1373
    %v1754 = vunpack.c.h.b16 %v1373
    %v1755 = vunpack.c.l.b16 %v1374
    %v1756 = vunpack.c.h.b16 %v1374
    %v1757 = vunpack.c.l.b16 %v1375
    %v1758 = vunpack.c.h.b16 %v1375
    %v1759 = vunpack.c.l.b16 %v1376
    %v1760 = vunpack.c.h.b16 %v1376
    %v1761 = vunpack.c.l.b16 %v1377
    %v1762 = vunpack.c.h.b16 %v1377
    %v1763 = vunpack.c.l.b16 %v1378
    %v1764 = vunpack.c.h.b16 %v1378
    %v1765 = vunpack.c.l.b16 %v1379
    %v1766 = vunpack.c.h.b16 %v1379
    %v1767 = vunpack.c.l.b16 %v1380
    %v1768 = vunpack.c.h.b16 %v1380
    %v1769 = vunpack.c.l.b16 %v1381
    %v1770 = vunpack.c.h.b16 %v1381
    %v1771 = vunpack.c.l.b16 %v1382
    %v1772 = vunpack.c.h.b16 %v1382
    %v1773 = vunpack.c.l.b16 %v1383
    %v1774 = vunpack.c.h.b16 %v1383
    %v1775 = vunpack.c.l.b16 %v1384
    %v1776 = vunpack.c.h.b16 %v1384
    %v1777 = vunpack.c.l.b16 %v1385
    %v1778 = vunpack.c.h.b16 %v1385
    %v1779 = vunpack.c.l.b16 %v1386
    %v1780 = vunpack.c.h.b16 %v1386
    %v1781 = vunpack.c.l.b16 %v1387
    %v1782 = vunpack.c.h.b16 %v1387
    %v1783 = vunpack.c.l.b16 %v1388
    %v1784 = vunpack.c.h.b16 %v1388
    %v1785 = vunpack.c.l.b16 %v1389
    %v1786 = vunpack.c.h.b16 %v1389
    %v1787 = vunpack.c.l.b16 %v1390
    %v1788 = vunpack.c.h.b16 %v1390
    %v1789 = vunpack.c.l.b16 %v1391
    %v1790 = vunpack.c.h.b16 %v1391
    %v1791 = vunpack.c.l.b16 %v1392
    %v1792 = vunpack.c.h.b16 %v1392
    %v1793 = vunpack.c.l.b16 %v1393
    %v1794 = vunpack.c.h.b16 %v1393
    %v1795 = vunpack.c.l.b16 %v1394
    %v1796 = vunpack.c.h.b16 %v1394
    %v1797 = vunpack.c.l.b16 %v1395
    %v1798 = vunpack.c.h.b16 %v1395
    %v1799 = vunpack.c.l.b16 %v1396
    %v1800 = vunpack.c.h.b16 %v1396
    %v1801 = vunpack.c.l.b16 %v1397
    %v1802 = vunpack.c.h.b16 %v1397
    %v1803 = vunpack.c.l.b16 %v1398
    %v1804 = vunpack.c.h.b16 %v1398
    %v1805 = vunpack.c.l.b16 %v1399
    %v1806 = vunpack.c.h.b16 %v1399
    %v1807 = vunpack.c.l.b16 %v1400
    %v1808 = vunpack.c.h.b16 %v1400
    %v1809 = vunpack.c.l.b16 %v1401
    %v1810 = vunpack.c.h.b16 %v1401
    %v1811 = vunpack.c.l.b16 %v1402
    %v1812 = vunpack.c.h.b16 %v1402
    %v1813 = vunpack.c.l.b16 %v1403
    %v1814 = vunpack.c.h.b16 %v1403
    %v1815 = vunpack.c.l.b16 %v1404
    %v1816 = vunpack.c.h.b16 %v1404
    %v1817 = vunpack.c.l.b16 %v1405
    %v1818 = vunpack.c.h.b16 %v1405
    %v1819 = vunpack.c.l.b16 %v1406
    %v1820 = vunpack.c.h.b16 %v1406
    %v1821 = vunpack.c.l.b16 %v1407
    %v1822 = vunpack.c.h.b16 %v1407
    %v1823 = vunpack.c.l.b16 %v1408
    %v1824 = vunpack.c.h.b16 %v1408
    %v1825 = vunpack.c.l.b16 %v1409
    %v1826 = vunpack.c.h.b16 %v1409
    %v1827 = vunpack.c.l.b16 %v1410
    %v1828 = vunpack.c.h.b16 %v1410
    %v1829 = vunpack.c.l.b16 %v1411
    %v1830 = vunpack.c.h.b16 %v1411
    %v1831 = vunpack.c.l.b16 %v1412
    %v1832 = vunpack.c.h.b16 %v1412
    %v1833 = vunpack.c.l.b16 %v1413
    %v1834 = vunpack.c.h.b16 %v1413
    %v1835 = vunpack.c.l.b16 %v1414
    %v1836 = vunpack.c.h.b16 %v1414
    %v1837 = vunpack.c.l.b16 %v1415
    %v1838 = vunpack.c.h.b16 %v1415
    %v1839 = vpack.c.b16 %v1587, %v1583
    %v1840 = vpack.c.b16 %v1588, %v1584
    %v1841 = vpack.c.b16 %v1589, %v1585
    %v1842 = vpack.c.b16 %v1590, %v1586
    %v1843 = vpack.c.b16 %v1595, %v1591
    %v1844 = vpack.c.b16 %v1596, %v1592
    %v1845 = vpack.c.b16 %v1597, %v1593
    %v1846 = vpack.c.b16 %v1598, %v1594
    %v1847 = vpack.c.b16 %v1603, %v1599
    %v1848 = vpack.c.b16 %v1604, %v1600
    %v1849 = vpack.c.b16 %v1605, %v1601
    %v1850 = vpack.c.b16 %v1606, %v1602
    %v1851 = vpack.c.b16 %v1611, %v1607
    %v1852 = vpack.c.b16 %v1612, %v1608
    %v1853 = vpack.c.b16 %v1613, %v1609
    %v1854 = vpack.c.b16 %v1614, %v1610
    %v1855 = vpack.c.b16 %v1619, %v1615
    %v1856 = vpack.c.b16 %v1620, %v1616
    %v1857 = vpack.c.b16 %v1621, %v1617
    %v1858 = vpack.c.b16 %v1622, %v1618
    %v1859 = vpack.c.b16 %v1627, %v1623
    %v1860 = vpack.c.b16 %v1628, %v1624
    %v1861 = vpack.c.b16 %v1629, %v1625
    %v1862 = vpack.c.b16 %v1630, %v1626
    %v1863 = vpack.c.b16 %v1635, %v1631
    %v1864 = vpack.c.b16 %v1636, %v1632
    %v1865 = vpack.c.b16 %v1637, %v1633
    %v1866 = vpack.c.b16 %v1638, %v1634
    %v1867 = vpack.c.b16 %v1643, %v1639
    %v1868 = vpack.c.b16 %v1644, %v1640
    %v1869 = vpack.c.b16 %v1645, %v1641
    %v1870 = vpack.c.b16 %v1646, %v1642
    %v1871 = vpack.c.b16 %v1651, %v1647
    %v1872 = vpack.c.b16 %v1652, %v1648
    %v1873 = vpack.c.b16 %v1653, %v1649
    %v1874 = vpack.c.b16 %v1654, %v1650
    %v1875 = vpack.c.b16 %v1659, %v1655
    %v1876 = vpack.c.b16 %v1660, %v1656
    %v1877 = vpack.c.b16 %v1661, %v1657
    %v1878 = vpack.c.b16 %v1662, %v1658
    %v1879 = vpack.c.b16 %v1667, %v1663
    %v1880 = vpack.c.b16 %v1668, %v1664
    %v1881 = vpack.c.b16 %v1669, %v1665
    %v1882 = vpack.c.b16 %v1670, %v1666
    %v1883 = vpack.c.b16 %v1675, %v1671
    %v1884 = vpack.c.b16 %v1676, %v1672
    %v1885 = vpack.c.b16 %v1677, %v1673
    %v1886 = vpack.c.b16 %v1678, %v1674
    %v1887 = vpack.c.b16 %v1683, %v1679
    %v1888 = vpack.c.b16 %v1684, %v1680
    %v1889 = vpack.c.b16 %v1685, %v1681
    %v1890 = vpack.c.b16 %v1686, %v1682
    %v1891 = vpack.c.b16 %v1691, %v1687
    %v1892 = vpack.c.b16 %v1692, %v1688
    %v1893 = vpack.c.b16 %v1693, %v1689
    %v1894 = vpack.c.b16 %v1694, %v1690
    %v1895 = vpack.c.b16 %v1699, %v1695
    %v1896 = vpack.c.b16 %v1700, %v1696
    %v1897 = vpack.c.b16 %v1701, %v1697
    %v1898 = vpack.c.b16 %v1702, %v1698
    %v1899 = vpack.c.b16 %v1707, %v1703
    %v1900 = vpack.c.b16 %v1708, %v1704
    %v1901 = vpack.c.b16 %v1709, %v1705
    %v1902 = vpack.c.b16 %v1710, %v1706
    %v1903 = vpack.c.b16 %v1715, %v1711
    %v1904 = vpack.c.b16 %v1716, %v1712
    %v1905 = vpack.c.b16 %v1717, %v1713
    %v1906 = vpack.c.b16 %v1718, %v1714
    %v1907 = vpack.c.b16 %v1723, %v1719
    %v1908 = vpack.c.b16 %v1724, %v1720
    %v1909 = vpack.c.b16 %v1725, %v1721
    %v1910 = vpack.c.b16 %v1726, %v1722
    %v1911 = vpack.c.b16 %v1731, %v1727
    %v1912 = vpack.c.b16 %v1732, %v1728
    %v1913 = vpack.c.b16 %v1733, %v1729
    %v1914 = vpack.c.b16 %v1734, %v1730
    %v1915 = vpack.c.b16 %v1739, %v1735
    %v1916 = vpack.c.b16 %v1740, %v1736
    %v1917 = vpack.c.b16 %v1741, %v1737
    %v1918 = vpack.c.b16 %v1742, %v1738
    %v1919 = vpack.c.b16 %v1747, %v1743
    %v1920 = vpack.c.b16 %v1748, %v1744
    %v1921 = vpack.c.b16 %v1749, %v1745
    %v1922 = vpack.c.b16 %v1750, %v1746
    %v1923 = vpack.c.b16 %v1755, %v1751
    %v1924 = vpack.c.b16 %v1756, %v1752
    %v1925 = vpack.c.b16 %v1757, %v1753
    %v1926 = vpack.c.b16 %v1758, %v1754
    %v1927 = vpack.c.b16 %v1763, %v1759
    %v1928 = vpack.c.b16 %v1764, %v1760
    %v1929 = vpack.c.b16 %v1765, %v1761
    %v1930 = vpack.c.b16 %v1766, %v1762
    %v1931 = vpack.c.b16 %v1771, %v1767
    %v1932 = vpack.c.b16 %v1772, %v1768
    %v1933 = vpack.c.b16 %v1773, %v1769
    %v1934 = vpack.c.b16 %v1774, %v1770
    %v1935 = vpack.c.b16 %v1779, %v1775
    %v1936 = vpack.c.b16 %v1780, %v1776
    %v1937 = vpack.c.b16 %v1781, %v1777
    %v1938 = vpack.c.b16 %v1782, %v1778
    %v1939 = vpack.c.b16 %v1787, %v1783
    %v1940 = vpack.c.b16 %v1788, %v1784
    %v1941 = vpack.c.b16 %v1789, %v1785
    %v1942 = vpack.c.b16 %v1790, %v1786
    %v1943 = vpack.c.b16 %v1795, %v1791
    %v1944 = vpack.c.b16 %v1796, %v1792
    %v1945 = vpack.c.b16 %v1797, %v1793
    %v1946 = vpack.c.b16 %v1798, %v1794
    %v1947 = vpack.c.b16 %v1803, %v1799
    %v1948 = vpack.c.b16 %v1804, %v1800
    %v1949 = vpack.c.b16 %v1805, %v1801
    %v1950 = vpack.c.b16 %v1806, %v1802
    %v1951 = vpack.c.b16 %v1811, %v1807
    %v1952 = vpack.c.b16 %v1812, %v1808
    %v1953 = vpack.c.b16 %v1813, %v1809
    %v1954 = vpack.c.b16 %v1814, %v1810
    %v1955 = vpack.c.b16 %v1819, %v1815
    %v1956 = vpack.c.b16 %v1820, %v1816
    %v1957 = vpack.c.b16 %v1821, %v1817
    %v1958 = vpack.c.b16 %v1822, %v1818
    %v1959 = vpack.c.b16 %v1827, %v1823
    %v1960 = vpack.c.b16 %v1828, %v1824
    %v1961 = vpack.c.b16 %v1829, %v1825
    %v1962 = vpack.c.b16 %v1830, %v1826
    %v1963 = vpack.c.b16 %v1835, %v1831
    %v1964 = vpack.c.b16 %v1836, %v1832
    %v1965 = vpack.c.b16 %v1837, %v1833
    %v1966 = vpack.c.b16 %v1838, %v1834
    %2095 = vmatprep.subr.bf16.mxu0 %v1868
    %2096 = vmatpush1.bf16.msra.mxu0 %v1867
    %2097 = vmatprep.subr.bf16.mxu0 %v1864
    %2098 = vmatpush1.bf16.msra.mxu0 %v1863
    %2099 = vmatprep.subr.bf16.mxu0 %v1860
    %2100 = vmatpush1.bf16.msra.mxu0 %v1859
    %2101 = vmatprep.subr.bf16.mxu0 %v1856
    %2102 = vmatpush1.bf16.msra.mxu0 %v1855
    %2103 = vmatprep.subr.bf16.mxu0 %v1852
    %2104 = vmatpush1.bf16.msra.mxu0 %v1851
    %2105 = vmatprep.subr.bf16.mxu0 %v1848
    %2106 = vmatpush1.bf16.msra.mxu0 %v1847
    %2107 = vmatprep.subr.bf16.mxu0 %v1844
    %2108 = vmatpush1.bf16.msra.mxu0 %v1843
    %2109 = vmatprep.subr.bf16.mxu0 %v1840
    %2110 = vmatpush1.bf16.msra.mxu0 %v1839
    %2111 = vmatprep.subr.bf16.mxu0 %v1900
    %2112 = vmatpush2.bf16.msra.mxu0 %v1899
    %2113 = vmatprep.subr.bf16.mxu0 %v1896
    %2114 = vmatpush2.bf16.msra.mxu0 %v1895
    %2115 = vmatprep.subr.bf16.mxu0 %v1892
    %2116 = vmatpush2.bf16.msra.mxu0 %v1891
    %2117 = vmatprep.subr.bf16.mxu0 %v1888
    %2118 = vmatpush2.bf16.msra.mxu0 %v1887
    %2119 = vmatprep.subr.bf16.mxu0 %v1884
    %2120 = vmatpush2.bf16.msra.mxu0 %v1883
    %2121 = vmatprep.subr.bf16.mxu0 %v1880
    %2122 = vmatpush2.bf16.msra.mxu0 %v1879
    %2123 = vmatprep.subr.bf16.mxu0 %v1876
    %2124 = vmatpush2.bf16.msra.mxu0 %v1875
    %2125 = vmatprep.subr.bf16.mxu0 %v1872
    %2126 = vmatpush2.bf16.msra.mxu0 %v1871
    %2127 = vmatprep.mubr.bf16.mxu0 %v1285
    %2128 = vmatmul.mubr.bf16.gmra.mxu0 %v1284
    %v2129 = vpop.f32.mrf.mxu0
    %v2130 = vadd.f32 %v1442, %v2129
    %v2131 = vpop.f32.mrf.mxu0
    %v2132 = vadd.f32 %v1446, %v2131
    %v2133 = vpop.f32.mrf.mxu0
    %v2134 = vpop.f32.mrf.mxu0
    %2135 = vdwg.mxu0
    %2136 = vmatprep.subr.bf16.mxu0 %v1932
    %2137 = vmatpush1.bf16.msra.mxu0 %v1931
    %2138 = vmatprep.subr.bf16.mxu0 %v1928
    %2139 = vmatpush1.bf16.msra.mxu0 %v1927
    %2140 = vmatprep.subr.bf16.mxu0 %v1924
    %2141 = vmatpush1.bf16.msra.mxu0 %v1923
    %2142 = vmatprep.subr.bf16.mxu0 %v1920
    %2143 = vmatpush1.bf16.msra.mxu0 %v1919
    %2144 = vmatprep.subr.bf16.mxu0 %v1916
    %2145 = vmatpush1.bf16.msra.mxu0 %v1915
    %2146 = vmatprep.subr.bf16.mxu0 %v1912
    %2147 = vmatpush1.bf16.msra.mxu0 %v1911
    %2148 = vmatprep.subr.bf16.mxu0 %v1908
    %2149 = vmatpush1.bf16.msra.mxu0 %v1907
    %2150 = vmatprep.subr.bf16.mxu0 %v1904
    %2151 = vmatpush1.bf16.msra.mxu0 %v1903
    %2152 = vmatprep.subr.bf16.mxu0 %v1964
    %2153 = vmatpush2.bf16.msra.mxu0 %v1963
    %2154 = vmatprep.subr.bf16.mxu0 %v1960
    %2155 = vmatpush2.bf16.msra.mxu0 %v1959
    %2156 = vmatprep.subr.bf16.mxu0 %v1956
    %2157 = vmatpush2.bf16.msra.mxu0 %v1955
    %2158 = vmatprep.subr.bf16.mxu0 %v1952
    %2159 = vmatpush2.bf16.msra.mxu0 %v1951
    %2160 = vmatprep.subr.bf16.mxu0 %v1948
    %2161 = vmatpush2.bf16.msra.mxu0 %v1947
    %2162 = vmatprep.subr.bf16.mxu0 %v1944
    %2163 = vmatpush2.bf16.msra.mxu0 %v1943
    %2164 = vmatprep.subr.bf16.mxu0 %v1940
    %2165 = vmatpush2.bf16.msra.mxu0 %v1939
    %2166 = vmatprep.subr.bf16.mxu0 %v1936
    %2167 = vmatpush2.bf16.msra.mxu0 %v1935
    %2168 = vmatprep.mubr.bf16.mxu0 %v1287
    %2169 = vmatmul.mubr.bf16.gmra.mxu0 %v1286
    %v2170 = vpop.f32.mrf.mxu0
    %v2171 = vadd.f32 %v2130, %v2170
    %v2172 = vpop.f32.mrf.mxu0
    %v2173 = vadd.f32 %v2132, %v2172
    %v2174 = vpop.f32.mrf.mxu0
    %v2175 = vpop.f32.mrf.mxu0
    %2176 = vdwg.mxu0
    %2177 = vmatprep.subr.bf16.mxu0 %v1870
    %2178 = vmatpush1.bf16.msra.mxu0 %v1869
    %2179 = vmatprep.subr.bf16.mxu0 %v1866
    %2180 = vmatpush1.bf16.msra.mxu0 %v1865
    %2181 = vmatprep.subr.bf16.mxu0 %v1862
    %2182 = vmatpush1.bf16.msra.mxu0 %v1861
    %2183 = vmatprep.subr.bf16.mxu0 %v1858
    %2184 = vmatpush1.bf16.msra.mxu0 %v1857
    %2185 = vmatprep.subr.bf16.mxu0 %v1854
    %2186 = vmatpush1.bf16.msra.mxu0 %v1853
    %2187 = vmatprep.subr.bf16.mxu0 %v1850
    %2188 = vmatpush1.bf16.msra.mxu0 %v1849
    %2189 = vmatprep.subr.bf16.mxu0 %v1846
    %2190 = vmatpush1.bf16.msra.mxu0 %v1845
    %2191 = vmatprep.subr.bf16.mxu0 %v1842
    %2192 = vmatpush1.bf16.msra.mxu0 %v1841
    %2193 = vmatprep.subr.bf16.mxu0 %v1902
    %2194 = vmatpush2.bf16.msra.mxu0 %v1901
    %2195 = vmatprep.subr.bf16.mxu0 %v1898
    %2196 = vmatpush2.bf16.msra.mxu0 %v1897
    %2197 = vmatprep.subr.bf16.mxu0 %v1894
    %2198 = vmatpush2.bf16.msra.mxu0 %v1893
    %2199 = vmatprep.subr.bf16.mxu0 %v1890
    %2200 = vmatpush2.bf16.msra.mxu0 %v1889
    %2201 = vmatprep.subr.bf16.mxu0 %v1886
    %2202 = vmatpush2.bf16.msra.mxu0 %v1885
    %2203 = vmatprep.subr.bf16.mxu0 %v1882
    %2204 = vmatpush2.bf16.msra.mxu0 %v1881
    %2205 = vmatprep.subr.bf16.mxu0 %v1878
    %2206 = vmatpush2.bf16.msra.mxu0 %v1877
    %2207 = vmatprep.subr.bf16.mxu0 %v1874
    %2208 = vmatpush2.bf16.msra.mxu0 %v1873
    %2209 = vmatprep.mubr.bf16.mxu0 %v1285
    %2210 = vmatmul.mubr.bf16.gmra.mxu0 %v1284
    %v2211 = vpop.f32.mrf.mxu0
    %v2212 = vadd.f32 %v1450, %v2211
    %v2213 = vpop.f32.mrf.mxu0
    %v2214 = vadd.f32 %v1454, %v2213
    %v2215 = vpop.f32.mrf.mxu0
    %v2216 = vpop.f32.mrf.mxu0
    %2217 = vdwg.mxu0
    %2218 = vmatprep.subr.bf16.mxu0 %v1934
    %2219 = vmatpush1.bf16.msra.mxu0 %v1933
    %2220 = vmatprep.subr.bf16.mxu0 %v1930
    %2221 = vmatpush1.bf16.msra.mxu0 %v1929
    %2222 = vmatprep.subr.bf16.mxu0 %v1926
    %2223 = vmatpush1.bf16.msra.mxu0 %v1925
    %2224 = vmatprep.subr.bf16.mxu0 %v1922
    %2225 = vmatpush1.bf16.msra.mxu0 %v1921
    %2226 = vmatprep.subr.bf16.mxu0 %v1918
    %2227 = vmatpush1.bf16.msra.mxu0 %v1917
    %2228 = vmatprep.subr.bf16.mxu0 %v1914
    %2229 = vmatpush1.bf16.msra.mxu0 %v1913
    %2230 = vmatprep.subr.bf16.mxu0 %v1910
    %2231 = vmatpush1.bf16.msra.mxu0 %v1909
    %2232 = vmatprep.subr.bf16.mxu0 %v1906
    %2233 = vmatpush1.bf16.msra.mxu0 %v1905
    %2234 = vmatprep.subr.bf16.mxu0 %v1966
    %2235 = vmatpush2.bf16.msra.mxu0 %v1965
    %2236 = vmatprep.subr.bf16.mxu0 %v1962
    %2237 = vmatpush2.bf16.msra.mxu0 %v1961
    %2238 = vmatprep.subr.bf16.mxu0 %v1958
    %2239 = vmatpush2.bf16.msra.mxu0 %v1957
    %2240 = vmatprep.subr.bf16.mxu0 %v1954
    %2241 = vmatpush2.bf16.msra.mxu0 %v1953
    %2242 = vmatprep.subr.bf16.mxu0 %v1950
    %2243 = vmatpush2.bf16.msra.mxu0 %v1949
    %2244 = vmatprep.subr.bf16.mxu0 %v1946
    %2245 = vmatpush2.bf16.msra.mxu0 %v1945
    %2246 = vmatprep.subr.bf16.mxu0 %v1942
    %2247 = vmatpush2.bf16.msra.mxu0 %v1941
    %2248 = vmatprep.subr.bf16.mxu0 %v1938
    %2249 = vmatpush2.bf16.msra.mxu0 %v1937
    %2250 = vmatprep.mubr.bf16.mxu0 %v1287
    %2251 = vmatmul.mubr.bf16.gmra.mxu0 %v1286
    %v2252 = vpop.f32.mrf.mxu0
    %v2253 = vadd.f32 %v2212, %v2252
    %v2254 = vpop.f32.mrf.mxu0
    %v2255 = vadd.f32 %v2214, %v2254
    %v2256 = vpop.f32.mrf.mxu0
    %v2257 = vpop.f32.mrf.mxu0
    %2258 = vdwg.mxu0
    %v2259 = vmax.f32 %v2171, 0.0
    %v2260 = vmax.f32 %v2173, 0.0
    %v2261 = vmax.f32 %v2253, 0.0
    %v2262 = vmax.f32 %v2255, 0.0
    %v2263 = vpack.c.bf16 %v2259, %v2259
    %v2264 = vpack.c.bf16 %v2260, %v2260
    %v2265 = vpack.c.bf16 %v2261, %v2261
    %v2266 = vpack.c.bf16 %v2262, %v2262
    %v2267 = vld [vmem:[#allocation7] sm:$0xff]
    %v2268 = vld [vmem:[#allocation7 + $0x8] sm:$0xff]
    %v2269 = vld [vmem:[#allocation7 + $0x10] sm:$0xff]
    %v2270 = vld [vmem:[#allocation7 + $0x18] sm:$0xff]
    %v2271 = vld [vmem:[#allocation7 + $0x20] sm:$0xff]
    %v2272 = vld [vmem:[#allocation7 + $0x28] sm:$0xff]
    %v2273 = vld [vmem:[#allocation7 + $0x30] sm:$0xff]
    %v2274 = vld [vmem:[#allocation7 + $0x38] sm:$0xff]
    %v2275 = vld [vmem:[#allocation7 + $0x40] sm:$0xff]
    %v2276 = vld [vmem:[#allocation7 + $0x48] sm:$0xff]
    %v2277 = vld [vmem:[#allocation7 + $0x50] sm:$0xff]
    %v2278 = vld [vmem:[#allocation7 + $0x58] sm:$0xff]
    %v2279 = vld [vmem:[#allocation7 + $0x60] sm:$0xff]
    %v2280 = vld [vmem:[#allocation7 + $0x68] sm:$0xff]
    %v2281 = vld [vmem:[#allocation7 + $0x70] sm:$0xff]
    %v2282 = vld [vmem:[#allocation7 + $0x78] sm:$0xff]
    %v2283 = vld [vmem:[#allocation7 + $0x80] sm:$0xff]
    %v2284 = vld [vmem:[#allocation7 + $0x88] sm:$0xff]
    %v2285 = vld [vmem:[#allocation7 + $0x90] sm:$0xff]
    %v2286 = vld [vmem:[#allocation7 + $0x98] sm:$0xff]
    %v2287 = vld [vmem:[#allocation7 + $0xa0] sm:$0xff]
    %v2288 = vld [vmem:[#allocation7 + $0xa8] sm:$0xff]
    %v2289 = vld [vmem:[#allocation7 + $0xb0] sm:$0xff]
    %v2290 = vld [vmem:[#allocation7 + $0xb8] sm:$0xff]
    %v2291 = vld [vmem:[#allocation7 + $0xc0] sm:$0xff]
    %v2292 = vld [vmem:[#allocation7 + $0xc8] sm:$0xff]
    %v2293 = vld [vmem:[#allocation7 + $0xd0] sm:$0xff]
    %v2294 = vld [vmem:[#allocation7 + $0xd8] sm:$0xff]
    %v2295 = vld [vmem:[#allocation7 + $0xe0] sm:$0xff]
    %v2296 = vld [vmem:[#allocation7 + $0xe8] sm:$0xff]
    %v2297 = vld [vmem:[#allocation7 + $0xf0] sm:$0xff]
    %v2298 = vld [vmem:[#allocation7 + $0xf8] sm:$0xff]
    %v2299 = vld [vmem:[#allocation7 + $0x100] sm:$0xff]
    %v2300 = vld [vmem:[#allocation7 + $0x108] sm:$0xff]
    %v2301 = vld [vmem:[#allocation7 + $0x110] sm:$0xff]
    %v2302 = vld [vmem:[#allocation7 + $0x118] sm:$0xff]
    %v2303 = vld [vmem:[#allocation7 + $0x120] sm:$0xff]
    %v2304 = vld [vmem:[#allocation7 + $0x128] sm:$0xff]
    %v2305 = vld [vmem:[#allocation7 + $0x130] sm:$0xff]
    %v2306 = vld [vmem:[#allocation7 + $0x138] sm:$0xff]
    %v2307 = vld [vmem:[#allocation7 + $0x140] sm:$0xff]
    %v2308 = vld [vmem:[#allocation7 + $0x148] sm:$0xff]
    %v2309 = vld [vmem:[#allocation7 + $0x150] sm:$0xff]
    %v2310 = vld [vmem:[#allocation7 + $0x158] sm:$0xff]
    %v2311 = vld [vmem:[#allocation7 + $0x160] sm:$0xff]
    %v2312 = vld [vmem:[#allocation7 + $0x168] sm:$0xff]
    %v2313 = vld [vmem:[#allocation7 + $0x170] sm:$0xff]
    %v2314 = vld [vmem:[#allocation7 + $0x178] sm:$0xff]
    %v2315 = vld [vmem:[#allocation7 + $0x180] sm:$0xff]
    %v2316 = vld [vmem:[#allocation7 + $0x188] sm:$0xff]
    %v2317 = vld [vmem:[#allocation7 + $0x190] sm:$0xff]
    %v2318 = vld [vmem:[#allocation7 + $0x198] sm:$0xff]
    %v2319 = vld [vmem:[#allocation7 + $0x1a0] sm:$0xff]
    %v2320 = vld [vmem:[#allocation7 + $0x1a8] sm:$0xff]
    %v2321 = vld [vmem:[#allocation7 + $0x1b0] sm:$0xff]
    %v2322 = vld [vmem:[#allocation7 + $0x1b8] sm:$0xff]
    %v2323 = vld [vmem:[#allocation7 + $0x1c0] sm:$0xff]
    %v2324 = vld [vmem:[#allocation7 + $0x1c8] sm:$0xff]
    %v2325 = vld [vmem:[#allocation7 + $0x1d0] sm:$0xff]
    %v2326 = vld [vmem:[#allocation7 + $0x1d8] sm:$0xff]
    %v2327 = vld [vmem:[#allocation7 + $0x1e0] sm:$0xff]
    %v2328 = vld [vmem:[#allocation7 + $0x1e8] sm:$0xff]
    %v2329 = vld [vmem:[#allocation7 + $0x1f0] sm:$0xff]
    %v2330 = vld [vmem:[#allocation7 + $0x1f8] sm:$0xff]
    %v2331 = vld [vmem:[#allocation7 + $0x200] sm:$0xff]
    %v2332 = vld [vmem:[#allocation7 + $0x208] sm:$0xff]
    %v2333 = vld [vmem:[#allocation7 + $0x210] sm:$0xff]
    %v2334 = vld [vmem:[#allocation7 + $0x218] sm:$0xff]
    %v2335 = vld [vmem:[#allocation7 + $0x220] sm:$0xff]
    %v2336 = vld [vmem:[#allocation7 + $0x228] sm:$0xff]
    %v2337 = vld [vmem:[#allocation7 + $0x230] sm:$0xff]
    %v2338 = vld [vmem:[#allocation7 + $0x238] sm:$0xff]
    %v2339 = vld [vmem:[#allocation7 + $0x240] sm:$0xff]
    %v2340 = vld [vmem:[#allocation7 + $0x248] sm:$0xff]
    %v2341 = vld [vmem:[#allocation7 + $0x250] sm:$0xff]
    %v2342 = vld [vmem:[#allocation7 + $0x258] sm:$0xff]
    %v2343 = vld [vmem:[#allocation7 + $0x260] sm:$0xff]
    %v2344 = vld [vmem:[#allocation7 + $0x268] sm:$0xff]
    %v2345 = vld [vmem:[#allocation7 + $0x270] sm:$0xff]
    %v2346 = vld [vmem:[#allocation7 + $0x278] sm:$0xff]
    %v2347 = vld [vmem:[#allocation7 + $0x280] sm:$0xff]
    %v2348 = vld [vmem:[#allocation7 + $0x288] sm:$0xff]
    %v2349 = vld [vmem:[#allocation7 + $0x290] sm:$0xff]
    %v2350 = vld [vmem:[#allocation7 + $0x298] sm:$0xff]
    %v2351 = vld [vmem:[#allocation7 + $0x2a0] sm:$0xff]
    %v2352 = vld [vmem:[#allocation7 + $0x2a8] sm:$0xff]
    %v2353 = vld [vmem:[#allocation7 + $0x2b0] sm:$0xff]
    %v2354 = vld [vmem:[#allocation7 + $0x2b8] sm:$0xff]
    %v2355 = vld [vmem:[#allocation7 + $0x2c0] sm:$0xff]
    %v2356 = vld [vmem:[#allocation7 + $0x2c8] sm:$0xff]
    %v2357 = vld [vmem:[#allocation7 + $0x2d0] sm:$0xff]
    %v2358 = vld [vmem:[#allocation7 + $0x2d8] sm:$0xff]
    %v2359 = vld [vmem:[#allocation7 + $0x2e0] sm:$0xff]
    %v2360 = vld [vmem:[#allocation7 + $0x2e8] sm:$0xff]
    %v2361 = vld [vmem:[#allocation7 + $0x2f0] sm:$0xff]
    %v2362 = vld [vmem:[#allocation7 + $0x2f8] sm:$0xff]
    %v2363 = vld [vmem:[#allocation7 + $0x300] sm:$0xff]
    %v2364 = vld [vmem:[#allocation7 + $0x308] sm:$0xff]
    %v2365 = vld [vmem:[#allocation7 + $0x310] sm:$0xff]
    %v2366 = vld [vmem:[#allocation7 + $0x318] sm:$0xff]
    %v2367 = vld [vmem:[#allocation7 + $0x320] sm:$0xff]
    %v2368 = vld [vmem:[#allocation7 + $0x328] sm:$0xff]
    %v2369 = vld [vmem:[#allocation7 + $0x330] sm:$0xff]
    %v2370 = vld [vmem:[#allocation7 + $0x338] sm:$0xff]
    %v2371 = vld [vmem:[#allocation7 + $0x340] sm:$0xff]
    %v2372 = vld [vmem:[#allocation7 + $0x348] sm:$0xff]
    %v2373 = vld [vmem:[#allocation7 + $0x350] sm:$0xff]
    %v2374 = vld [vmem:[#allocation7 + $0x358] sm:$0xff]
    %v2375 = vld [vmem:[#allocation7 + $0x360] sm:$0xff]
    %v2376 = vld [vmem:[#allocation7 + $0x368] sm:$0xff]
    %v2377 = vld [vmem:[#allocation7 + $0x370] sm:$0xff]
    %v2378 = vld [vmem:[#allocation7 + $0x378] sm:$0xff]
    %v2379 = vld [vmem:[#allocation7 + $0x380] sm:$0xff]
    %v2380 = vld [vmem:[#allocation7 + $0x388] sm:$0xff]
    %v2381 = vld [vmem:[#allocation7 + $0x390] sm:$0xff]
    %v2382 = vld [vmem:[#allocation7 + $0x398] sm:$0xff]
    %v2383 = vld [vmem:[#allocation7 + $0x3a0] sm:$0xff]
    %v2384 = vld [vmem:[#allocation7 + $0x3a8] sm:$0xff]
    %v2385 = vld [vmem:[#allocation7 + $0x3b0] sm:$0xff]
    %v2386 = vld [vmem:[#allocation7 + $0x3b8] sm:$0xff]
    %v2387 = vld [vmem:[#allocation7 + $0x3c0] sm:$0xff]
    %v2388 = vld [vmem:[#allocation7 + $0x3c8] sm:$0xff]
    %v2389 = vld [vmem:[#allocation7 + $0x3d0] sm:$0xff]
    %v2390 = vld [vmem:[#allocation7 + $0x3d8] sm:$0xff]
    %v2391 = vld [vmem:[#allocation7 + $0x3e0] sm:$0xff]
    %v2392 = vld [vmem:[#allocation7 + $0x3e8] sm:$0xff]
    %v2393 = vld [vmem:[#allocation7 + $0x3f0] sm:$0xff]
    %v2394 = vld [vmem:[#allocation7 + $0x3f8] sm:$0xff]
    %v2395 = vld [vmem:[%s8] sm:$0xf]
    %v2396 = vunpack.c.l.bf16 %v2395
    %v2398 = vlaneseq
    %v2399 = vshrl.u32 %v2398, 7
    %v2400 = vsub.s32 0, %v2399
    %v2401 = vrot.slane %v2396, %v2400
    %v2402 = vlaneseq
    %v2403 = vshrl.u32 %v2402, 7
    %v2404 = vsub.s32 2, %v2403
    %v2405 = vrot.slane %v2396, %v2404
    %v2406 = vlaneseq
    %v2407 = vshrl.u32 %v2406, 7
    %v2408 = vsub.s32 4, %v2407
    %v2409 = vrot.slane %v2396, %v2408
    %v2410 = vlaneseq
    %v2411 = vshrl.u32 %v2410, 7
    %v2412 = vsub.s32 6, %v2411
    %v2413 = vrot.slane %v2396, %v2412
    %v2418 = vlaneseq
    %v2419 = vshrl.u32 %v2418, 7
    %v2420 = vsub.s32 0, %v2419
    %v2421 = vrot.slane %v2401, %v2420
    %v2422 = vlaneseq
    %v2423 = vshrl.u32 %v2422, 7
    %v2424 = vsub.s32 0, %v2423
    %v2425 = vrot.slane %v2405, %v2424
    %v2426 = vlaneseq
    %v2427 = vshrl.u32 %v2426, 7
    %v2428 = vsub.s32 0, %v2427
    %v2429 = vrot.slane %v2409, %v2428
    %v2430 = vlaneseq
    %v2431 = vshrl.u32 %v2430, 7
    %v2432 = vsub.s32 0, %v2431
    %v2433 = vrot.slane %v2413, %v2432
    %v2562 = vunpack.c.l.b16 %v2267
    %v2563 = vunpack.c.h.b16 %v2267
    %v2564 = vunpack.c.l.b16 %v2268
    %v2565 = vunpack.c.h.b16 %v2268
    %v2566 = vunpack.c.l.b16 %v2269
    %v2567 = vunpack.c.h.b16 %v2269
    %v2568 = vunpack.c.l.b16 %v2270
    %v2569 = vunpack.c.h.b16 %v2270
    %v2570 = vunpack.c.l.b16 %v2271
    %v2571 = vunpack.c.h.b16 %v2271
    %v2572 = vunpack.c.l.b16 %v2272
    %v2573 = vunpack.c.h.b16 %v2272
    %v2574 = vunpack.c.l.b16 %v2273
    %v2575 = vunpack.c.h.b16 %v2273
    %v2576 = vunpack.c.l.b16 %v2274
    %v2577 = vunpack.c.h.b16 %v2274
    %v2578 = vunpack.c.l.b16 %v2275
    %v2579 = vunpack.c.h.b16 %v2275
    %v2580 = vunpack.c.l.b16 %v2276
    %v2581 = vunpack.c.h.b16 %v2276
    %v2582 = vunpack.c.l.b16 %v2277
    %v2583 = vunpack.c.h.b16 %v2277
    %v2584 = vunpack.c.l.b16 %v2278
    %v2585 = vunpack.c.h.b16 %v2278
    %v2586 = vunpack.c.l.b16 %v2279
    %v2587 = vunpack.c.h.b16 %v2279
    %v2588 = vunpack.c.l.b16 %v2280
    %v2589 = vunpack.c.h.b16 %v2280
    %v2590 = vunpack.c.l.b16 %v2281
    %v2591 = vunpack.c.h.b16 %v2281
    %v2592 = vunpack.c.l.b16 %v2282
    %v2593 = vunpack.c.h.b16 %v2282
    %v2594 = vunpack.c.l.b16 %v2283
    %v2595 = vunpack.c.h.b16 %v2283
    %v2596 = vunpack.c.l.b16 %v2284
    %v2597 = vunpack.c.h.b16 %v2284
    %v2598 = vunpack.c.l.b16 %v2285
    %v2599 = vunpack.c.h.b16 %v2285
    %v2600 = vunpack.c.l.b16 %v2286
    %v2601 = vunpack.c.h.b16 %v2286
    %v2602 = vunpack.c.l.b16 %v2287
    %v2603 = vunpack.c.h.b16 %v2287
    %v2604 = vunpack.c.l.b16 %v2288
    %v2605 = vunpack.c.h.b16 %v2288
    %v2606 = vunpack.c.l.b16 %v2289
    %v2607 = vunpack.c.h.b16 %v2289
    %v2608 = vunpack.c.l.b16 %v2290
    %v2609 = vunpack.c.h.b16 %v2290
    %v2610 = vunpack.c.l.b16 %v2291
    %v2611 = vunpack.c.h.b16 %v2291
    %v2612 = vunpack.c.l.b16 %v2292
    %v2613 = vunpack.c.h.b16 %v2292
    %v2614 = vunpack.c.l.b16 %v2293
    %v2615 = vunpack.c.h.b16 %v2293
    %v2616 = vunpack.c.l.b16 %v2294
    %v2617 = vunpack.c.h.b16 %v2294
    %v2618 = vunpack.c.l.b16 %v2295
    %v2619 = vunpack.c.h.b16 %v2295
    %v2620 = vunpack.c.l.b16 %v2296
    %v2621 = vunpack.c.h.b16 %v2296
    %v2622 = vunpack.c.l.b16 %v2297
    %v2623 = vunpack.c.h.b16 %v2297
    %v2624 = vunpack.c.l.b16 %v2298
    %v2625 = vunpack.c.h.b16 %v2298
    %v2626 = vunpack.c.l.b16 %v2299
    %v2627 = vunpack.c.h.b16 %v2299
    %v2628 = vunpack.c.l.b16 %v2300
    %v2629 = vunpack.c.h.b16 %v2300
    %v2630 = vunpack.c.l.b16 %v2301
    %v2631 = vunpack.c.h.b16 %v2301
    %v2632 = vunpack.c.l.b16 %v2302
    %v2633 = vunpack.c.h.b16 %v2302
    %v2634 = vunpack.c.l.b16 %v2303
    %v2635 = vunpack.c.h.b16 %v2303
    %v2636 = vunpack.c.l.b16 %v2304
    %v2637 = vunpack.c.h.b16 %v2304
    %v2638 = vunpack.c.l.b16 %v2305
    %v2639 = vunpack.c.h.b16 %v2305
    %v2640 = vunpack.c.l.b16 %v2306
    %v2641 = vunpack.c.h.b16 %v2306
    %v2642 = vunpack.c.l.b16 %v2307
    %v2643 = vunpack.c.h.b16 %v2307
    %v2644 = vunpack.c.l.b16 %v2308
    %v2645 = vunpack.c.h.b16 %v2308
    %v2646 = vunpack.c.l.b16 %v2309
    %v2647 = vunpack.c.h.b16 %v2309
    %v2648 = vunpack.c.l.b16 %v2310
    %v2649 = vunpack.c.h.b16 %v2310
    %v2650 = vunpack.c.l.b16 %v2311
    %v2651 = vunpack.c.h.b16 %v2311
    %v2652 = vunpack.c.l.b16 %v2312
    %v2653 = vunpack.c.h.b16 %v2312
    %v2654 = vunpack.c.l.b16 %v2313
    %v2655 = vunpack.c.h.b16 %v2313
    %v2656 = vunpack.c.l.b16 %v2314
    %v2657 = vunpack.c.h.b16 %v2314
    %v2658 = vunpack.c.l.b16 %v2315
    %v2659 = vunpack.c.h.b16 %v2315
    %v2660 = vunpack.c.l.b16 %v2316
    %v2661 = vunpack.c.h.b16 %v2316
    %v2662 = vunpack.c.l.b16 %v2317
    %v2663 = vunpack.c.h.b16 %v2317
    %v2664 = vunpack.c.l.b16 %v2318
    %v2665 = vunpack.c.h.b16 %v2318
    %v2666 = vunpack.c.l.b16 %v2319
    %v2667 = vunpack.c.h.b16 %v2319
    %v2668 = vunpack.c.l.b16 %v2320
    %v2669 = vunpack.c.h.b16 %v2320
    %v2670 = vunpack.c.l.b16 %v2321
    %v2671 = vunpack.c.h.b16 %v2321
    %v2672 = vunpack.c.l.b16 %v2322
    %v2673 = vunpack.c.h.b16 %v2322
    %v2674 = vunpack.c.l.b16 %v2323
    %v2675 = vunpack.c.h.b16 %v2323
    %v2676 = vunpack.c.l.b16 %v2324
    %v2677 = vunpack.c.h.b16 %v2324
    %v2678 = vunpack.c.l.b16 %v2325
    %v2679 = vunpack.c.h.b16 %v2325
    %v2680 = vunpack.c.l.b16 %v2326
    %v2681 = vunpack.c.h.b16 %v2326
    %v2682 = vunpack.c.l.b16 %v2327
    %v2683 = vunpack.c.h.b16 %v2327
    %v2684 = vunpack.c.l.b16 %v2328
    %v2685 = vunpack.c.h.b16 %v2328
    %v2686 = vunpack.c.l.b16 %v2329
    %v2687 = vunpack.c.h.b16 %v2329
    %v2688 = vunpack.c.l.b16 %v2330
    %v2689 = vunpack.c.h.b16 %v2330
    %v2690 = vunpack.c.l.b16 %v2331
    %v2691 = vunpack.c.h.b16 %v2331
    %v2692 = vunpack.c.l.b16 %v2332
    %v2693 = vunpack.c.h.b16 %v2332
    %v2694 = vunpack.c.l.b16 %v2333
    %v2695 = vunpack.c.h.b16 %v2333
    %v2696 = vunpack.c.l.b16 %v2334
    %v2697 = vunpack.c.h.b16 %v2334
    %v2698 = vunpack.c.l.b16 %v2335
    %v2699 = vunpack.c.h.b16 %v2335
    %v2700 = vunpack.c.l.b16 %v2336
    %v2701 = vunpack.c.h.b16 %v2336
    %v2702 = vunpack.c.l.b16 %v2337
    %v2703 = vunpack.c.h.b16 %v2337
    %v2704 = vunpack.c.l.b16 %v2338
    %v2705 = vunpack.c.h.b16 %v2338
    %v2706 = vunpack.c.l.b16 %v2339
    %v2707 = vunpack.c.h.b16 %v2339
    %v2708 = vunpack.c.l.b16 %v2340
    %v2709 = vunpack.c.h.b16 %v2340
    %v2710 = vunpack.c.l.b16 %v2341
    %v2711 = vunpack.c.h.b16 %v2341
    %v2712 = vunpack.c.l.b16 %v2342
    %v2713 = vunpack.c.h.b16 %v2342
    %v2714 = vunpack.c.l.b16 %v2343
    %v2715 = vunpack.c.h.b16 %v2343
    %v2716 = vunpack.c.l.b16 %v2344
    %v2717 = vunpack.c.h.b16 %v2344
    %v2718 = vunpack.c.l.b16 %v2345
    %v2719 = vunpack.c.h.b16 %v2345
    %v2720 = vunpack.c.l.b16 %v2346
    %v2721 = vunpack.c.h.b16 %v2346
    %v2722 = vunpack.c.l.b16 %v2347
    %v2723 = vunpack.c.h.b16 %v2347
    %v2724 = vunpack.c.l.b16 %v2348
    %v2725 = vunpack.c.h.b16 %v2348
    %v2726 = vunpack.c.l.b16 %v2349
    %v2727 = vunpack.c.h.b16 %v2349
    %v2728 = vunpack.c.l.b16 %v2350
    %v2729 = vunpack.c.h.b16 %v2350
    %v2730 = vunpack.c.l.b16 %v2351
    %v2731 = vunpack.c.h.b16 %v2351
    %v2732 = vunpack.c.l.b16 %v2352
    %v2733 = vunpack.c.h.b16 %v2352
    %v2734 = vunpack.c.l.b16 %v2353
    %v2735 = vunpack.c.h.b16 %v2353
    %v2736 = vunpack.c.l.b16 %v2354
    %v2737 = vunpack.c.h.b16 %v2354
    %v2738 = vunpack.c.l.b16 %v2355
    %v2739 = vunpack.c.h.b16 %v2355
    %v2740 = vunpack.c.l.b16 %v2356
    %v2741 = vunpack.c.h.b16 %v2356
    %v2742 = vunpack.c.l.b16 %v2357
    %v2743 = vunpack.c.h.b16 %v2357
    %v2744 = vunpack.c.l.b16 %v2358
    %v2745 = vunpack.c.h.b16 %v2358
    %v2746 = vunpack.c.l.b16 %v2359
    %v2747 = vunpack.c.h.b16 %v2359
    %v2748 = vunpack.c.l.b16 %v2360
    %v2749 = vunpack.c.h.b16 %v2360
    %v2750 = vunpack.c.l.b16 %v2361
    %v2751 = vunpack.c.h.b16 %v2361
    %v2752 = vunpack.c.l.b16 %v2362
    %v2753 = vunpack.c.h.b16 %v2362
    %v2754 = vunpack.c.l.b16 %v2363
    %v2755 = vunpack.c.h.b16 %v2363
    %v2756 = vunpack.c.l.b16 %v2364
    %v2757 = vunpack.c.h.b16 %v2364
    %v2758 = vunpack.c.l.b16 %v2365
    %v2759 = vunpack.c.h.b16 %v2365
    %v2760 = vunpack.c.l.b16 %v2366
    %v2761 = vunpack.c.h.b16 %v2366
    %v2762 = vunpack.c.l.b16 %v2367
    %v2763 = vunpack.c.h.b16 %v2367
    %v2764 = vunpack.c.l.b16 %v2368
    %v2765 = vunpack.c.h.b16 %v2368
    %v2766 = vunpack.c.l.b16 %v2369
    %v2767 = vunpack.c.h.b16 %v2369
    %v2768 = vunpack.c.l.b16 %v2370
    %v2769 = vunpack.c.h.b16 %v2370
    %v2770 = vunpack.c.l.b16 %v2371
    %v2771 = vunpack.c.h.b16 %v2371
    %v2772 = vunpack.c.l.b16 %v2372
    %v2773 = vunpack.c.h.b16 %v2372
    %v2774 = vunpack.c.l.b16 %v2373
    %v2775 = vunpack.c.h.b16 %v2373
    %v2776 = vunpack.c.l.b16 %v2374
    %v2777 = vunpack.c.h.b16 %v2374
    %v2778 = vunpack.c.l.b16 %v2375
    %v2779 = vunpack.c.h.b16 %v2375
    %v2780 = vunpack.c.l.b16 %v2376
    %v2781 = vunpack.c.h.b16 %v2376
    %v2782 = vunpack.c.l.b16 %v2377
    %v2783 = vunpack.c.h.b16 %v2377
    %v2784 = vunpack.c.l.b16 %v2378
    %v2785 = vunpack.c.h.b16 %v2378
    %v2786 = vunpack.c.l.b16 %v2379
    %v2787 = vunpack.c.h.b16 %v2379
    %v2788 = vunpack.c.l.b16 %v2380
    %v2789 = vunpack.c.h.b16 %v2380
    %v2790 = vunpack.c.l.b16 %v2381
    %v2791 = vunpack.c.h.b16 %v2381
    %v2792 = vunpack.c.l.b16 %v2382
    %v2793 = vunpack.c.h.b16 %v2382
    %v2794 = vunpack.c.l.b16 %v2383
    %v2795 = vunpack.c.h.b16 %v2383
    %v2796 = vunpack.c.l.b16 %v2384
    %v2797 = vunpack.c.h.b16 %v2384
    %v2798 = vunpack.c.l.b16 %v2385
    %v2799 = vunpack.c.h.b16 %v2385
    %v2800 = vunpack.c.l.b16 %v2386
    %v2801 = vunpack.c.h.b16 %v2386
    %v2802 = vunpack.c.l.b16 %v2387
    %v2803 = vunpack.c.h.b16 %v2387
    %v2804 = vunpack.c.l.b16 %v2388
    %v2805 = vunpack.c.h.b16 %v2388
    %v2806 = vunpack.c.l.b16 %v2389
    %v2807 = vunpack.c.h.b16 %v2389
    %v2808 = vunpack.c.l.b16 %v2390
    %v2809 = vunpack.c.h.b16 %v2390
    %v2810 = vunpack.c.l.b16 %v2391
    %v2811 = vunpack.c.h.b16 %v2391
    %v2812 = vunpack.c.l.b16 %v2392
    %v2813 = vunpack.c.h.b16 %v2392
    %v2814 = vunpack.c.l.b16 %v2393
    %v2815 = vunpack.c.h.b16 %v2393
    %v2816 = vunpack.c.l.b16 %v2394
    %v2817 = vunpack.c.h.b16 %v2394
    %v2818 = vpack.c.b16 %v2566, %v2562
    %v2819 = vpack.c.b16 %v2567, %v2563
    %v2820 = vpack.c.b16 %v2568, %v2564
    %v2821 = vpack.c.b16 %v2569, %v2565
    %v2822 = vpack.c.b16 %v2574, %v2570
    %v2823 = vpack.c.b16 %v2575, %v2571
    %v2824 = vpack.c.b16 %v2576, %v2572
    %v2825 = vpack.c.b16 %v2577, %v2573
    %v2826 = vpack.c.b16 %v2582, %v2578
    %v2827 = vpack.c.b16 %v2583, %v2579
    %v2828 = vpack.c.b16 %v2584, %v2580
    %v2829 = vpack.c.b16 %v2585, %v2581
    %v2830 = vpack.c.b16 %v2590, %v2586
    %v2831 = vpack.c.b16 %v2591, %v2587
    %v2832 = vpack.c.b16 %v2592, %v2588
    %v2833 = vpack.c.b16 %v2593, %v2589
    %v2834 = vpack.c.b16 %v2598, %v2594
    %v2835 = vpack.c.b16 %v2599, %v2595
    %v2836 = vpack.c.b16 %v2600, %v2596
    %v2837 = vpack.c.b16 %v2601, %v2597
    %v2838 = vpack.c.b16 %v2606, %v2602
    %v2839 = vpack.c.b16 %v2607, %v2603
    %v2840 = vpack.c.b16 %v2608, %v2604
    %v2841 = vpack.c.b16 %v2609, %v2605
    %v2842 = vpack.c.b16 %v2614, %v2610
    %v2843 = vpack.c.b16 %v2615, %v2611
    %v2844 = vpack.c.b16 %v2616, %v2612
    %v2845 = vpack.c.b16 %v2617, %v2613
    %v2846 = vpack.c.b16 %v2622, %v2618
    %v2847 = vpack.c.b16 %v2623, %v2619
    %v2848 = vpack.c.b16 %v2624, %v2620
    %v2849 = vpack.c.b16 %v2625, %v2621
    %v2850 = vpack.c.b16 %v2630, %v2626
    %v2851 = vpack.c.b16 %v2631, %v2627
    %v2852 = vpack.c.b16 %v2632, %v2628
    %v2853 = vpack.c.b16 %v2633, %v2629
    %v2854 = vpack.c.b16 %v2638, %v2634
    %v2855 = vpack.c.b16 %v2639, %v2635
    %v2856 = vpack.c.b16 %v2640, %v2636
    %v2857 = vpack.c.b16 %v2641, %v2637
    %v2858 = vpack.c.b16 %v2646, %v2642
    %v2859 = vpack.c.b16 %v2647, %v2643
    %v2860 = vpack.c.b16 %v2648, %v2644
    %v2861 = vpack.c.b16 %v2649, %v2645
    %v2862 = vpack.c.b16 %v2654, %v2650
    %v2863 = vpack.c.b16 %v2655, %v2651
    %v2864 = vpack.c.b16 %v2656, %v2652
    %v2865 = vpack.c.b16 %v2657, %v2653
    %v2866 = vpack.c.b16 %v2662, %v2658
    %v2867 = vpack.c.b16 %v2663, %v2659
    %v2868 = vpack.c.b16 %v2664, %v2660
    %v2869 = vpack.c.b16 %v2665, %v2661
    %v2870 = vpack.c.b16 %v2670, %v2666
    %v2871 = vpack.c.b16 %v2671, %v2667
    %v2872 = vpack.c.b16 %v2672, %v2668
    %v2873 = vpack.c.b16 %v2673, %v2669
    %v2874 = vpack.c.b16 %v2678, %v2674
    %v2875 = vpack.c.b16 %v2679, %v2675
    %v2876 = vpack.c.b16 %v2680, %v2676
    %v2877 = vpack.c.b16 %v2681, %v2677
    %v2878 = vpack.c.b16 %v2686, %v2682
    %v2879 = vpack.c.b16 %v2687, %v2683
    %v2880 = vpack.c.b16 %v2688, %v2684
    %v2881 = vpack.c.b16 %v2689, %v2685
    %v2882 = vpack.c.b16 %v2694, %v2690
    %v2883 = vpack.c.b16 %v2695, %v2691
    %v2884 = vpack.c.b16 %v2696, %v2692
    %v2885 = vpack.c.b16 %v2697, %v2693
    %v2886 = vpack.c.b16 %v2702, %v2698
    %v2887 = vpack.c.b16 %v2703, %v2699
    %v2888 = vpack.c.b16 %v2704, %v2700
    %v2889 = vpack.c.b16 %v2705, %v2701
    %v2890 = vpack.c.b16 %v2710, %v2706
    %v2891 = vpack.c.b16 %v2711, %v2707
    %v2892 = vpack.c.b16 %v2712, %v2708
    %v2893 = vpack.c.b16 %v2713, %v2709
    %v2894 = vpack.c.b16 %v2718, %v2714
    %v2895 = vpack.c.b16 %v2719, %v2715
    %v2896 = vpack.c.b16 %v2720, %v2716
    %v2897 = vpack.c.b16 %v2721, %v2717
    %v2898 = vpack.c.b16 %v2726, %v2722
    %v2899 = vpack.c.b16 %v2727, %v2723
    %v2900 = vpack.c.b16 %v2728, %v2724
    %v2901 = vpack.c.b16 %v2729, %v2725
    %v2902 = vpack.c.b16 %v2734, %v2730
    %v2903 = vpack.c.b16 %v2735, %v2731
    %v2904 = vpack.c.b16 %v2736, %v2732
    %v2905 = vpack.c.b16 %v2737, %v2733
    %v2906 = vpack.c.b16 %v2742, %v2738
    %v2907 = vpack.c.b16 %v2743, %v2739
    %v2908 = vpack.c.b16 %v2744, %v2740
    %v2909 = vpack.c.b16 %v2745, %v2741
    %v2910 = vpack.c.b16 %v2750, %v2746
    %v2911 = vpack.c.b16 %v2751, %v2747
    %v2912 = vpack.c.b16 %v2752, %v2748
    %v2913 = vpack.c.b16 %v2753, %v2749
    %v2914 = vpack.c.b16 %v2758, %v2754
    %v2915 = vpack.c.b16 %v2759, %v2755
    %v2916 = vpack.c.b16 %v2760, %v2756
    %v2917 = vpack.c.b16 %v2761, %v2757
    %v2918 = vpack.c.b16 %v2766, %v2762
    %v2919 = vpack.c.b16 %v2767, %v2763
    %v2920 = vpack.c.b16 %v2768, %v2764
    %v2921 = vpack.c.b16 %v2769, %v2765
    %v2922 = vpack.c.b16 %v2774, %v2770
    %v2923 = vpack.c.b16 %v2775, %v2771
    %v2924 = vpack.c.b16 %v2776, %v2772
    %v2925 = vpack.c.b16 %v2777, %v2773
    %v2926 = vpack.c.b16 %v2782, %v2778
    %v2927 = vpack.c.b16 %v2783, %v2779
    %v2928 = vpack.c.b16 %v2784, %v2780
    %v2929 = vpack.c.b16 %v2785, %v2781
    %v2930 = vpack.c.b16 %v2790, %v2786
    %v2931 = vpack.c.b16 %v2791, %v2787
    %v2932 = vpack.c.b16 %v2792, %v2788
    %v2933 = vpack.c.b16 %v2793, %v2789
    %v2934 = vpack.c.b16 %v2798, %v2794
    %v2935 = vpack.c.b16 %v2799, %v2795
    %v2936 = vpack.c.b16 %v2800, %v2796
    %v2937 = vpack.c.b16 %v2801, %v2797
    %v2938 = vpack.c.b16 %v2806, %v2802
    %v2939 = vpack.c.b16 %v2807, %v2803
    %v2940 = vpack.c.b16 %v2808, %v2804
    %v2941 = vpack.c.b16 %v2809, %v2805
    %v2942 = vpack.c.b16 %v2814, %v2810
    %v2943 = vpack.c.b16 %v2815, %v2811
    %v2944 = vpack.c.b16 %v2816, %v2812
    %v2945 = vpack.c.b16 %v2817, %v2813
    %3074 = vmatprep.subr.bf16.mxu0 %v2847
    %3075 = vmatpush1.bf16.msra.mxu0 %v2846
    %3076 = vmatprep.subr.bf16.mxu0 %v2843
    %3077 = vmatpush1.bf16.msra.mxu0 %v2842
    %3078 = vmatprep.subr.bf16.mxu0 %v2839
    %3079 = vmatpush1.bf16.msra.mxu0 %v2838
    %3080 = vmatprep.subr.bf16.mxu0 %v2835
    %3081 = vmatpush1.bf16.msra.mxu0 %v2834
    %3082 = vmatprep.subr.bf16.mxu0 %v2831
    %3083 = vmatpush1.bf16.msra.mxu0 %v2830
    %3084 = vmatprep.subr.bf16.mxu0 %v2827
    %3085 = vmatpush1.bf16.msra.mxu0 %v2826
    %3086 = vmatprep.subr.bf16.mxu0 %v2823
    %3087 = vmatpush1.bf16.msra.mxu0 %v2822
    %3088 = vmatprep.subr.bf16.mxu0 %v2819
    %3089 = vmatpush1.bf16.msra.mxu0 %v2818
    %3090 = vmatprep.subr.bf16.mxu0 %v2879
    %3091 = vmatpush2.bf16.msra.mxu0 %v2878
    %3092 = vmatprep.subr.bf16.mxu0 %v2875
    %3093 = vmatpush2.bf16.msra.mxu0 %v2874
    %3094 = vmatprep.subr.bf16.mxu0 %v2871
    %3095 = vmatpush2.bf16.msra.mxu0 %v2870
    %3096 = vmatprep.subr.bf16.mxu0 %v2867
    %3097 = vmatpush2.bf16.msra.mxu0 %v2866
    %3098 = vmatprep.subr.bf16.mxu0 %v2863
    %3099 = vmatpush2.bf16.msra.mxu0 %v2862
    %3100 = vmatprep.subr.bf16.mxu0 %v2859
    %3101 = vmatpush2.bf16.msra.mxu0 %v2858
    %3102 = vmatprep.subr.bf16.mxu0 %v2855
    %3103 = vmatpush2.bf16.msra.mxu0 %v2854
    %3104 = vmatprep.subr.bf16.mxu0 %v2851
    %3105 = vmatpush2.bf16.msra.mxu0 %v2850
    %3106 = vmatprep.mubr.bf16.mxu0 %v2264
    %3107 = vmatmul.mubr.bf16.gmra.mxu0 %v2263
    %v3108 = vpop.f32.mrf.mxu0
    %v3109 = vadd.f32 %v2421, %v3108
    %v3110 = vpop.f32.mrf.mxu0
    %v3111 = vadd.f32 %v2425, %v3110
    %v3112 = vpop.f32.mrf.mxu0
    %v3113 = vpop.f32.mrf.mxu0
    %3114 = vdwg.mxu0
    %3115 = vmatprep.subr.bf16.mxu0 %v2911
    %3116 = vmatpush1.bf16.msra.mxu0 %v2910
    %3117 = vmatprep.subr.bf16.mxu0 %v2907
    %3118 = vmatpush1.bf16.msra.mxu0 %v2906
    %3119 = vmatprep.subr.bf16.mxu0 %v2903
    %3120 = vmatpush1.bf16.msra.mxu0 %v2902
    %3121 = vmatprep.subr.bf16.mxu0 %v2899
    %3122 = vmatpush1.bf16.msra.mxu0 %v2898
    %3123 = vmatprep.subr.bf16.mxu0 %v2895
    %3124 = vmatpush1.bf16.msra.mxu0 %v2894
    %3125 = vmatprep.subr.bf16.mxu0 %v2891
    %3126 = vmatpush1.bf16.msra.mxu0 %v2890
    %3127 = vmatprep.subr.bf16.mxu0 %v2887
    %3128 = vmatpush1.bf16.msra.mxu0 %v2886
    %3129 = vmatprep.subr.bf16.mxu0 %v2883
    %3130 = vmatpush1.bf16.msra.mxu0 %v2882
    %3131 = vmatprep.subr.bf16.mxu0 %v2943
    %3132 = vmatpush2.bf16.msra.mxu0 %v2942
    %3133 = vmatprep.subr.bf16.mxu0 %v2939
    %3134 = vmatpush2.bf16.msra.mxu0 %v2938
    %3135 = vmatprep.subr.bf16.mxu0 %v2935
    %3136 = vmatpush2.bf16.msra.mxu0 %v2934
    %3137 = vmatprep.subr.bf16.mxu0 %v2931
    %3138 = vmatpush2.bf16.msra.mxu0 %v2930
    %3139 = vmatprep.subr.bf16.mxu0 %v2927
    %3140 = vmatpush2.bf16.msra.mxu0 %v2926
    %3141 = vmatprep.subr.bf16.mxu0 %v2923
    %3142 = vmatpush2.bf16.msra.mxu0 %v2922
    %3143 = vmatprep.subr.bf16.mxu0 %v2919
    %3144 = vmatpush2.bf16.msra.mxu0 %v2918
    %3145 = vmatprep.subr.bf16.mxu0 %v2915
    %3146 = vmatpush2.bf16.msra.mxu0 %v2914
    %3147 = vmatprep.mubr.bf16.mxu0 %v2266
    %3148 = vmatmul.mubr.bf16.gmra.mxu0 %v2265
    %v3149 = vpop.f32.mrf.mxu0
    %v3150 = vadd.f32 %v3109, %v3149
    %v3151 = vpop.f32.mrf.mxu0
    %v3152 = vadd.f32 %v3111, %v3151
    %v3153 = vpop.f32.mrf.mxu0
    %v3154 = vpop.f32.mrf.mxu0
    %3155 = vdwg.mxu0
    %3156 = vmatprep.subr.bf16.mxu0 %v2849
    %3157 = vmatpush1.bf16.msra.mxu0 %v2848
    %3158 = vmatprep.subr.bf16.mxu0 %v2845
    %3159 = vmatpush1.bf16.msra.mxu0 %v2844
    %3160 = vmatprep.subr.bf16.mxu0 %v2841
    %3161 = vmatpush1.bf16.msra.mxu0 %v2840
    %3162 = vmatprep.subr.bf16.mxu0 %v2837
    %3163 = vmatpush1.bf16.msra.mxu0 %v2836
    %3164 = vmatprep.subr.bf16.mxu0 %v2833
    %3165 = vmatpush1.bf16.msra.mxu0 %v2832
    %3166 = vmatprep.subr.bf16.mxu0 %v2829
    %3167 = vmatpush1.bf16.msra.mxu0 %v2828
    %3168 = vmatprep.subr.bf16.mxu0 %v2825
    %3169 = vmatpush1.bf16.msra.mxu0 %v2824
    %3170 = vmatprep.subr.bf16.mxu0 %v2821
    %3171 = vmatpush1.bf16.msra.mxu0 %v2820
    %3172 = vmatprep.subr.bf16.mxu0 %v2881
    %3173 = vmatpush2.bf16.msra.mxu0 %v2880
    %3174 = vmatprep.subr.bf16.mxu0 %v2877
    %3175 = vmatpush2.bf16.msra.mxu0 %v2876
    %3176 = vmatprep.subr.bf16.mxu0 %v2873
    %3177 = vmatpush2.bf16.msra.mxu0 %v2872
    %3178 = vmatprep.subr.bf16.mxu0 %v2869
    %3179 = vmatpush2.bf16.msra.mxu0 %v2868
    %3180 = vmatprep.subr.bf16.mxu0 %v2865
    %3181 = vmatpush2.bf16.msra.mxu0 %v2864
    %3182 = vmatprep.subr.bf16.mxu0 %v2861
    %3183 = vmatpush2.bf16.msra.mxu0 %v2860
    %3184 = vmatprep.subr.bf16.mxu0 %v2857
    %3185 = vmatpush2.bf16.msra.mxu0 %v2856
    %3186 = vmatprep.subr.bf16.mxu0 %v2853
    %3187 = vmatpush2.bf16.msra.mxu0 %v2852
    %3188 = vmatprep.mubr.bf16.mxu0 %v2264
    %3189 = vmatmul.mubr.bf16.gmra.mxu0 %v2263
    %v3190 = vpop.f32.mrf.mxu0
    %v3191 = vadd.f32 %v2429, %v3190
    %v3192 = vpop.f32.mrf.mxu0
    %v3193 = vadd.f32 %v2433, %v3192
    %v3194 = vpop.f32.mrf.mxu0
    %v3195 = vpop.f32.mrf.mxu0
    %3196 = vdwg.mxu0
    %3197 = vmatprep.subr.bf16.mxu0 %v2913
    %3198 = vmatpush1.bf16.msra.mxu0 %v2912
    %3199 = vmatprep.subr.bf16.mxu0 %v2909
    %3200 = vmatpush1.bf16.msra.mxu0 %v2908
    %3201 = vmatprep.subr.bf16.mxu0 %v2905
    %3202 = vmatpush1.bf16.msra.mxu0 %v2904
    %3203 = vmatprep.subr.bf16.mxu0 %v2901
    %3204 = vmatpush1.bf16.msra.mxu0 %v2900
    %3205 = vmatprep.subr.bf16.mxu0 %v2897
    %3206 = vmatpush1.bf16.msra.mxu0 %v2896
    %3207 = vmatprep.subr.bf16.mxu0 %v2893
    %3208 = vmatpush1.bf16.msra.mxu0 %v2892
    %3209 = vmatprep.subr.bf16.mxu0 %v2889
    %3210 = vmatpush1.bf16.msra.mxu0 %v2888
    %3211 = vmatprep.subr.bf16.mxu0 %v2885
    %3212 = vmatpush1.bf16.msra.mxu0 %v2884
    %3213 = vmatprep.subr.bf16.mxu0 %v2945
    %3214 = vmatpush2.bf16.msra.mxu0 %v2944
    %3215 = vmatprep.subr.bf16.mxu0 %v2941
    %3216 = vmatpush2.bf16.msra.mxu0 %v2940
    %3217 = vmatprep.subr.bf16.mxu0 %v2937
    %3218 = vmatpush2.bf16.msra.mxu0 %v2936
    %3219 = vmatprep.subr.bf16.mxu0 %v2933
    %3220 = vmatpush2.bf16.msra.mxu0 %v2932
    %3221 = vmatprep.subr.bf16.mxu0 %v2929
    %3222 = vmatpush2.bf16.msra.mxu0 %v2928
    %3223 = vmatprep.subr.bf16.mxu0 %v2925
    %3224 = vmatpush2.bf16.msra.mxu0 %v2924
    %3225 = vmatprep.subr.bf16.mxu0 %v2921
    %3226 = vmatpush2.bf16.msra.mxu0 %v2920
    %3227 = vmatprep.subr.bf16.mxu0 %v2917
    %3228 = vmatpush2.bf16.msra.mxu0 %v2916
    %3229 = vmatprep.mubr.bf16.mxu0 %v2266
    %3230 = vmatmul.mubr.bf16.gmra.mxu0 %v2265
    %v3231 = vpop.f32.mrf.mxu0
    %v3232 = vadd.f32 %v3191, %v3231
    %v3233 = vpop.f32.mrf.mxu0
    %v3234 = vadd.f32 %v3193, %v3233
    %v3235 = vpop.f32.mrf.mxu0
    %v3236 = vpop.f32.mrf.mxu0
    %3237 = vdwg.mxu0
    %v3238 = vmax.f32 %v3150, 0.0
    %v3239 = vmax.f32 %v3152, 0.0
    %v3240 = vmax.f32 %v3232, 0.0
    %v3241 = vmax.f32 %v3234, 0.0
    %v3242 = vpack.c.bf16 %v3238, %v3238
    %v3243 = vpack.c.bf16 %v3239, %v3239
    %v3244 = vpack.c.bf16 %v3240, %v3240
    %v3245 = vpack.c.bf16 %v3241, %v3241
    %v3246 = vld [vmem:[#allocation9] sm:$0xff]
    %v3247 = vld [vmem:[#allocation9 + $0x8] sm:$0xff]
    %v3248 = vld [vmem:[#allocation9 + $0x10] sm:$0xff]
    %v3249 = vld [vmem:[#allocation9 + $0x18] sm:$0xff]
    %v3250 = vld [vmem:[#allocation9 + $0x20] sm:$0xff]
    %v3251 = vld [vmem:[#allocation9 + $0x28] sm:$0xff]
    %v3252 = vld [vmem:[#allocation9 + $0x30] sm:$0xff]
    %v3253 = vld [vmem:[#allocation9 + $0x38] sm:$0xff]
    %v3254 = vld [vmem:[#allocation9 + $0x40] sm:$0xff]
    %v3255 = vld [vmem:[#allocation9 + $0x48] sm:$0xff]
    %v3256 = vld [vmem:[#allocation9 + $0x50] sm:$0xff]
    %v3257 = vld [vmem:[#allocation9 + $0x58] sm:$0xff]
    %v3258 = vld [vmem:[#allocation9 + $0x60] sm:$0xff]
    %v3259 = vld [vmem:[#allocation9 + $0x68] sm:$0xff]
    %v3260 = vld [vmem:[#allocation9 + $0x70] sm:$0xff]
    %v3261 = vld [vmem:[#allocation9 + $0x78] sm:$0xff]
    %v3262 = vld [vmem:[#allocation9 + $0x80] sm:$0xff]
    %v3263 = vld [vmem:[#allocation9 + $0x88] sm:$0xff]
    %v3264 = vld [vmem:[#allocation9 + $0x90] sm:$0xff]
    %v3265 = vld [vmem:[#allocation9 + $0x98] sm:$0xff]
    %v3266 = vld [vmem:[#allocation9 + $0xa0] sm:$0xff]
    %v3267 = vld [vmem:[#allocation9 + $0xa8] sm:$0xff]
    %v3268 = vld [vmem:[#allocation9 + $0xb0] sm:$0xff]
    %v3269 = vld [vmem:[#allocation9 + $0xb8] sm:$0xff]
    %v3270 = vld [vmem:[#allocation9 + $0xc0] sm:$0xff]
    %v3271 = vld [vmem:[#allocation9 + $0xc8] sm:$0xff]
    %v3272 = vld [vmem:[#allocation9 + $0xd0] sm:$0xff]
    %v3273 = vld [vmem:[#allocation9 + $0xd8] sm:$0xff]
    %v3274 = vld [vmem:[#allocation9 + $0xe0] sm:$0xff]
    %v3275 = vld [vmem:[#allocation9 + $0xe8] sm:$0xff]
    %v3276 = vld [vmem:[#allocation9 + $0xf0] sm:$0xff]
    %v3277 = vld [vmem:[#allocation9 + $0xf8] sm:$0xff]
    %v3278 = vld [vmem:[#allocation9 + $0x100] sm:$0xff]
    %v3279 = vld [vmem:[#allocation9 + $0x108] sm:$0xff]
    %v3280 = vld [vmem:[#allocation9 + $0x110] sm:$0xff]
    %v3281 = vld [vmem:[#allocation9 + $0x118] sm:$0xff]
    %v3282 = vld [vmem:[#allocation9 + $0x120] sm:$0xff]
    %v3283 = vld [vmem:[#allocation9 + $0x128] sm:$0xff]
    %v3284 = vld [vmem:[#allocation9 + $0x130] sm:$0xff]
    %v3285 = vld [vmem:[#allocation9 + $0x138] sm:$0xff]
    %v3286 = vld [vmem:[#allocation9 + $0x140] sm:$0xff]
    %v3287 = vld [vmem:[#allocation9 + $0x148] sm:$0xff]
    %v3288 = vld [vmem:[#allocation9 + $0x150] sm:$0xff]
    %v3289 = vld [vmem:[#allocation9 + $0x158] sm:$0xff]
    %v3290 = vld [vmem:[#allocation9 + $0x160] sm:$0xff]
    %v3291 = vld [vmem:[#allocation9 + $0x168] sm:$0xff]
    %v3292 = vld [vmem:[#allocation9 + $0x170] sm:$0xff]
    %v3293 = vld [vmem:[#allocation9 + $0x178] sm:$0xff]
    %v3294 = vld [vmem:[#allocation9 + $0x180] sm:$0xff]
    %v3295 = vld [vmem:[#allocation9 + $0x188] sm:$0xff]
    %v3296 = vld [vmem:[#allocation9 + $0x190] sm:$0xff]
    %v3297 = vld [vmem:[#allocation9 + $0x198] sm:$0xff]
    %v3298 = vld [vmem:[#allocation9 + $0x1a0] sm:$0xff]
    %v3299 = vld [vmem:[#allocation9 + $0x1a8] sm:$0xff]
    %v3300 = vld [vmem:[#allocation9 + $0x1b0] sm:$0xff]
    %v3301 = vld [vmem:[#allocation9 + $0x1b8] sm:$0xff]
    %v3302 = vld [vmem:[#allocation9 + $0x1c0] sm:$0xff]
    %v3303 = vld [vmem:[#allocation9 + $0x1c8] sm:$0xff]
    %v3304 = vld [vmem:[#allocation9 + $0x1d0] sm:$0xff]
    %v3305 = vld [vmem:[#allocation9 + $0x1d8] sm:$0xff]
    %v3306 = vld [vmem:[#allocation9 + $0x1e0] sm:$0xff]
    %v3307 = vld [vmem:[#allocation9 + $0x1e8] sm:$0xff]
    %v3308 = vld [vmem:[#allocation9 + $0x1f0] sm:$0xff]
    %v3309 = vld [vmem:[#allocation9 + $0x1f8] sm:$0xff]
    %v3310 = vld [vmem:[#allocation9 + $0x200] sm:$0xff]
    %v3311 = vld [vmem:[#allocation9 + $0x208] sm:$0xff]
    %v3312 = vld [vmem:[#allocation9 + $0x210] sm:$0xff]
    %v3313 = vld [vmem:[#allocation9 + $0x218] sm:$0xff]
    %v3314 = vld [vmem:[#allocation9 + $0x220] sm:$0xff]
    %v3315 = vld [vmem:[#allocation9 + $0x228] sm:$0xff]
    %v3316 = vld [vmem:[#allocation9 + $0x230] sm:$0xff]
    %v3317 = vld [vmem:[#allocation9 + $0x238] sm:$0xff]
    %v3318 = vld [vmem:[#allocation9 + $0x240] sm:$0xff]
    %v3319 = vld [vmem:[#allocation9 + $0x248] sm:$0xff]
    %v3320 = vld [vmem:[#allocation9 + $0x250] sm:$0xff]
    %v3321 = vld [vmem:[#allocation9 + $0x258] sm:$0xff]
    %v3322 = vld [vmem:[#allocation9 + $0x260] sm:$0xff]
    %v3323 = vld [vmem:[#allocation9 + $0x268] sm:$0xff]
    %v3324 = vld [vmem:[#allocation9 + $0x270] sm:$0xff]
    %v3325 = vld [vmem:[#allocation9 + $0x278] sm:$0xff]
    %v3326 = vld [vmem:[#allocation9 + $0x280] sm:$0xff]
    %v3327 = vld [vmem:[#allocation9 + $0x288] sm:$0xff]
    %v3328 = vld [vmem:[#allocation9 + $0x290] sm:$0xff]
    %v3329 = vld [vmem:[#allocation9 + $0x298] sm:$0xff]
    %v3330 = vld [vmem:[#allocation9 + $0x2a0] sm:$0xff]
    %v3331 = vld [vmem:[#allocation9 + $0x2a8] sm:$0xff]
    %v3332 = vld [vmem:[#allocation9 + $0x2b0] sm:$0xff]
    %v3333 = vld [vmem:[#allocation9 + $0x2b8] sm:$0xff]
    %v3334 = vld [vmem:[#allocation9 + $0x2c0] sm:$0xff]
    %v3335 = vld [vmem:[#allocation9 + $0x2c8] sm:$0xff]
    %v3336 = vld [vmem:[#allocation9 + $0x2d0] sm:$0xff]
    %v3337 = vld [vmem:[#allocation9 + $0x2d8] sm:$0xff]
    %v3338 = vld [vmem:[#allocation9 + $0x2e0] sm:$0xff]
    %v3339 = vld [vmem:[#allocation9 + $0x2e8] sm:$0xff]
    %v3340 = vld [vmem:[#allocation9 + $0x2f0] sm:$0xff]
    %v3341 = vld [vmem:[#allocation9 + $0x2f8] sm:$0xff]
    %v3342 = vld [vmem:[#allocation9 + $0x300] sm:$0xff]
    %v3343 = vld [vmem:[#allocation9 + $0x308] sm:$0xff]
    %v3344 = vld [vmem:[#allocation9 + $0x310] sm:$0xff]
    %v3345 = vld [vmem:[#allocation9 + $0x318] sm:$0xff]
    %v3346 = vld [vmem:[#allocation9 + $0x320] sm:$0xff]
    %v3347 = vld [vmem:[#allocation9 + $0x328] sm:$0xff]
    %v3348 = vld [vmem:[#allocation9 + $0x330] sm:$0xff]
    %v3349 = vld [vmem:[#allocation9 + $0x338] sm:$0xff]
    %v3350 = vld [vmem:[#allocation9 + $0x340] sm:$0xff]
    %v3351 = vld [vmem:[#allocation9 + $0x348] sm:$0xff]
    %v3352 = vld [vmem:[#allocation9 + $0x350] sm:$0xff]
    %v3353 = vld [vmem:[#allocation9 + $0x358] sm:$0xff]
    %v3354 = vld [vmem:[#allocation9 + $0x360] sm:$0xff]
    %v3355 = vld [vmem:[#allocation9 + $0x368] sm:$0xff]
    %v3356 = vld [vmem:[#allocation9 + $0x370] sm:$0xff]
    %v3357 = vld [vmem:[#allocation9 + $0x378] sm:$0xff]
    %v3358 = vld [vmem:[#allocation9 + $0x380] sm:$0xff]
    %v3359 = vld [vmem:[#allocation9 + $0x388] sm:$0xff]
    %v3360 = vld [vmem:[#allocation9 + $0x390] sm:$0xff]
    %v3361 = vld [vmem:[#allocation9 + $0x398] sm:$0xff]
    %v3362 = vld [vmem:[#allocation9 + $0x3a0] sm:$0xff]
    %v3363 = vld [vmem:[#allocation9 + $0x3a8] sm:$0xff]
    %v3364 = vld [vmem:[#allocation9 + $0x3b0] sm:$0xff]
    %v3365 = vld [vmem:[#allocation9 + $0x3b8] sm:$0xff]
    %v3366 = vld [vmem:[#allocation9 + $0x3c0] sm:$0xff]
    %v3367 = vld [vmem:[#allocation9 + $0x3c8] sm:$0xff]
    %v3368 = vld [vmem:[#allocation9 + $0x3d0] sm:$0xff]
    %v3369 = vld [vmem:[#allocation9 + $0x3d8] sm:$0xff]
    %v3370 = vld [vmem:[#allocation9 + $0x3e0] sm:$0xff]
    %v3371 = vld [vmem:[#allocation9 + $0x3e8] sm:$0xff]
    %v3372 = vld [vmem:[#allocation9 + $0x3f0] sm:$0xff]
    %v3373 = vld [vmem:[#allocation9 + $0x3f8] sm:$0xff]
    %v3374 = vld [vmem:[%s10] sm:$0xf]
    %v3375 = vunpack.c.l.bf16 %v3374
    %v3377 = vlaneseq
    %v3378 = vshrl.u32 %v3377, 7
    %v3379 = vsub.s32 0, %v3378
    %v3380 = vrot.slane %v3375, %v3379
    %v3381 = vlaneseq
    %v3382 = vshrl.u32 %v3381, 7
    %v3383 = vsub.s32 2, %v3382
    %v3384 = vrot.slane %v3375, %v3383
    %v3385 = vlaneseq
    %v3386 = vshrl.u32 %v3385, 7
    %v3387 = vsub.s32 4, %v3386
    %v3388 = vrot.slane %v3375, %v3387
    %v3389 = vlaneseq
    %v3390 = vshrl.u32 %v3389, 7
    %v3391 = vsub.s32 6, %v3390
    %v3392 = vrot.slane %v3375, %v3391
    %v3397 = vlaneseq
    %v3398 = vshrl.u32 %v3397, 7
    %v3399 = vsub.s32 0, %v3398
    %v3400 = vrot.slane %v3380, %v3399
    %v3401 = vlaneseq
    %v3402 = vshrl.u32 %v3401, 7
    %v3403 = vsub.s32 0, %v3402
    %v3404 = vrot.slane %v3384, %v3403
    %v3405 = vlaneseq
    %v3406 = vshrl.u32 %v3405, 7
    %v3407 = vsub.s32 0, %v3406
    %v3408 = vrot.slane %v3388, %v3407
    %v3409 = vlaneseq
    %v3410 = vshrl.u32 %v3409, 7
    %v3411 = vsub.s32 0, %v3410
    %v3412 = vrot.slane %v3392, %v3411
    %v3541 = vunpack.c.l.b16 %v3246
    %v3542 = vunpack.c.h.b16 %v3246
    %v3543 = vunpack.c.l.b16 %v3247
    %v3544 = vunpack.c.h.b16 %v3247
    %v3545 = vunpack.c.l.b16 %v3248
    %v3546 = vunpack.c.h.b16 %v3248
    %v3547 = vunpack.c.l.b16 %v3249
    %v3548 = vunpack.c.h.b16 %v3249
    %v3549 = vunpack.c.l.b16 %v3250
    %v3550 = vunpack.c.h.b16 %v3250
    %v3551 = vunpack.c.l.b16 %v3251
    %v3552 = vunpack.c.h.b16 %v3251
    %v3553 = vunpack.c.l.b16 %v3252
    %v3554 = vunpack.c.h.b16 %v3252
    %v3555 = vunpack.c.l.b16 %v3253
    %v3556 = vunpack.c.h.b16 %v3253
    %v3557 = vunpack.c.l.b16 %v3254
    %v3558 = vunpack.c.h.b16 %v3254
    %v3559 = vunpack.c.l.b16 %v3255
    %v3560 = vunpack.c.h.b16 %v3255
    %v3561 = vunpack.c.l.b16 %v3256
    %v3562 = vunpack.c.h.b16 %v3256
    %v3563 = vunpack.c.l.b16 %v3257
    %v3564 = vunpack.c.h.b16 %v3257
    %v3565 = vunpack.c.l.b16 %v3258
    %v3566 = vunpack.c.h.b16 %v3258
    %v3567 = vunpack.c.l.b16 %v3259
    %v3568 = vunpack.c.h.b16 %v3259
    %v3569 = vunpack.c.l.b16 %v3260
    %v3570 = vunpack.c.h.b16 %v3260
    %v3571 = vunpack.c.l.b16 %v3261
    %v3572 = vunpack.c.h.b16 %v3261
    %v3573 = vunpack.c.l.b16 %v3262
    %v3574 = vunpack.c.h.b16 %v3262
    %v3575 = vunpack.c.l.b16 %v3263
    %v3576 = vunpack.c.h.b16 %v3263
    %v3577 = vunpack.c.l.b16 %v3264
    %v3578 = vunpack.c.h.b16 %v3264
    %v3579 = vunpack.c.l.b16 %v3265
    %v3580 = vunpack.c.h.b16 %v3265
    %v3581 = vunpack.c.l.b16 %v3266
    %v3582 = vunpack.c.h.b16 %v3266
    %v3583 = vunpack.c.l.b16 %v3267
    %v3584 = vunpack.c.h.b16 %v3267
    %v3585 = vunpack.c.l.b16 %v3268
    %v3586 = vunpack.c.h.b16 %v3268
    %v3587 = vunpack.c.l.b16 %v3269
    %v3588 = vunpack.c.h.b16 %v3269
    %v3589 = vunpack.c.l.b16 %v3270
    %v3590 = vunpack.c.h.b16 %v3270
    %v3591 = vunpack.c.l.b16 %v3271
    %v3592 = vunpack.c.h.b16 %v3271
    %v3593 = vunpack.c.l.b16 %v3272
    %v3594 = vunpack.c.h.b16 %v3272
    %v3595 = vunpack.c.l.b16 %v3273
    %v3596 = vunpack.c.h.b16 %v3273
    %v3597 = vunpack.c.l.b16 %v3274
    %v3598 = vunpack.c.h.b16 %v3274
    %v3599 = vunpack.c.l.b16 %v3275
    %v3600 = vunpack.c.h.b16 %v3275
    %v3601 = vunpack.c.l.b16 %v3276
    %v3602 = vunpack.c.h.b16 %v3276
    %v3603 = vunpack.c.l.b16 %v3277
    %v3604 = vunpack.c.h.b16 %v3277
    %v3605 = vunpack.c.l.b16 %v3278
    %v3606 = vunpack.c.h.b16 %v3278
    %v3607 = vunpack.c.l.b16 %v3279
    %v3608 = vunpack.c.h.b16 %v3279
    %v3609 = vunpack.c.l.b16 %v3280
    %v3610 = vunpack.c.h.b16 %v3280
    %v3611 = vunpack.c.l.b16 %v3281
    %v3612 = vunpack.c.h.b16 %v3281
    %v3613 = vunpack.c.l.b16 %v3282
    %v3614 = vunpack.c.h.b16 %v3282
    %v3615 = vunpack.c.l.b16 %v3283
    %v3616 = vunpack.c.h.b16 %v3283
    %v3617 = vunpack.c.l.b16 %v3284
    %v3618 = vunpack.c.h.b16 %v3284
    %v3619 = vunpack.c.l.b16 %v3285
    %v3620 = vunpack.c.h.b16 %v3285
    %v3621 = vunpack.c.l.b16 %v3286
    %v3622 = vunpack.c.h.b16 %v3286
    %v3623 = vunpack.c.l.b16 %v3287
    %v3624 = vunpack.c.h.b16 %v3287
    %v3625 = vunpack.c.l.b16 %v3288
    %v3626 = vunpack.c.h.b16 %v3288
    %v3627 = vunpack.c.l.b16 %v3289
    %v3628 = vunpack.c.h.b16 %v3289
    %v3629 = vunpack.c.l.b16 %v3290
    %v3630 = vunpack.c.h.b16 %v3290
    %v3631 = vunpack.c.l.b16 %v3291
    %v3632 = vunpack.c.h.b16 %v3291
    %v3633 = vunpack.c.l.b16 %v3292
    %v3634 = vunpack.c.h.b16 %v3292
    %v3635 = vunpack.c.l.b16 %v3293
    %v3636 = vunpack.c.h.b16 %v3293
    %v3637 = vunpack.c.l.b16 %v3294
    %v3638 = vunpack.c.h.b16 %v3294
    %v3639 = vunpack.c.l.b16 %v3295
    %v3640 = vunpack.c.h.b16 %v3295
    %v3641 = vunpack.c.l.b16 %v3296
    %v3642 = vunpack.c.h.b16 %v3296
    %v3643 = vunpack.c.l.b16 %v3297
    %v3644 = vunpack.c.h.b16 %v3297
    %v3645 = vunpack.c.l.b16 %v3298
    %v3646 = vunpack.c.h.b16 %v3298
    %v3647 = vunpack.c.l.b16 %v3299
    %v3648 = vunpack.c.h.b16 %v3299
    %v3649 = vunpack.c.l.b16 %v3300
    %v3650 = vunpack.c.h.b16 %v3300
    %v3651 = vunpack.c.l.b16 %v3301
    %v3652 = vunpack.c.h.b16 %v3301
    %v3653 = vunpack.c.l.b16 %v3302
    %v3654 = vunpack.c.h.b16 %v3302
    %v3655 = vunpack.c.l.b16 %v3303
    %v3656 = vunpack.c.h.b16 %v3303
    %v3657 = vunpack.c.l.b16 %v3304
    %v3658 = vunpack.c.h.b16 %v3304
    %v3659 = vunpack.c.l.b16 %v3305
    %v3660 = vunpack.c.h.b16 %v3305
    %v3661 = vunpack.c.l.b16 %v3306
    %v3662 = vunpack.c.h.b16 %v3306
    %v3663 = vunpack.c.l.b16 %v3307
    %v3664 = vunpack.c.h.b16 %v3307
    %v3665 = vunpack.c.l.b16 %v3308
    %v3666 = vunpack.c.h.b16 %v3308
    %v3667 = vunpack.c.l.b16 %v3309
    %v3668 = vunpack.c.h.b16 %v3309
    %v3669 = vunpack.c.l.b16 %v3310
    %v3670 = vunpack.c.h.b16 %v3310
    %v3671 = vunpack.c.l.b16 %v3311
    %v3672 = vunpack.c.h.b16 %v3311
    %v3673 = vunpack.c.l.b16 %v3312
    %v3674 = vunpack.c.h.b16 %v3312
    %v3675 = vunpack.c.l.b16 %v3313
    %v3676 = vunpack.c.h.b16 %v3313
    %v3677 = vunpack.c.l.b16 %v3314
    %v3678 = vunpack.c.h.b16 %v3314
    %v3679 = vunpack.c.l.b16 %v3315
    %v3680 = vunpack.c.h.b16 %v3315
    %v3681 = vunpack.c.l.b16 %v3316
    %v3682 = vunpack.c.h.b16 %v3316
    %v3683 = vunpack.c.l.b16 %v3317
    %v3684 = vunpack.c.h.b16 %v3317
    %v3685 = vunpack.c.l.b16 %v3318
    %v3686 = vunpack.c.h.b16 %v3318
    %v3687 = vunpack.c.l.b16 %v3319
    %v3688 = vunpack.c.h.b16 %v3319
    %v3689 = vunpack.c.l.b16 %v3320
    %v3690 = vunpack.c.h.b16 %v3320
    %v3691 = vunpack.c.l.b16 %v3321
    %v3692 = vunpack.c.h.b16 %v3321
    %v3693 = vunpack.c.l.b16 %v3322
    %v3694 = vunpack.c.h.b16 %v3322
    %v3695 = vunpack.c.l.b16 %v3323
    %v3696 = vunpack.c.h.b16 %v3323
    %v3697 = vunpack.c.l.b16 %v3324
    %v3698 = vunpack.c.h.b16 %v3324
    %v3699 = vunpack.c.l.b16 %v3325
    %v3700 = vunpack.c.h.b16 %v3325
    %v3701 = vunpack.c.l.b16 %v3326
    %v3702 = vunpack.c.h.b16 %v3326
    %v3703 = vunpack.c.l.b16 %v3327
    %v3704 = vunpack.c.h.b16 %v3327
    %v3705 = vunpack.c.l.b16 %v3328
    %v3706 = vunpack.c.h.b16 %v3328
    %v3707 = vunpack.c.l.b16 %v3329
    %v3708 = vunpack.c.h.b16 %v3329
    %v3709 = vunpack.c.l.b16 %v3330
    %v3710 = vunpack.c.h.b16 %v3330
    %v3711 = vunpack.c.l.b16 %v3331
    %v3712 = vunpack.c.h.b16 %v3331
    %v3713 = vunpack.c.l.b16 %v3332
    %v3714 = vunpack.c.h.b16 %v3332
    %v3715 = vunpack.c.l.b16 %v3333
    %v3716 = vunpack.c.h.b16 %v3333
    %v3717 = vunpack.c.l.b16 %v3334
    %v3718 = vunpack.c.h.b16 %v3334
    %v3719 = vunpack.c.l.b16 %v3335
    %v3720 = vunpack.c.h.b16 %v3335
    %v3721 = vunpack.c.l.b16 %v3336
    %v3722 = vunpack.c.h.b16 %v3336
    %v3723 = vunpack.c.l.b16 %v3337
    %v3724 = vunpack.c.h.b16 %v3337
    %v3725 = vunpack.c.l.b16 %v3338
    %v3726 = vunpack.c.h.b16 %v3338
    %v3727 = vunpack.c.l.b16 %v3339
    %v3728 = vunpack.c.h.b16 %v3339
    %v3729 = vunpack.c.l.b16 %v3340
    %v3730 = vunpack.c.h.b16 %v3340
    %v3731 = vunpack.c.l.b16 %v3341
    %v3732 = vunpack.c.h.b16 %v3341
    %v3733 = vunpack.c.l.b16 %v3342
    %v3734 = vunpack.c.h.b16 %v3342
    %v3735 = vunpack.c.l.b16 %v3343
    %v3736 = vunpack.c.h.b16 %v3343
    %v3737 = vunpack.c.l.b16 %v3344
    %v3738 = vunpack.c.h.b16 %v3344
    %v3739 = vunpack.c.l.b16 %v3345
    %v3740 = vunpack.c.h.b16 %v3345
    %v3741 = vunpack.c.l.b16 %v3346
    %v3742 = vunpack.c.h.b16 %v3346
    %v3743 = vunpack.c.l.b16 %v3347
    %v3744 = vunpack.c.h.b16 %v3347
    %v3745 = vunpack.c.l.b16 %v3348
    %v3746 = vunpack.c.h.b16 %v3348
    %v3747 = vunpack.c.l.b16 %v3349
    %v3748 = vunpack.c.h.b16 %v3349
    %v3749 = vunpack.c.l.b16 %v3350
    %v3750 = vunpack.c.h.b16 %v3350
    %v3751 = vunpack.c.l.b16 %v3351
    %v3752 = vunpack.c.h.b16 %v3351
    %v3753 = vunpack.c.l.b16 %v3352
    %v3754 = vunpack.c.h.b16 %v3352
    %v3755 = vunpack.c.l.b16 %v3353
    %v3756 = vunpack.c.h.b16 %v3353
    %v3757 = vunpack.c.l.b16 %v3354
    %v3758 = vunpack.c.h.b16 %v3354
    %v3759 = vunpack.c.l.b16 %v3355
    %v3760 = vunpack.c.h.b16 %v3355
    %v3761 = vunpack.c.l.b16 %v3356
    %v3762 = vunpack.c.h.b16 %v3356
    %v3763 = vunpack.c.l.b16 %v3357
    %v3764 = vunpack.c.h.b16 %v3357
    %v3765 = vunpack.c.l.b16 %v3358
    %v3766 = vunpack.c.h.b16 %v3358
    %v3767 = vunpack.c.l.b16 %v3359
    %v3768 = vunpack.c.h.b16 %v3359
    %v3769 = vunpack.c.l.b16 %v3360
    %v3770 = vunpack.c.h.b16 %v3360
    %v3771 = vunpack.c.l.b16 %v3361
    %v3772 = vunpack.c.h.b16 %v3361
    %v3773 = vunpack.c.l.b16 %v3362
    %v3774 = vunpack.c.h.b16 %v3362
    %v3775 = vunpack.c.l.b16 %v3363
    %v3776 = vunpack.c.h.b16 %v3363
    %v3777 = vunpack.c.l.b16 %v3364
    %v3778 = vunpack.c.h.b16 %v3364
    %v3779 = vunpack.c.l.b16 %v3365
    %v3780 = vunpack.c.h.b16 %v3365
    %v3781 = vunpack.c.l.b16 %v3366
    %v3782 = vunpack.c.h.b16 %v3366
    %v3783 = vunpack.c.l.b16 %v3367
    %v3784 = vunpack.c.h.b16 %v3367
    %v3785 = vunpack.c.l.b16 %v3368
    %v3786 = vunpack.c.h.b16 %v3368
    %v3787 = vunpack.c.l.b16 %v3369
    %v3788 = vunpack.c.h.b16 %v3369
    %v3789 = vunpack.c.l.b16 %v3370
    %v3790 = vunpack.c.h.b16 %v3370
    %v3791 = vunpack.c.l.b16 %v3371
    %v3792 = vunpack.c.h.b16 %v3371
    %v3793 = vunpack.c.l.b16 %v3372
    %v3794 = vunpack.c.h.b16 %v3372
    %v3795 = vunpack.c.l.b16 %v3373
    %v3796 = vunpack.c.h.b16 %v3373
    %v3797 = vpack.c.b16 %v3545, %v3541
    %v3798 = vpack.c.b16 %v3546, %v3542
    %v3799 = vpack.c.b16 %v3547, %v3543
    %v3800 = vpack.c.b16 %v3548, %v3544
    %v3801 = vpack.c.b16 %v3553, %v3549
    %v3802 = vpack.c.b16 %v3554, %v3550
    %v3803 = vpack.c.b16 %v3555, %v3551
    %v3804 = vpack.c.b16 %v3556, %v3552
    %v3805 = vpack.c.b16 %v3561, %v3557
    %v3806 = vpack.c.b16 %v3562, %v3558
    %v3807 = vpack.c.b16 %v3563, %v3559
    %v3808 = vpack.c.b16 %v3564, %v3560
    %v3809 = vpack.c.b16 %v3569, %v3565
    %v3810 = vpack.c.b16 %v3570, %v3566
    %v3811 = vpack.c.b16 %v3571, %v3567
    %v3812 = vpack.c.b16 %v3572, %v3568
    %v3813 = vpack.c.b16 %v3577, %v3573
    %v3814 = vpack.c.b16 %v3578, %v3574
    %v3815 = vpack.c.b16 %v3579, %v3575
    %v3816 = vpack.c.b16 %v3580, %v3576
    %v3817 = vpack.c.b16 %v3585, %v3581
    %v3818 = vpack.c.b16 %v3586, %v3582
    %v3819 = vpack.c.b16 %v3587, %v3583
    %v3820 = vpack.c.b16 %v3588, %v3584
    %v3821 = vpack.c.b16 %v3593, %v3589
    %v3822 = vpack.c.b16 %v3594, %v3590
    %v3823 = vpack.c.b16 %v3595, %v3591
    %v3824 = vpack.c.b16 %v3596, %v3592
    %v3825 = vpack.c.b16 %v3601, %v3597
    %v3826 = vpack.c.b16 %v3602, %v3598
    %v3827 = vpack.c.b16 %v3603, %v3599
    %v3828 = vpack.c.b16 %v3604, %v3600
    %v3829 = vpack.c.b16 %v3609, %v3605
    %v3830 = vpack.c.b16 %v3610, %v3606
    %v3831 = vpack.c.b16 %v3611, %v3607
    %v3832 = vpack.c.b16 %v3612, %v3608
    %v3833 = vpack.c.b16 %v3617, %v3613
    %v3834 = vpack.c.b16 %v3618, %v3614
    %v3835 = vpack.c.b16 %v3619, %v3615
    %v3836 = vpack.c.b16 %v3620, %v3616
    %v3837 = vpack.c.b16 %v3625, %v3621
    %v3838 = vpack.c.b16 %v3626, %v3622
    %v3839 = vpack.c.b16 %v3627, %v3623
    %v3840 = vpack.c.b16 %v3628, %v3624
    %v3841 = vpack.c.b16 %v3633, %v3629
    %v3842 = vpack.c.b16 %v3634, %v3630
    %v3843 = vpack.c.b16 %v3635, %v3631
    %v3844 = vpack.c.b16 %v3636, %v3632
    %v3845 = vpack.c.b16 %v3641, %v3637
    %v3846 = vpack.c.b16 %v3642, %v3638
    %v3847 = vpack.c.b16 %v3643, %v3639
    %v3848 = vpack.c.b16 %v3644, %v3640
    %v3849 = vpack.c.b16 %v3649, %v3645
    %v3850 = vpack.c.b16 %v3650, %v3646
    %v3851 = vpack.c.b16 %v3651, %v3647
    %v3852 = vpack.c.b16 %v3652, %v3648
    %v3853 = vpack.c.b16 %v3657, %v3653
    %v3854 = vpack.c.b16 %v3658, %v3654
    %v3855 = vpack.c.b16 %v3659, %v3655
    %v3856 = vpack.c.b16 %v3660, %v3656
    %v3857 = vpack.c.b16 %v3665, %v3661
    %v3858 = vpack.c.b16 %v3666, %v3662
    %v3859 = vpack.c.b16 %v3667, %v3663
    %v3860 = vpack.c.b16 %v3668, %v3664
    %v3861 = vpack.c.b16 %v3673, %v3669
    %v3862 = vpack.c.b16 %v3674, %v3670
    %v3863 = vpack.c.b16 %v3675, %v3671
    %v3864 = vpack.c.b16 %v3676, %v3672
    %v3865 = vpack.c.b16 %v3681, %v3677
    %v3866 = vpack.c.b16 %v3682, %v3678
    %v3867 = vpack.c.b16 %v3683, %v3679
    %v3868 = vpack.c.b16 %v3684, %v3680
    %v3869 = vpack.c.b16 %v3689, %v3685
    %v3870 = vpack.c.b16 %v3690, %v3686
    %v3871 = vpack.c.b16 %v3691, %v3687
    %v3872 = vpack.c.b16 %v3692, %v3688
    %v3873 = vpack.c.b16 %v3697, %v3693
    %v3874 = vpack.c.b16 %v3698, %v3694
    %v3875 = vpack.c.b16 %v3699, %v3695
    %v3876 = vpack.c.b16 %v3700, %v3696
    %v3877 = vpack.c.b16 %v3705, %v3701
    %v3878 = vpack.c.b16 %v3706, %v3702
    %v3879 = vpack.c.b16 %v3707, %v3703
    %v3880 = vpack.c.b16 %v3708, %v3704
    %v3881 = vpack.c.b16 %v3713, %v3709
    %v3882 = vpack.c.b16 %v3714, %v3710
    %v3883 = vpack.c.b16 %v3715, %v3711
    %v3884 = vpack.c.b16 %v3716, %v3712
    %v3885 = vpack.c.b16 %v3721, %v3717
    %v3886 = vpack.c.b16 %v3722, %v3718
    %v3887 = vpack.c.b16 %v3723, %v3719
    %v3888 = vpack.c.b16 %v3724, %v3720
    %v3889 = vpack.c.b16 %v3729, %v3725
    %v3890 = vpack.c.b16 %v3730, %v3726
    %v3891 = vpack.c.b16 %v3731, %v3727
    %v3892 = vpack.c.b16 %v3732, %v3728
    %v3893 = vpack.c.b16 %v3737, %v3733
    %v3894 = vpack.c.b16 %v3738, %v3734
    %v3895 = vpack.c.b16 %v3739, %v3735
    %v3896 = vpack.c.b16 %v3740, %v3736
    %v3897 = vpack.c.b16 %v3745, %v3741
    %v3898 = vpack.c.b16 %v3746, %v3742
    %v3899 = vpack.c.b16 %v3747, %v3743
    %v3900 = vpack.c.b16 %v3748, %v3744
    %v3901 = vpack.c.b16 %v3753, %v3749
    %v3902 = vpack.c.b16 %v3754, %v3750
    %v3903 = vpack.c.b16 %v3755, %v3751
    %v3904 = vpack.c.b16 %v3756, %v3752
    %v3905 = vpack.c.b16 %v3761, %v3757
    %v3906 = vpack.c.b16 %v3762, %v3758
    %v3907 = vpack.c.b16 %v3763, %v3759
    %v3908 = vpack.c.b16 %v3764, %v3760
    %v3909 = vpack.c.b16 %v3769, %v3765
    %v3910 = vpack.c.b16 %v3770, %v3766
    %v3911 = vpack.c.b16 %v3771, %v3767
    %v3912 = vpack.c.b16 %v3772, %v3768
    %v3913 = vpack.c.b16 %v3777, %v3773
    %v3914 = vpack.c.b16 %v3778, %v3774
    %v3915 = vpack.c.b16 %v3779, %v3775
    %v3916 = vpack.c.b16 %v3780, %v3776
    %v3917 = vpack.c.b16 %v3785, %v3781
    %v3918 = vpack.c.b16 %v3786, %v3782
    %v3919 = vpack.c.b16 %v3787, %v3783
    %v3920 = vpack.c.b16 %v3788, %v3784
    %v3921 = vpack.c.b16 %v3793, %v3789
    %v3922 = vpack.c.b16 %v3794, %v3790
    %v3923 = vpack.c.b16 %v3795, %v3791
    %v3924 = vpack.c.b16 %v3796, %v3792
    %4053 = vmatprep.subr.bf16.mxu0 %v3826
    %4054 = vmatpush1.bf16.msra.mxu0 %v3825
    %4055 = vmatprep.subr.bf16.mxu0 %v3822
    %4056 = vmatpush1.bf16.msra.mxu0 %v3821
    %4057 = vmatprep.subr.bf16.mxu0 %v3818
    %4058 = vmatpush1.bf16.msra.mxu0 %v3817
    %4059 = vmatprep.subr.bf16.mxu0 %v3814
    %4060 = vmatpush1.bf16.msra.mxu0 %v3813
    %4061 = vmatprep.subr.bf16.mxu0 %v3810
    %4062 = vmatpush1.bf16.msra.mxu0 %v3809
    %4063 = vmatprep.subr.bf16.mxu0 %v3806
    %4064 = vmatpush1.bf16.msra.mxu0 %v3805
    %4065 = vmatprep.subr.bf16.mxu0 %v3802
    %4066 = vmatpush1.bf16.msra.mxu0 %v3801
    %4067 = vmatprep.subr.bf16.mxu0 %v3798
    %4068 = vmatpush1.bf16.msra.mxu0 %v3797
    %4069 = vmatprep.subr.bf16.mxu0 %v3858
    %4070 = vmatpush2.bf16.msra.mxu0 %v3857
    %4071 = vmatprep.subr.bf16.mxu0 %v3854
    %4072 = vmatpush2.bf16.msra.mxu0 %v3853
    %4073 = vmatprep.subr.bf16.mxu0 %v3850
    %4074 = vmatpush2.bf16.msra.mxu0 %v3849
    %4075 = vmatprep.subr.bf16.mxu0 %v3846
    %4076 = vmatpush2.bf16.msra.mxu0 %v3845
    %4077 = vmatprep.subr.bf16.mxu0 %v3842
    %4078 = vmatpush2.bf16.msra.mxu0 %v3841
    %4079 = vmatprep.subr.bf16.mxu0 %v3838
    %4080 = vmatpush2.bf16.msra.mxu0 %v3837
    %4081 = vmatprep.subr.bf16.mxu0 %v3834
    %4082 = vmatpush2.bf16.msra.mxu0 %v3833
    %4083 = vmatprep.subr.bf16.mxu0 %v3830
    %4084 = vmatpush2.bf16.msra.mxu0 %v3829
    %4085 = vmatprep.mubr.bf16.mxu0 %v3243
    %4086 = vmatmul.mubr.bf16.gmra.mxu0 %v3242
    %v4087 = vpop.f32.mrf.mxu0
    %v4088 = vadd.f32 %v3400, %v4087
    %v4089 = vpop.f32.mrf.mxu0
    %v4090 = vadd.f32 %v3404, %v4089
    %v4091 = vpop.f32.mrf.mxu0
    %v4092 = vpop.f32.mrf.mxu0
    %4093 = vdwg.mxu0
    %4094 = vmatprep.subr.bf16.mxu0 %v3890
    %4095 = vmatpush1.bf16.msra.mxu0 %v3889
    %4096 = vmatprep.subr.bf16.mxu0 %v3886
    %4097 = vmatpush1.bf16.msra.mxu0 %v3885
    %4098 = vmatprep.subr.bf16.mxu0 %v3882
    %4099 = vmatpush1.bf16.msra.mxu0 %v3881
    %4100 = vmatprep.subr.bf16.mxu0 %v3878
    %4101 = vmatpush1.bf16.msra.mxu0 %v3877
    %4102 = vmatprep.subr.bf16.mxu0 %v3874
    %4103 = vmatpush1.bf16.msra.mxu0 %v3873
    %4104 = vmatprep.subr.bf16.mxu0 %v3870
    %4105 = vmatpush1.bf16.msra.mxu0 %v3869
    %4106 = vmatprep.subr.bf16.mxu0 %v3866
    %4107 = vmatpush1.bf16.msra.mxu0 %v3865
    %4108 = vmatprep.subr.bf16.mxu0 %v3862
    %4109 = vmatpush1.bf16.msra.mxu0 %v3861
    %4110 = vmatprep.subr.bf16.mxu0 %v3922
    %4111 = vmatpush2.bf16.msra.mxu0 %v3921
    %4112 = vmatprep.subr.bf16.mxu0 %v3918
    %4113 = vmatpush2.bf16.msra.mxu0 %v3917
    %4114 = vmatprep.subr.bf16.mxu0 %v3914
    %4115 = vmatpush2.bf16.msra.mxu0 %v3913
    %4116 = vmatprep.subr.bf16.mxu0 %v3910
    %4117 = vmatpush2.bf16.msra.mxu0 %v3909
    %4118 = vmatprep.subr.bf16.mxu0 %v3906
    %4119 = vmatpush2.bf16.msra.mxu0 %v3905
    %4120 = vmatprep.subr.bf16.mxu0 %v3902
    %4121 = vmatpush2.bf16.msra.mxu0 %v3901
    %4122 = vmatprep.subr.bf16.mxu0 %v3898
    %4123 = vmatpush2.bf16.msra.mxu0 %v3897
    %4124 = vmatprep.subr.bf16.mxu0 %v3894
    %4125 = vmatpush2.bf16.msra.mxu0 %v3893
    %4126 = vmatprep.mubr.bf16.mxu0 %v3245
    %4127 = vmatmul.mubr.bf16.gmra.mxu0 %v3244
    %v4128 = vpop.f32.mrf.mxu0
    %v4129 = vadd.f32 %v4088, %v4128
    %v4130 = vpop.f32.mrf.mxu0
    %v4131 = vadd.f32 %v4090, %v4130
    %v4132 = vpop.f32.mrf.mxu0
    %v4133 = vpop.f32.mrf.mxu0
    %4134 = vdwg.mxu0
    %4135 = vmatprep.subr.bf16.mxu0 %v3828
    %4136 = vmatpush1.bf16.msra.mxu0 %v3827
    %4137 = vmatprep.subr.bf16.mxu0 %v3824
    %4138 = vmatpush1.bf16.msra.mxu0 %v3823
    %4139 = vmatprep.subr.bf16.mxu0 %v3820
    %4140 = vmatpush1.bf16.msra.mxu0 %v3819
    %4141 = vmatprep.subr.bf16.mxu0 %v3816
    %4142 = vmatpush1.bf16.msra.mxu0 %v3815
    %4143 = vmatprep.subr.bf16.mxu0 %v3812
    %4144 = vmatpush1.bf16.msra.mxu0 %v3811
    %4145 = vmatprep.subr.bf16.mxu0 %v3808
    %4146 = vmatpush1.bf16.msra.mxu0 %v3807
    %4147 = vmatprep.subr.bf16.mxu0 %v3804
    %4148 = vmatpush1.bf16.msra.mxu0 %v3803
    %4149 = vmatprep.subr.bf16.mxu0 %v3800
    %4150 = vmatpush1.bf16.msra.mxu0 %v3799
    %4151 = vmatprep.subr.bf16.mxu0 %v3860
    %4152 = vmatpush2.bf16.msra.mxu0 %v3859
    %4153 = vmatprep.subr.bf16.mxu0 %v3856
    %4154 = vmatpush2.bf16.msra.mxu0 %v3855
    %4155 = vmatprep.subr.bf16.mxu0 %v3852
    %4156 = vmatpush2.bf16.msra.mxu0 %v3851
    %4157 = vmatprep.subr.bf16.mxu0 %v3848
    %4158 = vmatpush2.bf16.msra.mxu0 %v3847
    %4159 = vmatprep.subr.bf16.mxu0 %v3844
    %4160 = vmatpush2.bf16.msra.mxu0 %v3843
    %4161 = vmatprep.subr.bf16.mxu0 %v3840
    %4162 = vmatpush2.bf16.msra.mxu0 %v3839
    %4163 = vmatprep.subr.bf16.mxu0 %v3836
    %4164 = vmatpush2.bf16.msra.mxu0 %v3835
    %4165 = vmatprep.subr.bf16.mxu0 %v3832
    %4166 = vmatpush2.bf16.msra.mxu0 %v3831
    %4167 = vmatprep.mubr.bf16.mxu0 %v3243
    %4168 = vmatmul.mubr.bf16.gmra.mxu0 %v3242
    %v4169 = vpop.f32.mrf.mxu0
    %v4170 = vadd.f32 %v3408, %v4169
    %v4171 = vpop.f32.mrf.mxu0
    %v4172 = vadd.f32 %v3412, %v4171
    %v4173 = vpop.f32.mrf.mxu0
    %v4174 = vpop.f32.mrf.mxu0
    %4175 = vdwg.mxu0
    %4176 = vmatprep.subr.bf16.mxu0 %v3892
    %4177 = vmatpush1.bf16.msra.mxu0 %v3891
    %4178 = vmatprep.subr.bf16.mxu0 %v3888
    %4179 = vmatpush1.bf16.msra.mxu0 %v3887
    %4180 = vmatprep.subr.bf16.mxu0 %v3884
    %4181 = vmatpush1.bf16.msra.mxu0 %v3883
    %4182 = vmatprep.subr.bf16.mxu0 %v3880
    %4183 = vmatpush1.bf16.msra.mxu0 %v3879
    %4184 = vmatprep.subr.bf16.mxu0 %v3876
    %4185 = vmatpush1.bf16.msra.mxu0 %v3875
    %4186 = vmatprep.subr.bf16.mxu0 %v3872
    %4187 = vmatpush1.bf16.msra.mxu0 %v3871
    %4188 = vmatprep.subr.bf16.mxu0 %v3868
    %4189 = vmatpush1.bf16.msra.mxu0 %v3867
    %4190 = vmatprep.subr.bf16.mxu0 %v3864
    %4191 = vmatpush1.bf16.msra.mxu0 %v3863
    %4192 = vmatprep.subr.bf16.mxu0 %v3924
    %4193 = vmatpush2.bf16.msra.mxu0 %v3923
    %4194 = vmatprep.subr.bf16.mxu0 %v3920
    %4195 = vmatpush2.bf16.msra.mxu0 %v3919
    %4196 = vmatprep.subr.bf16.mxu0 %v3916
    %4197 = vmatpush2.bf16.msra.mxu0 %v3915
    %4198 = vmatprep.subr.bf16.mxu0 %v3912
    %4199 = vmatpush2.bf16.msra.mxu0 %v3911
    %4200 = vmatprep.subr.bf16.mxu0 %v3908
    %4201 = vmatpush2.bf16.msra.mxu0 %v3907
    %4202 = vmatprep.subr.bf16.mxu0 %v3904
    %4203 = vmatpush2.bf16.msra.mxu0 %v3903
    %4204 = vmatprep.subr.bf16.mxu0 %v3900
    %4205 = vmatpush2.bf16.msra.mxu0 %v3899
    %4206 = vmatprep.subr.bf16.mxu0 %v3896
    %4207 = vmatpush2.bf16.msra.mxu0 %v3895
    %4208 = vmatprep.mubr.bf16.mxu0 %v3245
    %4209 = vmatmul.mubr.bf16.gmra.mxu0 %v3244
    %v4210 = vpop.f32.mrf.mxu0
    %v4211 = vadd.f32 %v4170, %v4210
    %v4212 = vpop.f32.mrf.mxu0
    %v4213 = vadd.f32 %v4172, %v4212
    %v4214 = vpop.f32.mrf.mxu0
    %v4215 = vpop.f32.mrf.mxu0
    %4216 = vdwg.mxu0
    %v4217 = vmax.f32 %v4129, 0.0
    %v4218 = vmax.f32 %v4131, 0.0
    %v4219 = vmax.f32 %v4211, 0.0
    %v4220 = vmax.f32 %v4213, 0.0
    %v4221 = vpack.c.bf16 %v4217, %v4217
    %v4222 = vpack.c.bf16 %v4218, %v4218
    %v4223 = vpack.c.bf16 %v4219, %v4219
    %v4224 = vpack.c.bf16 %v4220, %v4220
    %v4225 = vld [vmem:[#allocation10] sm:$0xf]
    %v4226 = vld [vmem:[#allocation10 + $0x4] sm:$0xf]
    %v4227 = vld [vmem:[#allocation10 + $0x8] sm:$0xf]
    %v4228 = vld [vmem:[#allocation10 + $0xc] sm:$0xf]
    %v4229 = vld [vmem:[#allocation10 + $0x10] sm:$0xf]
    %v4230 = vld [vmem:[#allocation10 + $0x14] sm:$0xf]
    %v4231 = vld [vmem:[#allocation10 + $0x18] sm:$0xf]
    %v4232 = vld [vmem:[#allocation10 + $0x1c] sm:$0xf]
    %v4233 = vld [vmem:[#allocation10 + $0x20] sm:$0xf]
    %v4234 = vld [vmem:[#allocation10 + $0x24] sm:$0xf]
    %v4235 = vld [vmem:[#allocation10 + $0x28] sm:$0xf]
    %v4236 = vld [vmem:[#allocation10 + $0x2c] sm:$0xf]
    %v4237 = vld [vmem:[#allocation10 + $0x30] sm:$0xf]
    %v4238 = vld [vmem:[#allocation10 + $0x34] sm:$0xf]
    %v4239 = vld [vmem:[#allocation10 + $0x38] sm:$0xf]
    %v4240 = vld [vmem:[#allocation10 + $0x3c] sm:$0xf]
    %v4241 = vld [vmem:[#allocation10 + $0x40] sm:$0xf]
    %v4242 = vld [vmem:[#allocation10 + $0x44] sm:$0xf]
    %v4243 = vld [vmem:[#allocation10 + $0x48] sm:$0xf]
    %v4244 = vld [vmem:[#allocation10 + $0x4c] sm:$0xf]
    %v4245 = vld [vmem:[#allocation10 + $0x50] sm:$0xf]
    %v4246 = vld [vmem:[#allocation10 + $0x54] sm:$0xf]
    %v4247 = vld [vmem:[#allocation10 + $0x58] sm:$0xf]
    %v4248 = vld [vmem:[#allocation10 + $0x5c] sm:$0xf]
    %v4249 = vld [vmem:[#allocation10 + $0x60] sm:$0xf]
    %v4250 = vld [vmem:[#allocation10 + $0x64] sm:$0xf]
    %v4251 = vld [vmem:[#allocation10 + $0x68] sm:$0xf]
    %v4252 = vld [vmem:[#allocation10 + $0x6c] sm:$0xf]
    %v4253 = vld [vmem:[#allocation10 + $0x70] sm:$0xf]
    %v4254 = vld [vmem:[#allocation10 + $0x74] sm:$0xf]
    %v4255 = vld [vmem:[#allocation10 + $0x78] sm:$0xf]
    %v4256 = vld [vmem:[#allocation10 + $0x7c] sm:$0xf]
    %v4257 = vld [vmem:[#allocation10 + $0x80] sm:$0xf]
    %v4258 = vld [vmem:[#allocation10 + $0x84] sm:$0xf]
    %v4259 = vld [vmem:[#allocation10 + $0x88] sm:$0xf]
    %v4260 = vld [vmem:[#allocation10 + $0x8c] sm:$0xf]
    %v4261 = vld [vmem:[#allocation10 + $0x90] sm:$0xf]
    %v4262 = vld [vmem:[#allocation10 + $0x94] sm:$0xf]
    %v4263 = vld [vmem:[#allocation10 + $0x98] sm:$0xf]
    %v4264 = vld [vmem:[#allocation10 + $0x9c] sm:$0xf]
    %v4265 = vld [vmem:[#allocation10 + $0xa0] sm:$0xf]
    %v4266 = vld [vmem:[#allocation10 + $0xa4] sm:$0xf]
    %v4267 = vld [vmem:[#allocation10 + $0xa8] sm:$0xf]
    %v4268 = vld [vmem:[#allocation10 + $0xac] sm:$0xf]
    %v4269 = vld [vmem:[#allocation10 + $0xb0] sm:$0xf]
    %v4270 = vld [vmem:[#allocation10 + $0xb4] sm:$0xf]
    %v4271 = vld [vmem:[#allocation10 + $0xb8] sm:$0xf]
    %v4272 = vld [vmem:[#allocation10 + $0xbc] sm:$0xf]
    %v4273 = vld [vmem:[#allocation10 + $0xc0] sm:$0xf]
    %v4274 = vld [vmem:[#allocation10 + $0xc4] sm:$0xf]
    %v4275 = vld [vmem:[#allocation10 + $0xc8] sm:$0xf]
    %v4276 = vld [vmem:[#allocation10 + $0xcc] sm:$0xf]
    %v4277 = vld [vmem:[#allocation10 + $0xd0] sm:$0xf]
    %v4278 = vld [vmem:[#allocation10 + $0xd4] sm:$0xf]
    %v4279 = vld [vmem:[#allocation10 + $0xd8] sm:$0xf]
    %v4280 = vld [vmem:[#allocation10 + $0xdc] sm:$0xf]
    %v4281 = vld [vmem:[#allocation10 + $0xe0] sm:$0xf]
    %v4282 = vld [vmem:[#allocation10 + $0xe4] sm:$0xf]
    %v4283 = vld [vmem:[#allocation10 + $0xe8] sm:$0xf]
    %v4284 = vld [vmem:[#allocation10 + $0xec] sm:$0xf]
    %v4285 = vld [vmem:[#allocation10 + $0xf0] sm:$0xf]
    %v4286 = vld [vmem:[#allocation10 + $0xf4] sm:$0xf]
    %v4287 = vld [vmem:[#allocation10 + $0xf8] sm:$0xf]
    %v4288 = vld [vmem:[#allocation10 + $0xfc] sm:$0xf]
    %v4289 = vld [vmem:[%s12] sm:$0x1]
    %v4290 = vunpack.c.l.bf16 %v4289
    %v4291 = vlaneseq
    %v4292 = vshrl.u32 %v4291, 7
    %v4293 = vsub.s32 0, %v4292
    %v4294 = vrot.slane %v4290, %v4293
    %v4359 = vunpack.c.l.b16 %v4225
    %v4360 = vunpack.c.l.b16 %v4226
    %v4361 = vunpack.c.l.b16 %v4227
    %v4362 = vunpack.c.l.b16 %v4228
    %v4363 = vunpack.c.l.b16 %v4229
    %v4364 = vunpack.c.l.b16 %v4230
    %v4365 = vunpack.c.l.b16 %v4231
    %v4366 = vunpack.c.l.b16 %v4232
    %v4367 = vunpack.c.l.b16 %v4233
    %v4368 = vunpack.c.l.b16 %v4234
    %v4369 = vunpack.c.l.b16 %v4235
    %v4370 = vunpack.c.l.b16 %v4236
    %v4371 = vunpack.c.l.b16 %v4237
    %v4372 = vunpack.c.l.b16 %v4238
    %v4373 = vunpack.c.l.b16 %v4239
    %v4374 = vunpack.c.l.b16 %v4240
    %v4375 = vunpack.c.l.b16 %v4241
    %v4376 = vunpack.c.l.b16 %v4242
    %v4377 = vunpack.c.l.b16 %v4243
    %v4378 = vunpack.c.l.b16 %v4244
    %v4379 = vunpack.c.l.b16 %v4245
    %v4380 = vunpack.c.l.b16 %v4246
    %v4381 = vunpack.c.l.b16 %v4247
    %v4382 = vunpack.c.l.b16 %v4248
    %v4383 = vunpack.c.l.b16 %v4249
    %v4384 = vunpack.c.l.b16 %v4250
    %v4385 = vunpack.c.l.b16 %v4251
    %v4386 = vunpack.c.l.b16 %v4252
    %v4387 = vunpack.c.l.b16 %v4253
    %v4388 = vunpack.c.l.b16 %v4254
    %v4389 = vunpack.c.l.b16 %v4255
    %v4390 = vunpack.c.l.b16 %v4256
    %v4391 = vunpack.c.l.b16 %v4257
    %v4392 = vunpack.c.l.b16 %v4258
    %v4393 = vunpack.c.l.b16 %v4259
    %v4394 = vunpack.c.l.b16 %v4260
    %v4395 = vunpack.c.l.b16 %v4261
    %v4396 = vunpack.c.l.b16 %v4262
    %v4397 = vunpack.c.l.b16 %v4263
    %v4398 = vunpack.c.l.b16 %v4264
    %v4399 = vunpack.c.l.b16 %v4265
    %v4400 = vunpack.c.l.b16 %v4266
    %v4401 = vunpack.c.l.b16 %v4267
    %v4402 = vunpack.c.l.b16 %v4268
    %v4403 = vunpack.c.l.b16 %v4269
    %v4404 = vunpack.c.l.b16 %v4270
    %v4405 = vunpack.c.l.b16 %v4271
    %v4406 = vunpack.c.l.b16 %v4272
    %v4407 = vunpack.c.l.b16 %v4273
    %v4408 = vunpack.c.l.b16 %v4274
    %v4409 = vunpack.c.l.b16 %v4275
    %v4410 = vunpack.c.l.b16 %v4276
    %v4411 = vunpack.c.l.b16 %v4277
    %v4412 = vunpack.c.l.b16 %v4278
    %v4413 = vunpack.c.l.b16 %v4279
    %v4414 = vunpack.c.l.b16 %v4280
    %v4415 = vunpack.c.l.b16 %v4281
    %v4416 = vunpack.c.l.b16 %v4282
    %v4417 = vunpack.c.l.b16 %v4283
    %v4418 = vunpack.c.l.b16 %v4284
    %v4419 = vunpack.c.l.b16 %v4285
    %v4420 = vunpack.c.l.b16 %v4286
    %v4421 = vunpack.c.l.b16 %v4287
    %v4422 = vunpack.c.l.b16 %v4288
    %v4423 = vpack.c.b16 %v4360, %v4359
    %v4424 = vpack.c.b16 %v4362, %v4361
    %v4425 = vpack.c.b16 %v4364, %v4363
    %v4426 = vpack.c.b16 %v4366, %v4365
    %v4427 = vpack.c.b16 %v4368, %v4367
    %v4428 = vpack.c.b16 %v4370, %v4369
    %v4429 = vpack.c.b16 %v4372, %v4371
    %v4430 = vpack.c.b16 %v4374, %v4373
    %v4431 = vpack.c.b16 %v4376, %v4375
    %v4432 = vpack.c.b16 %v4378, %v4377
    %v4433 = vpack.c.b16 %v4380, %v4379
    %v4434 = vpack.c.b16 %v4382, %v4381
    %v4435 = vpack.c.b16 %v4384, %v4383
    %v4436 = vpack.c.b16 %v4386, %v4385
    %v4437 = vpack.c.b16 %v4388, %v4387
    %v4438 = vpack.c.b16 %v4390, %v4389
    %v4439 = vpack.c.b16 %v4392, %v4391
    %v4440 = vpack.c.b16 %v4394, %v4393
    %v4441 = vpack.c.b16 %v4396, %v4395
    %v4442 = vpack.c.b16 %v4398, %v4397
    %v4443 = vpack.c.b16 %v4400, %v4399
    %v4444 = vpack.c.b16 %v4402, %v4401
    %v4445 = vpack.c.b16 %v4404, %v4403
    %v4446 = vpack.c.b16 %v4406, %v4405
    %v4447 = vpack.c.b16 %v4408, %v4407
    %v4448 = vpack.c.b16 %v4410, %v4409
    %v4449 = vpack.c.b16 %v4412, %v4411
    %v4450 = vpack.c.b16 %v4414, %v4413
    %v4451 = vpack.c.b16 %v4416, %v4415
    %v4452 = vpack.c.b16 %v4418, %v4417
    %v4453 = vpack.c.b16 %v4420, %v4419
    %v4454 = vpack.c.b16 %v4422, %v4421
    %4487 = vmatprep.subr.bf16.mxu0 0
    %4488 = vmatpush1.bf16.msra.mxu0 %v4430
    %4489 = vmatprep.subr.bf16.mxu0 0
    %4490 = vmatpush1.bf16.msra.mxu0 %v4429
    %4491 = vmatprep.subr.bf16.mxu0 0
    %4492 = vmatpush1.bf16.msra.mxu0 %v4428
    %4493 = vmatprep.subr.bf16.mxu0 0
    %4494 = vmatpush1.bf16.msra.mxu0 %v4427
    %4495 = vmatprep.subr.bf16.mxu0 0
    %4496 = vmatpush1.bf16.msra.mxu0 %v4426
    %4497 = vmatprep.subr.bf16.mxu0 0
    %4498 = vmatpush1.bf16.msra.mxu0 %v4425
    %4499 = vmatprep.subr.bf16.mxu0 0
    %4500 = vmatpush1.bf16.msra.mxu0 %v4424
    %4501 = vmatprep.subr.bf16.mxu0 0
    %4502 = vmatpush1.bf16.msra.mxu0 %v4423
    %4503 = vmatprep.subr.bf16.mxu0 0
    %4504 = vmatpush2.bf16.msra.mxu0 %v4438
    %4505 = vmatprep.subr.bf16.mxu0 0
    %4506 = vmatpush2.bf16.msra.mxu0 %v4437
    %4507 = vmatprep.subr.bf16.mxu0 0
    %4508 = vmatpush2.bf16.msra.mxu0 %v4436
    %4509 = vmatprep.subr.bf16.mxu0 0
    %4510 = vmatpush2.bf16.msra.mxu0 %v4435
    %4511 = vmatprep.subr.bf16.mxu0 0
    %4512 = vmatpush2.bf16.msra.mxu0 %v4434
    %4513 = vmatprep.subr.bf16.mxu0 0
    %4514 = vmatpush2.bf16.msra.mxu0 %v4433
    %4515 = vmatprep.subr.bf16.mxu0 0
    %4516 = vmatpush2.bf16.msra.mxu0 %v4432
    %4517 = vmatprep.subr.bf16.mxu0 0
    %4518 = vmatpush2.bf16.msra.mxu0 %v4431
    %4519 = vmatprep.mubr.bf16.mxu0 %v4222
    %4520 = vmatmul.mubr.bf16.gmra.mxu0 %v4221
    %v4521 = vpop.f32.mrf.mxu0
    %v4522 = vadd.f32 %v4294, %v4521
    %v4523 = vpop.f32.mrf.mxu0
    %v4524 = vpop.f32.mrf.mxu0
    %v4525 = vpop.f32.mrf.mxu0
    %4526 = vdwg.mxu0
    %4527 = vmatprep.subr.bf16.mxu0 0
    %4528 = vmatpush1.bf16.msra.mxu0 %v4446
    %4529 = vmatprep.subr.bf16.mxu0 0
    %4530 = vmatpush1.bf16.msra.mxu0 %v4445
    %4531 = vmatprep.subr.bf16.mxu0 0
    %4532 = vmatpush1.bf16.msra.mxu0 %v4444
    %4533 = vmatprep.subr.bf16.mxu0 0
    %4534 = vmatpush1.bf16.msra.mxu0 %v4443
    %4535 = vmatprep.subr.bf16.mxu0 0
    %4536 = vmatpush1.bf16.msra.mxu0 %v4442
    %4537 = vmatprep.subr.bf16.mxu0 0
    %4538 = vmatpush1.bf16.msra.mxu0 %v4441
    %4539 = vmatprep.subr.bf16.mxu0 0
    %4540 = vmatpush1.bf16.msra.mxu0 %v4440
    %4541 = vmatprep.subr.bf16.mxu0 0
    %4542 = vmatpush1.bf16.msra.mxu0 %v4439
    %4543 = vmatprep.subr.bf16.mxu0 0
    %4544 = vmatpush2.bf16.msra.mxu0 %v4454
    %4545 = vmatprep.subr.bf16.mxu0 0
    %4546 = vmatpush2.bf16.msra.mxu0 %v4453
    %4547 = vmatprep.subr.bf16.mxu0 0
    %4548 = vmatpush2.bf16.msra.mxu0 %v4452
    %4549 = vmatprep.subr.bf16.mxu0 0
    %4550 = vmatpush2.bf16.msra.mxu0 %v4451
    %4551 = vmatprep.subr.bf16.mxu0 0
    %4552 = vmatpush2.bf16.msra.mxu0 %v4450
    %4553 = vmatprep.subr.bf16.mxu0 0
    %4554 = vmatpush2.bf16.msra.mxu0 %v4449
    %4555 = vmatprep.subr.bf16.mxu0 0
    %4556 = vmatpush2.bf16.msra.mxu0 %v4448
    %4557 = vmatprep.subr.bf16.mxu0 0
    %4558 = vmatpush2.bf16.msra.mxu0 %v4447
    %4559 = vmatprep.mubr.bf16.mxu0 %v4224
    %4560 = vmatmul.mubr.bf16.gmra.mxu0 %v4223
    %v4561 = vpop.f32.mrf.mxu0
    %v4562 = vadd.f32 %v4522, %v4561
    %v4563 = vpop.f32.mrf.mxu0
    %v4564 = vpop.f32.mrf.mxu0
    %v4565 = vpop.f32.mrf.mxu0
    %4566 = vdwg.mxu0
    %4567 = vst [vmem:[%s13] sm:$0x3] %v4562
    // Predicated region
    $region78: #{joint_decoder_forward.1} parent=1 // pred_check
      _
    $region79: #{joint_decoder_forward.1} parent=1 // pred_check_branch
      %4569 = sbr.rel (0) target = $region81
    $region80: #{joint_decoder_forward.1} parent=1 // pred_region
      _
    $region81: #{joint_decoder_forward.1} parent=1 // pred_fallthru
      _
    // Predicated region
    $region82: #{joint_decoder_forward.1} parent=1 // pred_check
      _
    $region83: #{joint_decoder_forward.1} parent=1 // pred_check_branch
      %4571 = sbr.rel (0) target = $region85
    $region84: #{joint_decoder_forward.1} parent=1 // pred_region
      _
    $region85: #{joint_decoder_forward.1} parent=1 // pred_fallthru
      _
    %4572 = vsyncpa [#allocation3], 1
    %4573 = vsyncpa [#allocation5], 1
    %4574 = vsyncpa [#allocation8], 1
    %4575 = vsyncpa [#allocation11], 1

</llo_original>
